<compile_context>
chip_gen: v7x
topology: tpu7x:2x2x1
jax: 0.10.0
libtpu: 0.0.40
codegen_flags: <defaults>
</compile_context>

<pallas_src>
import functools

import jax
import jax.numpy as jnp
from jax.experimental import pallas as pl
from jax.experimental.pallas import tpu as pltpu


# ----------------------------------------------------------------------------
# In-kernel helpers (operate on (C, H*W) values, spatial flattened on lanes)
# ----------------------------------------------------------------------------
def _shift_flat(x, s):
    """result[:, p] = x[:, p+s] if 0 <= p+s < HW else 0 (s is a static int)."""
    if s == 0:
        return x
    c, n = x.shape
    pad = jnp.zeros((c, abs(s)), x.dtype)
    if s > 0:
        return jnp.concatenate([x[:, s:], pad], axis=1)
    return jnp.concatenate([pad, x[:, :n + s]], axis=1)


def _im2col_taps(x, w_spatial):
    """9 shifted-and-masked copies of x (C, HW) for a 3x3 stride-1 pad-1 conv."""
    _, hw = x.shape
    lane = jax.lax.broadcasted_iota(jnp.int32, (1, hw), 1)
    xpos = lane % w_spatial
    ok_left = xpos >= 1                   # source column x-1 in range
    ok_right = xpos < (w_spatial - 1)     # source column x+1 in range
    taps = []
    for oy in (-1, 0, 1):
        for ox in (-1, 0, 1):
            t = _shift_flat(x, oy * w_spatial + ox)
            if ox == -1:
                t = jnp.where(ok_left, t, 0.0)
            elif ox == 1:
                t = jnp.where(ok_right, t, 0.0)
            taps.append(t)
    return taps


def _conv3x3_gn_relu(x, w2d, amat, gamma, beta, w_spatial):
    """3x3 conv (stride 1, pad 1, no bias) + GroupNorm + ReLU.

    x:     (Cin, HW) f32
    w2d:   (Cout, 9*Cin) bf16, rows ordered (ky, kx) outer, ci inner
    amat:  (Cout, Cout) f32, amat[c,c'] = [group(c)==group(c')] / (Cg*HW)
    gamma, beta: (Cout, 1) f32
    """
    cin, hw = x.shape
    cout = w2d.shape[0]
    taps = _im2col_taps(x, w_spatial)

    if cin == 1:
        # Cin=1: 9 rank-1 broadcast FMAs on the VPU (K=1 matmuls waste the MXU).
        wf = w2d.astype(jnp.float32)                       # (Cout, 9)
        acc = jnp.zeros((cout, hw), jnp.float32)
        for k, t in enumerate(taps):
            acc = acc + wf[:, k:k + 1] * t
    else:
        # Single im2col matmul: (Cout, 9*Cin) @ (9*Cin, HW), bf16 in, f32 acc.
        xcol = jnp.concatenate(taps, axis=0).astype(jnp.bfloat16)
        acc = jnp.dot(w2d, xcol, preferred_element_type=jnp.float32)

    # GroupNorm (biased variance, eps=1e-5), stats in f32.
    # amat @ acc broadcasts the group-channel average to every channel; a lane
    # reduction then yields the per-group mean / E[x^2] as (Cout, 1) columns.
    mean_c = jnp.sum(jnp.dot(amat, acc, preferred_element_type=jnp.float32),
                     axis=1, keepdims=True)                # (Cout, 1)
    ex2_c = jnp.sum(jnp.dot(amat, acc * acc, preferred_element_type=jnp.float32),
                    axis=1, keepdims=True)                 # (Cout, 1)
    var_c = jnp.maximum(ex2_c - mean_c * mean_c, 0.0)      # clamp >= 0
    inv_c = jax.lax.rsqrt(var_c + 1e-5)
    # Fold affine into one per-channel scale/shift, then fused with ReLU.
    scale_c = inv_c * gamma
    shift_c = beta - mean_c * scale_c
    return jnp.maximum(acc * scale_c + shift_c, 0.0)


def _maxpool2x2_flat(y, w_spatial, sel):
    """2x2/stride-2 max pool on (C, H*W); sel is the (HW, HW/4) 0/1 gather."""
    a = jnp.maximum(y, _shift_flat(y, 1))           # horizontal pair max
    b = jnp.maximum(a, _shift_flat(a, w_spatial))   # + vertical pair max
    return jnp.dot(b, sel, preferred_element_type=jnp.float32)


# ----------------------------------------------------------------------------
# Fused VGG4 kernel: one grid step == one batch element, all layers in VMEM.
# ----------------------------------------------------------------------------
def _vgg4_fused_kernel(x_ref,
                       w1a_ref, g1a_ref, b1a_ref, w1b_ref, g1b_ref, b1b_ref,
                       a1_ref, s1_ref,
                       w2a_ref, g2a_ref, b2a_ref, w2b_ref, g2b_ref, b2b_ref,
                       a2_ref, s2_ref, wl_ref, o_ref, *, W1, W2):
    h = x_ref[...]                                                  # (1, H1*W1)
    # vgg_conv_1: conv+GN+ReLU, conv+GN+ReLU, maxpool
    h = _conv3x3_gn_relu(h, w1a_ref[...], a1_ref[...], g1a_ref[...], b1a_ref[...], W1)
    h = _conv3x3_gn_relu(h, w1b_ref[...], a1_ref[...], g1b_ref[...], b1b_ref[...], W1)
    h = _maxpool2x2_flat(h, W1, s1_ref[...])                        # (f1, H2*W2)
    # vgg_conv_2
    h = _conv3x3_gn_relu(h, w2a_ref[...], a2_ref[...], g2a_ref[...], b2a_ref[...], W2)
    h = _conv3x3_gn_relu(h, w2b_ref[...], a2_ref[...], g2b_ref[...], b2b_ref[...], W2)
    h = _maxpool2x2_flat(h, W2, s2_ref[...])                        # (f2, H3*W3)
    # features: global avg pool -> flatten -> linear (no bias), fused.
    z = jnp.dot(wl_ref[...], h.astype(jnp.bfloat16),
                preferred_element_type=jnp.float32)                 # (out_fts, H3*W3)
    o_ref[...] = jnp.sum(z, axis=1, keepdims=True) * (1.0 / s2_ref.shape[1])


# ----------------------------------------------------------------------------
# Wrapper
# ----------------------------------------------------------------------------
def _group_mean_matrix(channels, groups, hw):
    cg = channels // groups
    gid = jnp.arange(channels) // cg
    same = (gid[:, None] == gid[None, :]).astype(jnp.float32)
    return same / float(cg * hw)


def _pool_select_matrix(h, w):
    ho, wo = h // 2, w // 2
    p = jnp.arange(ho * wo)
    src = 2 * (p // wo) * w + 2 * (p % wo)
    q = jnp.arange(h * w)
    return (q[:, None] == src[None, :]).astype(jnp.float32)         # (h*w, ho*wo)


@functools.partial(jax.jit, static_argnames=("group_num",))
def vgg4_forward(x_nchw, params, *, group_num):
    n, cin, h, w = x_nchw.shape
    f1 = params["w1a"].shape[0]
    f2 = params["w2a"].shape[0]
    out_fts = params["w_lin"].shape[0]
    h2, w2 = h // 2, w // 2

    x_flat = x_nchw.reshape(n, cin, h * w)                          # lane-dense spatial

    a1 = _group_mean_matrix(f1, group_num, h * w)
    a2 = _group_mean_matrix(f2, group_num, h2 * w2)
    s1 = _pool_select_matrix(h, w)
    s2 = _pool_select_matrix(h2, w2)

    def const_spec(arr):                                            # all constants are 2-D
        return pl.BlockSpec(arr.shape, lambda i: (0, 0))

    kern = functools.partial(_vgg4_fused_kernel, W1=w, W2=w2)
    out = pl.pallas_call(
        kern,
        out_shape=jax.ShapeDtypeStruct((n, out_fts, 1), jnp.float32),
        grid=(n,),
        in_specs=[
            pl.BlockSpec((pl.Squeezed(), cin, h * w), lambda i: (i, 0, 0)),
            const_spec(params["w1a"]), const_spec(params["g1a"]), const_spec(params["b1a"]),
            const_spec(params["w1b"]), const_spec(params["g1b"]), const_spec(params["b1b"]),
            const_spec(a1), const_spec(s1),
            const_spec(params["w2a"]), const_spec(params["g2a"]), const_spec(params["b2a"]),
            const_spec(params["w2b"]), const_spec(params["g2b"]), const_spec(params["b2b"]),
            const_spec(a2), const_spec(s2),
            const_spec(params["w_lin"]),
        ],
        out_specs=pl.BlockSpec((pl.Squeezed(), out_fts, 1), lambda i: (i, 0, 0)),
        compiler_params=pltpu.CompilerParams(
            dimension_semantics=("parallel",)),     # batch across v7x's 2 TCs
    )(x_flat,
      params["w1a"], params["g1a"], params["b1a"],
      params["w1b"], params["g1b"], params["b1b"], a1, s1,
      params["w2a"], params["g2a"], params["b2a"],
      params["w2b"], params["g2b"], params["b2b"], a2, s2,
      params["w_lin"])
    return out.reshape(n, out_fts)


def init_params(key, in_ch, filters, out_fts):
    ks = jax.random.split(key, 9)
    f1, f2 = filters

    def conv_w(k, cin, cout):
        # PyTorch layout (Cout, Cin, 3, 3) -> (Cout, 9*Cin) with (ky,kx) outer, ci inner.
        wt = 0.1 * jax.random.normal(k, (cout, cin, 3, 3), jnp.float32)
        return jnp.transpose(wt, (0, 2, 3, 1)).reshape(cout, 9 * cin).astype(jnp.bfloat16)

    def gn(k, c):
        kg, kb = jax.random.split(k)
        return (1.0 + 0.1 * jax.random.normal(kg, (c, 1), jnp.float32),
                0.1 * jax.random.normal(kb, (c, 1), jnp.float32))

    p = {}
    p["w1a"] = conv_w(ks[0], in_ch, f1); p["g1a"], p["b1a"] = gn(ks[1], f1)
    p["w1b"] = conv_w(ks[2], f1, f1);    p["g1b"], p["b1b"] = gn(ks[3], f1)
    p["w2a"] = conv_w(ks[4], f1, f2);    p["g2a"], p["b2a"] = gn(ks[5], f2)
    p["w2b"] = conv_w(ks[6], f2, f2);    p["g2b"], p["b2b"] = gn(ks[7], f2)
    # nn.Linear(in=f2, out=out_fts, bias=False): weight (out, in), used as-is.
    p["w_lin"] = (0.1 * jax.random.normal(ks[8], (out_fts, f2), jnp.float32)
                  ).astype(jnp.bfloat16)
    return p


if __name__ == "__main__":
    BATCH, IN_CH, HW = 2, 1, 16
    FILTERS = [16, 32]
    GROUPS = 8
    OUT_FTS = 32

    key = jax.random.PRNGKey(0)
    k_x, k_p = jax.random.split(key)

    # PyTorch-style NCHW input.
    x_nchw = jax.random.normal(k_x, (BATCH, IN_CH, HW, HW), jnp.float32)
    params = init_params(k_p, IN_CH, FILTERS, OUT_FTS)

    out = vgg4_forward(x_nchw, params, group_num=GROUPS)
    out = jax.block_until_ready(out)
    assert out.shape == (BATCH, OUT_FTS), out.shape
    assert out.dtype == jnp.float32
    print("KERNEL_OK")
</pallas_src>

<mosaic_0001>
module attributes {stable_mosaic.version = 11 : i64} {
  func.func @_vgg4_fused_kernel(%arg0: i32, %arg1: memref<1x1x256xf32, #tpu.memory_space<vmem>>, %arg2: memref<16x9xbf16, #tpu.memory_space<vmem>>, %arg3: memref<16x1xf32, #tpu.memory_space<vmem>>, %arg4: memref<16x1xf32, #tpu.memory_space<vmem>>, %arg5: memref<16x144xbf16, #tpu.memory_space<vmem>>, %arg6: memref<16x1xf32, #tpu.memory_space<vmem>>, %arg7: memref<16x1xf32, #tpu.memory_space<vmem>>, %arg8: memref<16x16xf32, #tpu.memory_space<vmem>>, %arg9: memref<256x64xf32, #tpu.memory_space<vmem>>, %arg10: memref<32x144xbf16, #tpu.memory_space<vmem>>, %arg11: memref<32x1xf32, #tpu.memory_space<vmem>>, %arg12: memref<32x1xf32, #tpu.memory_space<vmem>>, %arg13: memref<32x288xbf16, #tpu.memory_space<vmem>>, %arg14: memref<32x1xf32, #tpu.memory_space<vmem>>, %arg15: memref<32x1xf32, #tpu.memory_space<vmem>>, %arg16: memref<32x32xf32, #tpu.memory_space<vmem>>, %arg17: memref<64x16xf32, #tpu.memory_space<vmem>>, %arg18: memref<32x32xbf16, #tpu.memory_space<vmem>>, %arg19: memref<1x32x1xf32, #tpu.memory_space<vmem>>) attributes {dimension_semantics = [#tpu.dimension_semantics<parallel>], iteration_bounds = array<i64: 2>, scalar_prefetch = 0 : i64, scratch_operands = 0 : i64, tpu.core_type = #tpu.core_type<tc>, window_params = [{transform_indices = @transform_0, window_bounds = array<i64: 1, 1, 256>}, {pipeline_mode = #tpu.pipeline_mode<synchronous>, transform_indices = @transform_1, window_bounds = array<i64: 16, 9>}, {pipeline_mode = #tpu.pipeline_mode<synchronous>, transform_indices = @transform_2, window_bounds = array<i64: 16, 1>}, {pipeline_mode = #tpu.pipeline_mode<synchronous>, transform_indices = @transform_3, window_bounds = array<i64: 16, 1>}, {pipeline_mode = #tpu.pipeline_mode<synchronous>, transform_indices = @transform_4, window_bounds = array<i64: 16, 144>}, {pipeline_mode = #tpu.pipeline_mode<synchronous>, transform_indices = @transform_5, window_bounds = array<i64: 16, 1>}, {pipeline_mode = #tpu.pipeline_mode<synchronous>, transform_indices = @transform_6, window_bounds = array<i64: 16, 1>}, {pipeline_mode = #tpu.pipeline_mode<synchronous>, transform_indices = @transform_7, window_bounds = array<i64: 16, 16>}, {pipeline_mode = #tpu.pipeline_mode<synchronous>, transform_indices = @transform_8, window_bounds = array<i64: 256, 64>}, {pipeline_mode = #tpu.pipeline_mode<synchronous>, transform_indices = @transform_9, window_bounds = array<i64: 32, 144>}, {pipeline_mode = #tpu.pipeline_mode<synchronous>, transform_indices = @transform_10, window_bounds = array<i64: 32, 1>}, {pipeline_mode = #tpu.pipeline_mode<synchronous>, transform_indices = @transform_11, window_bounds = array<i64: 32, 1>}, {pipeline_mode = #tpu.pipeline_mode<synchronous>, transform_indices = @transform_12, window_bounds = array<i64: 32, 288>}, {pipeline_mode = #tpu.pipeline_mode<synchronous>, transform_indices = @transform_13, window_bounds = array<i64: 32, 1>}, {pipeline_mode = #tpu.pipeline_mode<synchronous>, transform_indices = @transform_14, window_bounds = array<i64: 32, 1>}, {pipeline_mode = #tpu.pipeline_mode<synchronous>, transform_indices = @transform_15, window_bounds = array<i64: 32, 32>}, {pipeline_mode = #tpu.pipeline_mode<synchronous>, transform_indices = @transform_16, window_bounds = array<i64: 64, 16>}, {pipeline_mode = #tpu.pipeline_mode<synchronous>, transform_indices = @transform_17, window_bounds = array<i64: 32, 32>}, {transform_indices = @transform_18, window_bounds = array<i64: 1, 32, 1>}]} {
    %c0 = arith.constant 0 : index
    %c0_0 = arith.constant 0 : index
    %c0_1 = arith.constant 0 : index
    %0 = vector.load %arg1[%c0, %c0_0, %c0_1] : memref<1x1x256xf32, #tpu.memory_space<vmem>>, vector<1x1x256xf32>
    %1 = vector.shape_cast %0 : vector<1x1x256xf32> to vector<1x256xf32>
    %c0_2 = arith.constant 0 : index
    %c0_3 = arith.constant 0 : index
    %2 = vector.load %arg2[%c0_2, %c0_3] : memref<16x9xbf16, #tpu.memory_space<vmem>>, vector<16x9xbf16>
    %c0_4 = arith.constant 0 : index
    %c0_5 = arith.constant 0 : index
    %3 = vector.load %arg8[%c0_4, %c0_5] : memref<16x16xf32, #tpu.memory_space<vmem>>, vector<16x16xf32>
    %c0_6 = arith.constant 0 : index
    %c0_7 = arith.constant 0 : index
    %4 = vector.load %arg3[%c0_6, %c0_7] : memref<16x1xf32, #tpu.memory_space<vmem>>, vector<16x1xf32>
    %c0_8 = arith.constant 0 : index
    %c0_9 = arith.constant 0 : index
    %5 = vector.load %arg4[%c0_8, %c0_9] : memref<16x1xf32, #tpu.memory_space<vmem>>, vector<16x1xf32>
    %6 = tpu.iota {dimensions = array<i32: 1>} : vector<1x256xi32>
    %c16_i32 = arith.constant 16 : i32
    %c0_i32 = arith.constant 0 : i32
    %7 = arith.cmpi eq, %c16_i32, %c0_i32 : i32
    %c1_i32 = arith.constant 1 : i32
    %8 = arith.select %7, %c1_i32, %c16_i32 : i32
    %9 = vector.broadcast %8 : i32 to vector<1x256xi32>
    %10 = arith.remsi %6, %9 : vector<1x256xi32>
    %c0_i32_10 = arith.constant 0 : i32
    %11 = vector.broadcast %c0_i32_10 : i32 to vector<1x256xi32>
    %12 = arith.cmpi ne, %10, %11 : vector<1x256xi32>
    %c0_i32_11 = arith.constant 0 : i32
    %13 = vector.broadcast %c0_i32_11 : i32 to vector<1x256xi32>
    %14 = arith.cmpi slt, %10, %13 : vector<1x256xi32>
    %c0_i32_12 = arith.constant 0 : i32
    %15 = arith.cmpi slt, %8, %c0_i32_12 : i32
    %16 = vector.broadcast %15 : i1 to vector<1x256xi1>
    %17 = vector.broadcast %16 : vector<1x256xi1> to vector<1x256xi1>
    %18 = arith.xori %14, %17 : vector<1x256xi1>
    %19 = arith.andi %18, %12 : vector<1x256xi1>
    %20 = vector.broadcast %8 : i32 to vector<1x256xi32>
    %21 = arith.addi %10, %20 : vector<1x256xi32>
    %22 = arith.select %19, %21, %10 : vector<1x256xi1>, vector<1x256xi32>
    %c1_i32_13 = arith.constant 1 : i32
    %23 = vector.broadcast %c1_i32_13 : i32 to vector<1x256xi32>
    %24 = arith.cmpi sge, %22, %23 : vector<1x256xi32>
    %c15_i32 = arith.constant 15 : i32
    %25 = vector.broadcast %c15_i32 : i32 to vector<1x256xi32>
    %26 = arith.cmpi slt, %22, %25 : vector<1x256xi32>
    %cst = arith.constant 0.000000e+00 : f32
    %27 = vector.broadcast %cst : f32 to vector<1x17xf32>
    %28 = vector.extract_strided_slice %1 {offsets = [0, 0], sizes = [1, 239], strides = [1, 1]} : vector<1x256xf32> to vector<1x239xf32>
    %29 = tpu.concatenate %27, %28 in 1 : vector<1x17xf32>, vector<1x239xf32> -> vector<1x256xf32>
    %cst_14 = arith.constant 0.000000e+00 : f32
    %30 = vector.broadcast %cst_14 : f32 to vector<1x256xf32>
    %31 = arith.select %24, %29, %30 : vector<1x256xi1>, vector<1x256xf32>
    %cst_15 = arith.constant 0.000000e+00 : f32
    %32 = vector.broadcast %cst_15 : f32 to vector<1x16xf32>
    %33 = vector.extract_strided_slice %1 {offsets = [0, 0], sizes = [1, 240], strides = [1, 1]} : vector<1x256xf32> to vector<1x240xf32>
    %34 = tpu.concatenate %32, %33 in 1 : vector<1x16xf32>, vector<1x240xf32> -> vector<1x256xf32>
    %cst_16 = arith.constant 0.000000e+00 : f32
    %35 = vector.broadcast %cst_16 : f32 to vector<1x15xf32>
    %36 = vector.extract_strided_slice %1 {offsets = [0, 0], sizes = [1, 241], strides = [1, 1]} : vector<1x256xf32> to vector<1x241xf32>
    %37 = tpu.concatenate %35, %36 in 1 : vector<1x15xf32>, vector<1x241xf32> -> vector<1x256xf32>
    %cst_17 = arith.constant 0.000000e+00 : f32
    %38 = vector.broadcast %cst_17 : f32 to vector<1x256xf32>
    %39 = arith.select %26, %37, %38 : vector<1x256xi1>, vector<1x256xf32>
    %cst_18 = arith.constant 0.000000e+00 : f32
    %40 = vector.broadcast %cst_18 : f32 to vector<1x1xf32>
    %41 = vector.extract_strided_slice %1 {offsets = [0, 0], sizes = [1, 255], strides = [1, 1]} : vector<1x256xf32> to vector<1x255xf32>
    %42 = tpu.concatenate %40, %41 in 1 : vector<1x1xf32>, vector<1x255xf32> -> vector<1x256xf32>
    %cst_19 = arith.constant 0.000000e+00 : f32
    %43 = vector.broadcast %cst_19 : f32 to vector<1x256xf32>
    %44 = arith.select %24, %42, %43 : vector<1x256xi1>, vector<1x256xf32>
    %cst_20 = arith.constant 0.000000e+00 : f32
    %45 = vector.broadcast %cst_20 : f32 to vector<1x1xf32>
    %46 = vector.extract_strided_slice %1 {offsets = [0, 1], sizes = [1, 255], strides = [1, 1]} : vector<1x256xf32> to vector<1x255xf32>
    %47 = tpu.concatenate %46, %45 in 1 : vector<1x255xf32>, vector<1x1xf32> -> vector<1x256xf32>
    %cst_21 = arith.constant 0.000000e+00 : f32
    %48 = vector.broadcast %cst_21 : f32 to vector<1x256xf32>
    %49 = arith.select %26, %47, %48 : vector<1x256xi1>, vector<1x256xf32>
    %cst_22 = arith.constant 0.000000e+00 : f32
    %50 = vector.broadcast %cst_22 : f32 to vector<1x15xf32>
    %51 = vector.extract_strided_slice %1 {offsets = [0, 15], sizes = [1, 241], strides = [1, 1]} : vector<1x256xf32> to vector<1x241xf32>
    %52 = tpu.concatenate %51, %50 in 1 : vector<1x241xf32>, vector<1x15xf32> -> vector<1x256xf32>
    %cst_23 = arith.constant 0.000000e+00 : f32
    %53 = vector.broadcast %cst_23 : f32 to vector<1x256xf32>
    %54 = arith.select %24, %52, %53 : vector<1x256xi1>, vector<1x256xf32>
    %cst_24 = arith.constant 0.000000e+00 : f32
    %55 = vector.broadcast %cst_24 : f32 to vector<1x16xf32>
    %56 = vector.extract_strided_slice %1 {offsets = [0, 16], sizes = [1, 240], strides = [1, 1]} : vector<1x256xf32> to vector<1x240xf32>
    %57 = tpu.concatenate %56, %55 in 1 : vector<1x240xf32>, vector<1x16xf32> -> vector<1x256xf32>
    %cst_25 = arith.constant 0.000000e+00 : f32
    %58 = vector.broadcast %cst_25 : f32 to vector<1x17xf32>
    %59 = vector.extract_strided_slice %1 {offsets = [0, 17], sizes = [1, 239], strides = [1, 1]} : vector<1x256xf32> to vector<1x239xf32>
    %60 = tpu.concatenate %59, %58 in 1 : vector<1x239xf32>, vector<1x17xf32> -> vector<1x256xf32>
    %cst_26 = arith.constant 0.000000e+00 : f32
    %61 = vector.broadcast %cst_26 : f32 to vector<1x256xf32>
    %62 = arith.select %26, %60, %61 : vector<1x256xi1>, vector<1x256xf32>
    %63 = arith.extf %2 : vector<16x9xbf16> to vector<16x9xf32>
    %cst_27 = arith.constant 0.000000e+00 : f32
    %64 = vector.broadcast %cst_27 : f32 to vector<16x256xf32>
    %65 = vector.extract_strided_slice %63 {offsets = [0, 0], sizes = [16, 1], strides = [1, 1]} : vector<16x9xf32> to vector<16x1xf32>
    %66 = vector.broadcast %65 : vector<16x1xf32> to vector<16x256xf32>
    %67 = vector.broadcast %31 : vector<1x256xf32> to vector<16x256xf32>
    %68 = arith.mulf %66, %67 : vector<16x256xf32>
    %69 = arith.addf %64, %68 : vector<16x256xf32>
    %70 = vector.extract_strided_slice %63 {offsets = [0, 1], sizes = [16, 1], strides = [1, 1]} : vector<16x9xf32> to vector<16x1xf32>
    %71 = vector.broadcast %70 : vector<16x1xf32> to vector<16x256xf32>
    %72 = vector.broadcast %34 : vector<1x256xf32> to vector<16x256xf32>
    %73 = arith.mulf %71, %72 : vector<16x256xf32>
    %74 = arith.addf %69, %73 : vector<16x256xf32>
    %75 = vector.extract_strided_slice %63 {offsets = [0, 2], sizes = [16, 1], strides = [1, 1]} : vector<16x9xf32> to vector<16x1xf32>
    %76 = vector.broadcast %75 : vector<16x1xf32> to vector<16x256xf32>
    %77 = vector.broadcast %39 : vector<1x256xf32> to vector<16x256xf32>
    %78 = arith.mulf %76, %77 : vector<16x256xf32>
    %79 = arith.addf %74, %78 : vector<16x256xf32>
    %80 = vector.extract_strided_slice %63 {offsets = [0, 3], sizes = [16, 1], strides = [1, 1]} : vector<16x9xf32> to vector<16x1xf32>
    %81 = vector.broadcast %80 : vector<16x1xf32> to vector<16x256xf32>
    %82 = vector.broadcast %44 : vector<1x256xf32> to vector<16x256xf32>
    %83 = arith.mulf %81, %82 : vector<16x256xf32>
    %84 = arith.addf %79, %83 : vector<16x256xf32>
    %85 = vector.extract_strided_slice %63 {offsets = [0, 4], sizes = [16, 1], strides = [1, 1]} : vector<16x9xf32> to vector<16x1xf32>
    %86 = vector.broadcast %85 : vector<16x1xf32> to vector<16x256xf32>
    %87 = vector.broadcast %1 : vector<1x256xf32> to vector<16x256xf32>
    %88 = arith.mulf %86, %87 : vector<16x256xf32>
    %89 = arith.addf %84, %88 : vector<16x256xf32>
    %90 = vector.extract_strided_slice %63 {offsets = [0, 5], sizes = [16, 1], strides = [1, 1]} : vector<16x9xf32> to vector<16x1xf32>
    %91 = vector.broadcast %90 : vector<16x1xf32> to vector<16x256xf32>
    %92 = vector.broadcast %49 : vector<1x256xf32> to vector<16x256xf32>
    %93 = arith.mulf %91, %92 : vector<16x256xf32>
    %94 = arith.addf %89, %93 : vector<16x256xf32>
    %95 = vector.extract_strided_slice %63 {offsets = [0, 6], sizes = [16, 1], strides = [1, 1]} : vector<16x9xf32> to vector<16x1xf32>
    %96 = vector.broadcast %95 : vector<16x1xf32> to vector<16x256xf32>
    %97 = vector.broadcast %54 : vector<1x256xf32> to vector<16x256xf32>
    %98 = arith.mulf %96, %97 : vector<16x256xf32>
    %99 = arith.addf %94, %98 : vector<16x256xf32>
    %100 = vector.extract_strided_slice %63 {offsets = [0, 7], sizes = [16, 1], strides = [1, 1]} : vector<16x9xf32> to vector<16x1xf32>
    %101 = vector.broadcast %100 : vector<16x1xf32> to vector<16x256xf32>
    %102 = vector.broadcast %57 : vector<1x256xf32> to vector<16x256xf32>
    %103 = arith.mulf %101, %102 : vector<16x256xf32>
    %104 = arith.addf %99, %103 : vector<16x256xf32>
    %105 = vector.extract_strided_slice %63 {offsets = [0, 8], sizes = [16, 1], strides = [1, 1]} : vector<16x9xf32> to vector<16x1xf32>
    %106 = vector.broadcast %105 : vector<16x1xf32> to vector<16x256xf32>
    %107 = vector.broadcast %62 : vector<1x256xf32> to vector<16x256xf32>
    %108 = arith.mulf %106, %107 : vector<16x256xf32>
    %109 = arith.addf %104, %108 : vector<16x256xf32>
    %cst_28 = arith.constant dense<0.000000e+00> : vector<16x256xf32>
    %110 = tpu.matmul %3, %109, %cst_28 {dimension_numbers = #tpu.dot_dimension_numbers<[1], [0], [0], [1], [0, 0, 1, 1], [], []>} : vector<16x16xf32>, vector<16x256xf32>, vector<16x256xf32> -> vector<16x256xf32>
    %cst_29 = arith.constant dense<0.000000e+00> : vector<16xf32>
    %111 = vector.multi_reduction <add>, %110, %cst_29 [1] : vector<16x256xf32> to vector<16xf32>
    %112 = vector.shape_cast %111 : vector<16xf32> to vector<16x1xf32>
    %113 = arith.mulf %109, %109 : vector<16x256xf32>
    %cst_30 = arith.constant dense<0.000000e+00> : vector<16x256xf32>
    %114 = tpu.matmul %3, %113, %cst_30 {dimension_numbers = #tpu.dot_dimension_numbers<[1], [0], [0], [1], [0, 0, 1, 1], [], []>} : vector<16x16xf32>, vector<16x256xf32>, vector<16x256xf32> -> vector<16x256xf32>
    %cst_31 = arith.constant dense<0.000000e+00> : vector<16xf32>
    %115 = vector.multi_reduction <add>, %114, %cst_31 [1] : vector<16x256xf32> to vector<16xf32>
    %116 = vector.shape_cast %115 : vector<16xf32> to vector<16x1xf32>
    %117 = arith.mulf %112, %112 : vector<16x1xf32>
    %118 = arith.subf %116, %117 : vector<16x1xf32>
    %cst_32 = arith.constant 0.000000e+00 : f32
    %119 = vector.broadcast %cst_32 : f32 to vector<16x1xf32>
    %120 = arith.maximumf %118, %119 : vector<16x1xf32>
    %cst_33 = arith.constant 9.99999974E-6 : f32
    %121 = vector.broadcast %cst_33 : f32 to vector<16x1xf32>
    %122 = arith.addf %120, %121 : vector<16x1xf32>
    %123 = math.rsqrt %122 : vector<16x1xf32>
    %124 = arith.mulf %123, %4 : vector<16x1xf32>
    %125 = arith.mulf %112, %124 : vector<16x1xf32>
    %126 = arith.subf %5, %125 : vector<16x1xf32>
    %127 = vector.broadcast %124 : vector<16x1xf32> to vector<16x256xf32>
    %128 = arith.mulf %109, %127 : vector<16x256xf32>
    %129 = vector.broadcast %126 : vector<16x1xf32> to vector<16x256xf32>
    %130 = arith.addf %128, %129 : vector<16x256xf32>
    %cst_34 = arith.constant 0.000000e+00 : f32
    %131 = vector.broadcast %cst_34 : f32 to vector<16x256xf32>
    %132 = arith.maximumf %130, %131 : vector<16x256xf32>
    %c0_35 = arith.constant 0 : index
    %c0_36 = arith.constant 0 : index
    %133 = vector.load %arg5[%c0_35, %c0_36] : memref<16x144xbf16, #tpu.memory_space<vmem>>, vector<16x144xbf16>
    %c0_37 = arith.constant 0 : index
    %c0_38 = arith.constant 0 : index
    %134 = vector.load %arg8[%c0_37, %c0_38] : memref<16x16xf32, #tpu.memory_space<vmem>>, vector<16x16xf32>
    %c0_39 = arith.constant 0 : index
    %c0_40 = arith.constant 0 : index
    %135 = vector.load %arg6[%c0_39, %c0_40] : memref<16x1xf32, #tpu.memory_space<vmem>>, vector<16x1xf32>
    %c0_41 = arith.constant 0 : index
    %c0_42 = arith.constant 0 : index
    %136 = vector.load %arg7[%c0_41, %c0_42] : memref<16x1xf32, #tpu.memory_space<vmem>>, vector<16x1xf32>
    %137 = tpu.iota {dimensions = array<i32: 1>} : vector<1x256xi32>
    %c16_i32_43 = arith.constant 16 : i32
    %c0_i32_44 = arith.constant 0 : i32
    %138 = arith.cmpi eq, %c16_i32_43, %c0_i32_44 : i32
    %c1_i32_45 = arith.constant 1 : i32
    %139 = arith.select %138, %c1_i32_45, %c16_i32_43 : i32
    %140 = vector.broadcast %139 : i32 to vector<1x256xi32>
    %141 = arith.remsi %137, %140 : vector<1x256xi32>
    %c0_i32_46 = arith.constant 0 : i32
    %142 = vector.broadcast %c0_i32_46 : i32 to vector<1x256xi32>
    %143 = arith.cmpi ne, %141, %142 : vector<1x256xi32>
    %c0_i32_47 = arith.constant 0 : i32
    %144 = vector.broadcast %c0_i32_47 : i32 to vector<1x256xi32>
    %145 = arith.cmpi slt, %141, %144 : vector<1x256xi32>
    %c0_i32_48 = arith.constant 0 : i32
    %146 = arith.cmpi slt, %139, %c0_i32_48 : i32
    %147 = vector.broadcast %146 : i1 to vector<1x256xi1>
    %148 = vector.broadcast %147 : vector<1x256xi1> to vector<1x256xi1>
    %149 = arith.xori %145, %148 : vector<1x256xi1>
    %150 = arith.andi %149, %143 : vector<1x256xi1>
    %151 = vector.broadcast %139 : i32 to vector<1x256xi32>
    %152 = arith.addi %141, %151 : vector<1x256xi32>
    %153 = arith.select %150, %152, %141 : vector<1x256xi1>, vector<1x256xi32>
    %c1_i32_49 = arith.constant 1 : i32
    %154 = vector.broadcast %c1_i32_49 : i32 to vector<1x256xi32>
    %155 = arith.cmpi sge, %153, %154 : vector<1x256xi32>
    %c15_i32_50 = arith.constant 15 : i32
    %156 = vector.broadcast %c15_i32_50 : i32 to vector<1x256xi32>
    %157 = arith.cmpi slt, %153, %156 : vector<1x256xi32>
    %cst_51 = arith.constant 0.000000e+00 : f32
    %158 = vector.broadcast %cst_51 : f32 to vector<16x17xf32>
    %159 = vector.extract_strided_slice %132 {offsets = [0, 0], sizes = [16, 239], strides = [1, 1]} : vector<16x256xf32> to vector<16x239xf32>
    %160 = tpu.concatenate %158, %159 in 1 : vector<16x17xf32>, vector<16x239xf32> -> vector<16x256xf32>
    %cst_52 = arith.constant 0.000000e+00 : f32
    %161 = vector.shape_cast %155 : vector<1x256xi1> to vector<1x256xi1>
    %162 = vector.broadcast %161 : vector<1x256xi1> to vector<16x256xi1>
    %163 = vector.broadcast %cst_52 : f32 to vector<16x256xf32>
    %164 = arith.select %162, %160, %163 : vector<16x256xi1>, vector<16x256xf32>
    %cst_53 = arith.constant 0.000000e+00 : f32
    %165 = vector.broadcast %cst_53 : f32 to vector<16x16xf32>
    %166 = vector.extract_strided_slice %132 {offsets = [0, 0], sizes = [16, 240], strides = [1, 1]} : vector<16x256xf32> to vector<16x240xf32>
    %167 = tpu.concatenate %165, %166 in 1 : vector<16x16xf32>, vector<16x240xf32> -> vector<16x256xf32>
    %cst_54 = arith.constant 0.000000e+00 : f32
    %168 = vector.broadcast %cst_54 : f32 to vector<16x15xf32>
    %169 = vector.extract_strided_slice %132 {offsets = [0, 0], sizes = [16, 241], strides = [1, 1]} : vector<16x256xf32> to vector<16x241xf32>
    %170 = tpu.concatenate %168, %169 in 1 : vector<16x15xf32>, vector<16x241xf32> -> vector<16x256xf32>
    %cst_55 = arith.constant 0.000000e+00 : f32
    %171 = vector.shape_cast %157 : vector<1x256xi1> to vector<1x256xi1>
    %172 = vector.broadcast %171 : vector<1x256xi1> to vector<16x256xi1>
    %173 = vector.broadcast %cst_55 : f32 to vector<16x256xf32>
    %174 = arith.select %172, %170, %173 : vector<16x256xi1>, vector<16x256xf32>
    %cst_56 = arith.constant 0.000000e+00 : f32
    %175 = vector.broadcast %cst_56 : f32 to vector<16x1xf32>
    %176 = vector.extract_strided_slice %132 {offsets = [0, 0], sizes = [16, 255], strides = [1, 1]} : vector<16x256xf32> to vector<16x255xf32>
    %177 = tpu.concatenate %175, %176 in 1 : vector<16x1xf32>, vector<16x255xf32> -> vector<16x256xf32>
    %cst_57 = arith.constant 0.000000e+00 : f32
    %178 = vector.shape_cast %155 : vector<1x256xi1> to vector<1x256xi1>
    %179 = vector.broadcast %178 : vector<1x256xi1> to vector<16x256xi1>
    %180 = vector.broadcast %cst_57 : f32 to vector<16x256xf32>
    %181 = arith.select %179, %177, %180 : vector<16x256xi1>, vector<16x256xf32>
    %cst_58 = arith.constant 0.000000e+00 : f32
    %182 = vector.broadcast %cst_58 : f32 to vector<16x1xf32>
    %183 = vector.extract_strided_slice %132 {offsets = [0, 1], sizes = [16, 255], strides = [1, 1]} : vector<16x256xf32> to vector<16x255xf32>
    %184 = tpu.concatenate %183, %182 in 1 : vector<16x255xf32>, vector<16x1xf32> -> vector<16x256xf32>
    %cst_59 = arith.constant 0.000000e+00 : f32
    %185 = vector.shape_cast %157 : vector<1x256xi1> to vector<1x256xi1>
    %186 = vector.broadcast %185 : vector<1x256xi1> to vector<16x256xi1>
    %187 = vector.broadcast %cst_59 : f32 to vector<16x256xf32>
    %188 = arith.select %186, %184, %187 : vector<16x256xi1>, vector<16x256xf32>
    %cst_60 = arith.constant 0.000000e+00 : f32
    %189 = vector.broadcast %cst_60 : f32 to vector<16x15xf32>
    %190 = vector.extract_strided_slice %132 {offsets = [0, 15], sizes = [16, 241], strides = [1, 1]} : vector<16x256xf32> to vector<16x241xf32>
    %191 = tpu.concatenate %190, %189 in 1 : vector<16x241xf32>, vector<16x15xf32> -> vector<16x256xf32>
    %cst_61 = arith.constant 0.000000e+00 : f32
    %192 = vector.shape_cast %155 : vector<1x256xi1> to vector<1x256xi1>
    %193 = vector.broadcast %192 : vector<1x256xi1> to vector<16x256xi1>
    %194 = vector.broadcast %cst_61 : f32 to vector<16x256xf32>
    %195 = arith.select %193, %191, %194 : vector<16x256xi1>, vector<16x256xf32>
    %cst_62 = arith.constant 0.000000e+00 : f32
    %196 = vector.broadcast %cst_62 : f32 to vector<16x16xf32>
    %197 = vector.extract_strided_slice %132 {offsets = [0, 16], sizes = [16, 240], strides = [1, 1]} : vector<16x256xf32> to vector<16x240xf32>
    %198 = tpu.concatenate %197, %196 in 1 : vector<16x240xf32>, vector<16x16xf32> -> vector<16x256xf32>
    %cst_63 = arith.constant 0.000000e+00 : f32
    %199 = vector.broadcast %cst_63 : f32 to vector<16x17xf32>
    %200 = vector.extract_strided_slice %132 {offsets = [0, 17], sizes = [16, 239], strides = [1, 1]} : vector<16x256xf32> to vector<16x239xf32>
    %201 = tpu.concatenate %200, %199 in 1 : vector<16x239xf32>, vector<16x17xf32> -> vector<16x256xf32>
    %cst_64 = arith.constant 0.000000e+00 : f32
    %202 = vector.shape_cast %157 : vector<1x256xi1> to vector<1x256xi1>
    %203 = vector.broadcast %202 : vector<1x256xi1> to vector<16x256xi1>
    %204 = vector.broadcast %cst_64 : f32 to vector<16x256xf32>
    %205 = arith.select %203, %201, %204 : vector<16x256xi1>, vector<16x256xf32>
    %206 = tpu.concatenate %164, %167, %174, %181, %132, %188, %195, %198, %205 in 0 : vector<16x256xf32>, vector<16x256xf32>, vector<16x256xf32>, vector<16x256xf32>, vector<16x256xf32>, vector<16x256xf32>, vector<16x256xf32>, vector<16x256xf32>, vector<16x256xf32> -> vector<144x256xf32>
    %207 = arith.truncf %206 : vector<144x256xf32> to vector<144x256xbf16>
    %cst_65 = arith.constant dense<0.000000e+00> : vector<16x256xf32>
    %208 = tpu.matmul %133, %207, %cst_65 {dimension_numbers = #tpu.dot_dimension_numbers<[1], [0], [0], [1], [0, 0, 1, 1], [], []>} : vector<16x144xbf16>, vector<144x256xbf16>, vector<16x256xf32> -> vector<16x256xf32>
    %cst_66 = arith.constant dense<0.000000e+00> : vector<16x256xf32>
    %209 = tpu.matmul %134, %208, %cst_66 {dimension_numbers = #tpu.dot_dimension_numbers<[1], [0], [0], [1], [0, 0, 1, 1], [], []>} : vector<16x16xf32>, vector<16x256xf32>, vector<16x256xf32> -> vector<16x256xf32>
    %cst_67 = arith.constant dense<0.000000e+00> : vector<16xf32>
    %210 = vector.multi_reduction <add>, %209, %cst_67 [1] : vector<16x256xf32> to vector<16xf32>
    %211 = vector.shape_cast %210 : vector<16xf32> to vector<16x1xf32>
    %212 = arith.mulf %208, %208 : vector<16x256xf32>
    %cst_68 = arith.constant dense<0.000000e+00> : vector<16x256xf32>
    %213 = tpu.matmul %134, %212, %cst_68 {dimension_numbers = #tpu.dot_dimension_numbers<[1], [0], [0], [1], [0, 0, 1, 1], [], []>} : vector<16x16xf32>, vector<16x256xf32>, vector<16x256xf32> -> vector<16x256xf32>
    %cst_69 = arith.constant dense<0.000000e+00> : vector<16xf32>
    %214 = vector.multi_reduction <add>, %213, %cst_69 [1] : vector<16x256xf32> to vector<16xf32>
    %215 = vector.shape_cast %214 : vector<16xf32> to vector<16x1xf32>
    %216 = arith.mulf %211, %211 : vector<16x1xf32>
    %217 = arith.subf %215, %216 : vector<16x1xf32>
    %cst_70 = arith.constant 0.000000e+00 : f32
    %218 = vector.broadcast %cst_70 : f32 to vector<16x1xf32>
    %219 = arith.maximumf %217, %218 : vector<16x1xf32>
    %cst_71 = arith.constant 9.99999974E-6 : f32
    %220 = vector.broadcast %cst_71 : f32 to vector<16x1xf32>
    %221 = arith.addf %219, %220 : vector<16x1xf32>
    %222 = math.rsqrt %221 : vector<16x1xf32>
    %223 = arith.mulf %222, %135 : vector<16x1xf32>
    %224 = arith.mulf %211, %223 : vector<16x1xf32>
    %225 = arith.subf %136, %224 : vector<16x1xf32>
    %226 = vector.broadcast %223 : vector<16x1xf32> to vector<16x256xf32>
    %227 = arith.mulf %208, %226 : vector<16x256xf32>
    %228 = vector.broadcast %225 : vector<16x1xf32> to vector<16x256xf32>
    %229 = arith.addf %227, %228 : vector<16x256xf32>
    %cst_72 = arith.constant 0.000000e+00 : f32
    %230 = vector.broadcast %cst_72 : f32 to vector<16x256xf32>
    %231 = arith.maximumf %229, %230 : vector<16x256xf32>
    %c0_73 = arith.constant 0 : index
    %c0_74 = arith.constant 0 : index
    %232 = vector.load %arg9[%c0_73, %c0_74] : memref<256x64xf32, #tpu.memory_space<vmem>>, vector<256x64xf32>
    %cst_75 = arith.constant 0.000000e+00 : f32
    %233 = vector.broadcast %cst_75 : f32 to vector<16x1xf32>
    %234 = vector.extract_strided_slice %231 {offsets = [0, 1], sizes = [16, 255], strides = [1, 1]} : vector<16x256xf32> to vector<16x255xf32>
    %235 = tpu.concatenate %234, %233 in 1 : vector<16x255xf32>, vector<16x1xf32> -> vector<16x256xf32>
    %236 = arith.maximumf %231, %235 : vector<16x256xf32>
    %cst_76 = arith.constant 0.000000e+00 : f32
    %237 = vector.broadcast %cst_76 : f32 to vector<16x16xf32>
    %238 = vector.extract_strided_slice %236 {offsets = [0, 16], sizes = [16, 240], strides = [1, 1]} : vector<16x256xf32> to vector<16x240xf32>
    %239 = tpu.concatenate %238, %237 in 1 : vector<16x240xf32>, vector<16x16xf32> -> vector<16x256xf32>
    %240 = arith.maximumf %236, %239 : vector<16x256xf32>
    %cst_77 = arith.constant dense<0.000000e+00> : vector<16x64xf32>
    %241 = tpu.matmul %240, %232, %cst_77 {dimension_numbers = #tpu.dot_dimension_numbers<[1], [0], [0], [1], [0, 0, 1, 1], [], []>} : vector<16x256xf32>, vector<256x64xf32>, vector<16x64xf32> -> vector<16x64xf32>
    %c0_78 = arith.constant 0 : index
    %c0_79 = arith.constant 0 : index
    %242 = vector.load %arg10[%c0_78, %c0_79] : memref<32x144xbf16, #tpu.memory_space<vmem>>, vector<32x144xbf16>
    %c0_80 = arith.constant 0 : index
    %c0_81 = arith.constant 0 : index
    %243 = vector.load %arg16[%c0_80, %c0_81] : memref<32x32xf32, #tpu.memory_space<vmem>>, vector<32x32xf32>
    %c0_82 = arith.constant 0 : index
    %c0_83 = arith.constant 0 : index
    %244 = vector.load %arg11[%c0_82, %c0_83] : memref<32x1xf32, #tpu.memory_space<vmem>>, vector<32x1xf32>
    %c0_84 = arith.constant 0 : index
    %c0_85 = arith.constant 0 : index
    %245 = vector.load %arg12[%c0_84, %c0_85] : memref<32x1xf32, #tpu.memory_space<vmem>>, vector<32x1xf32>
    %246 = tpu.iota {dimensions = array<i32: 1>} : vector<1x64xi32>
    %c8_i32 = arith.constant 8 : i32
    %c0_i32_86 = arith.constant 0 : i32
    %247 = arith.cmpi eq, %c8_i32, %c0_i32_86 : i32
    %c1_i32_87 = arith.constant 1 : i32
    %248 = arith.select %247, %c1_i32_87, %c8_i32 : i32
    %249 = vector.broadcast %248 : i32 to vector<1x64xi32>
    %250 = arith.remsi %246, %249 : vector<1x64xi32>
    %c0_i32_88 = arith.constant 0 : i32
    %251 = vector.broadcast %c0_i32_88 : i32 to vector<1x64xi32>
    %252 = arith.cmpi ne, %250, %251 : vector<1x64xi32>
    %c0_i32_89 = arith.constant 0 : i32
    %253 = vector.broadcast %c0_i32_89 : i32 to vector<1x64xi32>
    %254 = arith.cmpi slt, %250, %253 : vector<1x64xi32>
    %c0_i32_90 = arith.constant 0 : i32
    %255 = arith.cmpi slt, %248, %c0_i32_90 : i32
    %256 = vector.broadcast %255 : i1 to vector<1x64xi1>
    %257 = vector.broadcast %256 : vector<1x64xi1> to vector<1x64xi1>
    %258 = arith.xori %254, %257 : vector<1x64xi1>
    %259 = arith.andi %258, %252 : vector<1x64xi1>
    %260 = vector.broadcast %248 : i32 to vector<1x64xi32>
    %261 = arith.addi %250, %260 : vector<1x64xi32>
    %262 = arith.select %259, %261, %250 : vector<1x64xi1>, vector<1x64xi32>
    %c1_i32_91 = arith.constant 1 : i32
    %263 = vector.broadcast %c1_i32_91 : i32 to vector<1x64xi32>
    %264 = arith.cmpi sge, %262, %263 : vector<1x64xi32>
    %c7_i32 = arith.constant 7 : i32
    %265 = vector.broadcast %c7_i32 : i32 to vector<1x64xi32>
    %266 = arith.cmpi slt, %262, %265 : vector<1x64xi32>
    %cst_92 = arith.constant 0.000000e+00 : f32
    %267 = vector.broadcast %cst_92 : f32 to vector<16x9xf32>
    %268 = vector.extract_strided_slice %241 {offsets = [0, 0], sizes = [16, 55], strides = [1, 1]} : vector<16x64xf32> to vector<16x55xf32>
    %269 = tpu.concatenate %267, %268 in 1 : vector<16x9xf32>, vector<16x55xf32> -> vector<16x64xf32>
    %cst_93 = arith.constant 0.000000e+00 : f32
    %270 = vector.shape_cast %264 : vector<1x64xi1> to vector<1x64xi1>
    %271 = vector.broadcast %270 : vector<1x64xi1> to vector<16x64xi1>
    %272 = vector.broadcast %cst_93 : f32 to vector<16x64xf32>
    %273 = arith.select %271, %269, %272 : vector<16x64xi1>, vector<16x64xf32>
    %cst_94 = arith.constant 0.000000e+00 : f32
    %274 = vector.broadcast %cst_94 : f32 to vector<16x8xf32>
    %275 = vector.extract_strided_slice %241 {offsets = [0, 0], sizes = [16, 56], strides = [1, 1]} : vector<16x64xf32> to vector<16x56xf32>
    %276 = tpu.concatenate %274, %275 in 1 : vector<16x8xf32>, vector<16x56xf32> -> vector<16x64xf32>
    %cst_95 = arith.constant 0.000000e+00 : f32
    %277 = vector.broadcast %cst_95 : f32 to vector<16x7xf32>
    %278 = vector.extract_strided_slice %241 {offsets = [0, 0], sizes = [16, 57], strides = [1, 1]} : vector<16x64xf32> to vector<16x57xf32>
    %279 = tpu.concatenate %277, %278 in 1 : vector<16x7xf32>, vector<16x57xf32> -> vector<16x64xf32>
    %cst_96 = arith.constant 0.000000e+00 : f32
    %280 = vector.shape_cast %266 : vector<1x64xi1> to vector<1x64xi1>
    %281 = vector.broadcast %280 : vector<1x64xi1> to vector<16x64xi1>
    %282 = vector.broadcast %cst_96 : f32 to vector<16x64xf32>
    %283 = arith.select %281, %279, %282 : vector<16x64xi1>, vector<16x64xf32>
    %cst_97 = arith.constant 0.000000e+00 : f32
    %284 = vector.broadcast %cst_97 : f32 to vector<16x1xf32>
    %285 = vector.extract_strided_slice %241 {offsets = [0, 0], sizes = [16, 63], strides = [1, 1]} : vector<16x64xf32> to vector<16x63xf32>
    %286 = tpu.concatenate %284, %285 in 1 : vector<16x1xf32>, vector<16x63xf32> -> vector<16x64xf32>
    %cst_98 = arith.constant 0.000000e+00 : f32
    %287 = vector.shape_cast %264 : vector<1x64xi1> to vector<1x64xi1>
    %288 = vector.broadcast %287 : vector<1x64xi1> to vector<16x64xi1>
    %289 = vector.broadcast %cst_98 : f32 to vector<16x64xf32>
    %290 = arith.select %288, %286, %289 : vector<16x64xi1>, vector<16x64xf32>
    %cst_99 = arith.constant 0.000000e+00 : f32
    %291 = vector.broadcast %cst_99 : f32 to vector<16x1xf32>
    %292 = vector.extract_strided_slice %241 {offsets = [0, 1], sizes = [16, 63], strides = [1, 1]} : vector<16x64xf32> to vector<16x63xf32>
    %293 = tpu.concatenate %292, %291 in 1 : vector<16x63xf32>, vector<16x1xf32> -> vector<16x64xf32>
    %cst_100 = arith.constant 0.000000e+00 : f32
    %294 = vector.shape_cast %266 : vector<1x64xi1> to vector<1x64xi1>
    %295 = vector.broadcast %294 : vector<1x64xi1> to vector<16x64xi1>
    %296 = vector.broadcast %cst_100 : f32 to vector<16x64xf32>
    %297 = arith.select %295, %293, %296 : vector<16x64xi1>, vector<16x64xf32>
    %cst_101 = arith.constant 0.000000e+00 : f32
    %298 = vector.broadcast %cst_101 : f32 to vector<16x7xf32>
    %299 = vector.extract_strided_slice %241 {offsets = [0, 7], sizes = [16, 57], strides = [1, 1]} : vector<16x64xf32> to vector<16x57xf32>
    %300 = tpu.concatenate %299, %298 in 1 : vector<16x57xf32>, vector<16x7xf32> -> vector<16x64xf32>
    %cst_102 = arith.constant 0.000000e+00 : f32
    %301 = vector.shape_cast %264 : vector<1x64xi1> to vector<1x64xi1>
    %302 = vector.broadcast %301 : vector<1x64xi1> to vector<16x64xi1>
    %303 = vector.broadcast %cst_102 : f32 to vector<16x64xf32>
    %304 = arith.select %302, %300, %303 : vector<16x64xi1>, vector<16x64xf32>
    %cst_103 = arith.constant 0.000000e+00 : f32
    %305 = vector.broadcast %cst_103 : f32 to vector<16x8xf32>
    %306 = vector.extract_strided_slice %241 {offsets = [0, 8], sizes = [16, 56], strides = [1, 1]} : vector<16x64xf32> to vector<16x56xf32>
    %307 = tpu.concatenate %306, %305 in 1 : vector<16x56xf32>, vector<16x8xf32> -> vector<16x64xf32>
    %cst_104 = arith.constant 0.000000e+00 : f32
    %308 = vector.broadcast %cst_104 : f32 to vector<16x9xf32>
    %309 = vector.extract_strided_slice %241 {offsets = [0, 9], sizes = [16, 55], strides = [1, 1]} : vector<16x64xf32> to vector<16x55xf32>
    %310 = tpu.concatenate %309, %308 in 1 : vector<16x55xf32>, vector<16x9xf32> -> vector<16x64xf32>
    %cst_105 = arith.constant 0.000000e+00 : f32
    %311 = vector.shape_cast %266 : vector<1x64xi1> to vector<1x64xi1>
    %312 = vector.broadcast %311 : vector<1x64xi1> to vector<16x64xi1>
    %313 = vector.broadcast %cst_105 : f32 to vector<16x64xf32>
    %314 = arith.select %312, %310, %313 : vector<16x64xi1>, vector<16x64xf32>
    %315 = tpu.concatenate %273, %276, %283, %290, %241, %297, %304, %307, %314 in 0 : vector<16x64xf32>, vector<16x64xf32>, vector<16x64xf32>, vector<16x64xf32>, vector<16x64xf32>, vector<16x64xf32>, vector<16x64xf32>, vector<16x64xf32>, vector<16x64xf32> -> vector<144x64xf32>
    %316 = arith.truncf %315 : vector<144x64xf32> to vector<144x64xbf16>
    %cst_106 = arith.constant dense<0.000000e+00> : vector<32x64xf32>
    %317 = tpu.matmul %242, %316, %cst_106 {dimension_numbers = #tpu.dot_dimension_numbers<[1], [0], [0], [1], [0, 0, 1, 1], [], []>} : vector<32x144xbf16>, vector<144x64xbf16>, vector<32x64xf32> -> vector<32x64xf32>
    %cst_107 = arith.constant dense<0.000000e+00> : vector<32x64xf32>
    %318 = tpu.matmul %243, %317, %cst_107 {dimension_numbers = #tpu.dot_dimension_numbers<[1], [0], [0], [1], [0, 0, 1, 1], [], []>} : vector<32x32xf32>, vector<32x64xf32>, vector<32x64xf32> -> vector<32x64xf32>
    %cst_108 = arith.constant dense<0.000000e+00> : vector<32xf32>
    %319 = vector.multi_reduction <add>, %318, %cst_108 [1] : vector<32x64xf32> to vector<32xf32>
    %320 = vector.shape_cast %319 : vector<32xf32> to vector<32x1xf32>
    %321 = arith.mulf %317, %317 : vector<32x64xf32>
    %cst_109 = arith.constant dense<0.000000e+00> : vector<32x64xf32>
    %322 = tpu.matmul %243, %321, %cst_109 {dimension_numbers = #tpu.dot_dimension_numbers<[1], [0], [0], [1], [0, 0, 1, 1], [], []>} : vector<32x32xf32>, vector<32x64xf32>, vector<32x64xf32> -> vector<32x64xf32>
    %cst_110 = arith.constant dense<0.000000e+00> : vector<32xf32>
    %323 = vector.multi_reduction <add>, %322, %cst_110 [1] : vector<32x64xf32> to vector<32xf32>
    %324 = vector.shape_cast %323 : vector<32xf32> to vector<32x1xf32>
    %325 = arith.mulf %320, %320 : vector<32x1xf32>
    %326 = arith.subf %324, %325 : vector<32x1xf32>
    %cst_111 = arith.constant 0.000000e+00 : f32
    %327 = vector.broadcast %cst_111 : f32 to vector<32x1xf32>
    %328 = arith.maximumf %326, %327 : vector<32x1xf32>
    %cst_112 = arith.constant 9.99999974E-6 : f32
    %329 = vector.broadcast %cst_112 : f32 to vector<32x1xf32>
    %330 = arith.addf %328, %329 : vector<32x1xf32>
    %331 = math.rsqrt %330 : vector<32x1xf32>
    %332 = arith.mulf %331, %244 : vector<32x1xf32>
    %333 = arith.mulf %320, %332 : vector<32x1xf32>
    %334 = arith.subf %245, %333 : vector<32x1xf32>
    %335 = vector.broadcast %332 : vector<32x1xf32> to vector<32x64xf32>
    %336 = arith.mulf %317, %335 : vector<32x64xf32>
    %337 = vector.broadcast %334 : vector<32x1xf32> to vector<32x64xf32>
    %338 = arith.addf %336, %337 : vector<32x64xf32>
    %cst_113 = arith.constant 0.000000e+00 : f32
    %339 = vector.broadcast %cst_113 : f32 to vector<32x64xf32>
    %340 = arith.maximumf %338, %339 : vector<32x64xf32>
    %c0_114 = arith.constant 0 : index
    %c0_115 = arith.constant 0 : index
    %341 = vector.load %arg13[%c0_114, %c0_115] : memref<32x288xbf16, #tpu.memory_space<vmem>>, vector<32x288xbf16>
    %c0_116 = arith.constant 0 : index
    %c0_117 = arith.constant 0 : index
    %342 = vector.load %arg16[%c0_116, %c0_117] : memref<32x32xf32, #tpu.memory_space<vmem>>, vector<32x32xf32>
    %c0_118 = arith.constant 0 : index
    %c0_119 = arith.constant 0 : index
    %343 = vector.load %arg14[%c0_118, %c0_119] : memref<32x1xf32, #tpu.memory_space<vmem>>, vector<32x1xf32>
    %c0_120 = arith.constant 0 : index
    %c0_121 = arith.constant 0 : index
    %344 = vector.load %arg15[%c0_120, %c0_121] : memref<32x1xf32, #tpu.memory_space<vmem>>, vector<32x1xf32>
    %345 = tpu.iota {dimensions = array<i32: 1>} : vector<1x64xi32>
    %c8_i32_122 = arith.constant 8 : i32
    %c0_i32_123 = arith.constant 0 : i32
    %346 = arith.cmpi eq, %c8_i32_122, %c0_i32_123 : i32
    %c1_i32_124 = arith.constant 1 : i32
    %347 = arith.select %346, %c1_i32_124, %c8_i32_122 : i32
    %348 = vector.broadcast %347 : i32 to vector<1x64xi32>
    %349 = arith.remsi %345, %348 : vector<1x64xi32>
    %c0_i32_125 = arith.constant 0 : i32
    %350 = vector.broadcast %c0_i32_125 : i32 to vector<1x64xi32>
    %351 = arith.cmpi ne, %349, %350 : vector<1x64xi32>
    %c0_i32_126 = arith.constant 0 : i32
    %352 = vector.broadcast %c0_i32_126 : i32 to vector<1x64xi32>
    %353 = arith.cmpi slt, %349, %352 : vector<1x64xi32>
    %c0_i32_127 = arith.constant 0 : i32
    %354 = arith.cmpi slt, %347, %c0_i32_127 : i32
    %355 = vector.broadcast %354 : i1 to vector<1x64xi1>
    %356 = vector.broadcast %355 : vector<1x64xi1> to vector<1x64xi1>
    %357 = arith.xori %353, %356 : vector<1x64xi1>
    %358 = arith.andi %357, %351 : vector<1x64xi1>
    %359 = vector.broadcast %347 : i32 to vector<1x64xi32>
    %360 = arith.addi %349, %359 : vector<1x64xi32>
    %361 = arith.select %358, %360, %349 : vector<1x64xi1>, vector<1x64xi32>
    %c1_i32_128 = arith.constant 1 : i32
    %362 = vector.broadcast %c1_i32_128 : i32 to vector<1x64xi32>
    %363 = arith.cmpi sge, %361, %362 : vector<1x64xi32>
    %c7_i32_129 = arith.constant 7 : i32
    %364 = vector.broadcast %c7_i32_129 : i32 to vector<1x64xi32>
    %365 = arith.cmpi slt, %361, %364 : vector<1x64xi32>
    %cst_130 = arith.constant 0.000000e+00 : f32
    %366 = vector.broadcast %cst_130 : f32 to vector<32x9xf32>
    %367 = vector.extract_strided_slice %340 {offsets = [0, 0], sizes = [32, 55], strides = [1, 1]} : vector<32x64xf32> to vector<32x55xf32>
    %368 = tpu.concatenate %366, %367 in 1 : vector<32x9xf32>, vector<32x55xf32> -> vector<32x64xf32>
    %cst_131 = arith.constant 0.000000e+00 : f32
    %369 = vector.shape_cast %363 : vector<1x64xi1> to vector<1x64xi1>
    %370 = vector.broadcast %369 : vector<1x64xi1> to vector<32x64xi1>
    %371 = vector.broadcast %cst_131 : f32 to vector<32x64xf32>
    %372 = arith.select %370, %368, %371 : vector<32x64xi1>, vector<32x64xf32>
    %cst_132 = arith.constant 0.000000e+00 : f32
    %373 = vector.broadcast %cst_132 : f32 to vector<32x8xf32>
    %374 = vector.extract_strided_slice %340 {offsets = [0, 0], sizes = [32, 56], strides = [1, 1]} : vector<32x64xf32> to vector<32x56xf32>
    %375 = tpu.concatenate %373, %374 in 1 : vector<32x8xf32>, vector<32x56xf32> -> vector<32x64xf32>
    %cst_133 = arith.constant 0.000000e+00 : f32
    %376 = vector.broadcast %cst_133 : f32 to vector<32x7xf32>
    %377 = vector.extract_strided_slice %340 {offsets = [0, 0], sizes = [32, 57], strides = [1, 1]} : vector<32x64xf32> to vector<32x57xf32>
    %378 = tpu.concatenate %376, %377 in 1 : vector<32x7xf32>, vector<32x57xf32> -> vector<32x64xf32>
    %cst_134 = arith.constant 0.000000e+00 : f32
    %379 = vector.shape_cast %365 : vector<1x64xi1> to vector<1x64xi1>
    %380 = vector.broadcast %379 : vector<1x64xi1> to vector<32x64xi1>
    %381 = vector.broadcast %cst_134 : f32 to vector<32x64xf32>
    %382 = arith.select %380, %378, %381 : vector<32x64xi1>, vector<32x64xf32>
    %cst_135 = arith.constant 0.000000e+00 : f32
    %383 = vector.broadcast %cst_135 : f32 to vector<32x1xf32>
    %384 = vector.extract_strided_slice %340 {offsets = [0, 0], sizes = [32, 63], strides = [1, 1]} : vector<32x64xf32> to vector<32x63xf32>
    %385 = tpu.concatenate %383, %384 in 1 : vector<32x1xf32>, vector<32x63xf32> -> vector<32x64xf32>
    %cst_136 = arith.constant 0.000000e+00 : f32
    %386 = vector.shape_cast %363 : vector<1x64xi1> to vector<1x64xi1>
    %387 = vector.broadcast %386 : vector<1x64xi1> to vector<32x64xi1>
    %388 = vector.broadcast %cst_136 : f32 to vector<32x64xf32>
    %389 = arith.select %387, %385, %388 : vector<32x64xi1>, vector<32x64xf32>
    %cst_137 = arith.constant 0.000000e+00 : f32
    %390 = vector.broadcast %cst_137 : f32 to vector<32x1xf32>
    %391 = vector.extract_strided_slice %340 {offsets = [0, 1], sizes = [32, 63], strides = [1, 1]} : vector<32x64xf32> to vector<32x63xf32>
    %392 = tpu.concatenate %391, %390 in 1 : vector<32x63xf32>, vector<32x1xf32> -> vector<32x64xf32>
    %cst_138 = arith.constant 0.000000e+00 : f32
    %393 = vector.shape_cast %365 : vector<1x64xi1> to vector<1x64xi1>
    %394 = vector.broadcast %393 : vector<1x64xi1> to vector<32x64xi1>
    %395 = vector.broadcast %cst_138 : f32 to vector<32x64xf32>
    %396 = arith.select %394, %392, %395 : vector<32x64xi1>, vector<32x64xf32>
    %cst_139 = arith.constant 0.000000e+00 : f32
    %397 = vector.broadcast %cst_139 : f32 to vector<32x7xf32>
    %398 = vector.extract_strided_slice %340 {offsets = [0, 7], sizes = [32, 57], strides = [1, 1]} : vector<32x64xf32> to vector<32x57xf32>
    %399 = tpu.concatenate %398, %397 in 1 : vector<32x57xf32>, vector<32x7xf32> -> vector<32x64xf32>
    %cst_140 = arith.constant 0.000000e+00 : f32
    %400 = vector.shape_cast %363 : vector<1x64xi1> to vector<1x64xi1>
    %401 = vector.broadcast %400 : vector<1x64xi1> to vector<32x64xi1>
    %402 = vector.broadcast %cst_140 : f32 to vector<32x64xf32>
    %403 = arith.select %401, %399, %402 : vector<32x64xi1>, vector<32x64xf32>
    %cst_141 = arith.constant 0.000000e+00 : f32
    %404 = vector.broadcast %cst_141 : f32 to vector<32x8xf32>
    %405 = vector.extract_strided_slice %340 {offsets = [0, 8], sizes = [32, 56], strides = [1, 1]} : vector<32x64xf32> to vector<32x56xf32>
    %406 = tpu.concatenate %405, %404 in 1 : vector<32x56xf32>, vector<32x8xf32> -> vector<32x64xf32>
    %cst_142 = arith.constant 0.000000e+00 : f32
    %407 = vector.broadcast %cst_142 : f32 to vector<32x9xf32>
    %408 = vector.extract_strided_slice %340 {offsets = [0, 9], sizes = [32, 55], strides = [1, 1]} : vector<32x64xf32> to vector<32x55xf32>
    %409 = tpu.concatenate %408, %407 in 1 : vector<32x55xf32>, vector<32x9xf32> -> vector<32x64xf32>
    %cst_143 = arith.constant 0.000000e+00 : f32
    %410 = vector.shape_cast %365 : vector<1x64xi1> to vector<1x64xi1>
    %411 = vector.broadcast %410 : vector<1x64xi1> to vector<32x64xi1>
    %412 = vector.broadcast %cst_143 : f32 to vector<32x64xf32>
    %413 = arith.select %411, %409, %412 : vector<32x64xi1>, vector<32x64xf32>
    %414 = tpu.concatenate %372, %375, %382, %389, %340, %396, %403, %406, %413 in 0 : vector<32x64xf32>, vector<32x64xf32>, vector<32x64xf32>, vector<32x64xf32>, vector<32x64xf32>, vector<32x64xf32>, vector<32x64xf32>, vector<32x64xf32>, vector<32x64xf32> -> vector<288x64xf32>
    %415 = arith.truncf %414 : vector<288x64xf32> to vector<288x64xbf16>
    %cst_144 = arith.constant dense<0.000000e+00> : vector<32x64xf32>
    %416 = tpu.matmul %341, %415, %cst_144 {dimension_numbers = #tpu.dot_dimension_numbers<[1], [0], [0], [1], [0, 0, 1, 1], [], []>} : vector<32x288xbf16>, vector<288x64xbf16>, vector<32x64xf32> -> vector<32x64xf32>
    %cst_145 = arith.constant dense<0.000000e+00> : vector<32x64xf32>
    %417 = tpu.matmul %342, %416, %cst_145 {dimension_numbers = #tpu.dot_dimension_numbers<[1], [0], [0], [1], [0, 0, 1, 1], [], []>} : vector<32x32xf32>, vector<32x64xf32>, vector<32x64xf32> -> vector<32x64xf32>
    %cst_146 = arith.constant dense<0.000000e+00> : vector<32xf32>
    %418 = vector.multi_reduction <add>, %417, %cst_146 [1] : vector<32x64xf32> to vector<32xf32>
    %419 = vector.shape_cast %418 : vector<32xf32> to vector<32x1xf32>
    %420 = arith.mulf %416, %416 : vector<32x64xf32>
    %cst_147 = arith.constant dense<0.000000e+00> : vector<32x64xf32>
    %421 = tpu.matmul %342, %420, %cst_147 {dimension_numbers = #tpu.dot_dimension_numbers<[1], [0], [0], [1], [0, 0, 1, 1], [], []>} : vector<32x32xf32>, vector<32x64xf32>, vector<32x64xf32> -> vector<32x64xf32>
    %cst_148 = arith.constant dense<0.000000e+00> : vector<32xf32>
    %422 = vector.multi_reduction <add>, %421, %cst_148 [1] : vector<32x64xf32> to vector<32xf32>
    %423 = vector.shape_cast %422 : vector<32xf32> to vector<32x1xf32>
    %424 = arith.mulf %419, %419 : vector<32x1xf32>
    %425 = arith.subf %423, %424 : vector<32x1xf32>
    %cst_149 = arith.constant 0.000000e+00 : f32
    %426 = vector.broadcast %cst_149 : f32 to vector<32x1xf32>
    %427 = arith.maximumf %425, %426 : vector<32x1xf32>
    %cst_150 = arith.constant 9.99999974E-6 : f32
    %428 = vector.broadcast %cst_150 : f32 to vector<32x1xf32>
    %429 = arith.addf %427, %428 : vector<32x1xf32>
    %430 = math.rsqrt %429 : vector<32x1xf32>
    %431 = arith.mulf %430, %343 : vector<32x1xf32>
    %432 = arith.mulf %419, %431 : vector<32x1xf32>
    %433 = arith.subf %344, %432 : vector<32x1xf32>
    %434 = vector.broadcast %431 : vector<32x1xf32> to vector<32x64xf32>
    %435 = arith.mulf %416, %434 : vector<32x64xf32>
    %436 = vector.broadcast %433 : vector<32x1xf32> to vector<32x64xf32>
    %437 = arith.addf %435, %436 : vector<32x64xf32>
    %cst_151 = arith.constant 0.000000e+00 : f32
    %438 = vector.broadcast %cst_151 : f32 to vector<32x64xf32>
    %439 = arith.maximumf %437, %438 : vector<32x64xf32>
    %c0_152 = arith.constant 0 : index
    %c0_153 = arith.constant 0 : index
    %440 = vector.load %arg17[%c0_152, %c0_153] : memref<64x16xf32, #tpu.memory_space<vmem>>, vector<64x16xf32>
    %cst_154 = arith.constant 0.000000e+00 : f32
    %441 = vector.broadcast %cst_154 : f32 to vector<32x1xf32>
    %442 = vector.extract_strided_slice %439 {offsets = [0, 1], sizes = [32, 63], strides = [1, 1]} : vector<32x64xf32> to vector<32x63xf32>
    %443 = tpu.concatenate %442, %441 in 1 : vector<32x63xf32>, vector<32x1xf32> -> vector<32x64xf32>
    %444 = arith.maximumf %439, %443 : vector<32x64xf32>
    %cst_155 = arith.constant 0.000000e+00 : f32
    %445 = vector.broadcast %cst_155 : f32 to vector<32x8xf32>
    %446 = vector.extract_strided_slice %444 {offsets = [0, 8], sizes = [32, 56], strides = [1, 1]} : vector<32x64xf32> to vector<32x56xf32>
    %447 = tpu.concatenate %446, %445 in 1 : vector<32x56xf32>, vector<32x8xf32> -> vector<32x64xf32>
    %448 = arith.maximumf %444, %447 : vector<32x64xf32>
    %cst_156 = arith.constant dense<0.000000e+00> : vector<32x16xf32>
    %449 = tpu.matmul %448, %440, %cst_156 {dimension_numbers = #tpu.dot_dimension_numbers<[1], [0], [0], [1], [0, 0, 1, 1], [], []>} : vector<32x64xf32>, vector<64x16xf32>, vector<32x16xf32> -> vector<32x16xf32>
    %c0_157 = arith.constant 0 : index
    %c0_158 = arith.constant 0 : index
    %450 = vector.load %arg18[%c0_157, %c0_158] : memref<32x32xbf16, #tpu.memory_space<vmem>>, vector<32x32xbf16>
    %451 = arith.truncf %449 : vector<32x16xf32> to vector<32x16xbf16>
    %cst_159 = arith.constant dense<0.000000e+00> : vector<32x16xf32>
    %452 = tpu.matmul %450, %451, %cst_159 {dimension_numbers = #tpu.dot_dimension_numbers<[1], [0], [0], [1], [0, 0, 1, 1], [], []>} : vector<32x32xbf16>, vector<32x16xbf16>, vector<32x16xf32> -> vector<32x16xf32>
    %cst_160 = arith.constant dense<0.000000e+00> : vector<32xf32>
    %453 = vector.multi_reduction <add>, %452, %cst_160 [1] : vector<32x16xf32> to vector<32xf32>
    %454 = vector.shape_cast %453 : vector<32xf32> to vector<32x1xf32>
    %cst_161 = arith.constant 6.250000e-02 : f32
    %455 = vector.broadcast %cst_161 : f32 to vector<32x1xf32>
    %456 = arith.mulf %454, %455 : vector<32x1xf32>
    %c0_162 = arith.constant 0 : index
    %c0_163 = arith.constant 0 : index
    %c0_164 = arith.constant 0 : index
    %457 = vector.load %arg19[%c0_162, %c0_163, %c0_164] : memref<1x32x1xf32, #tpu.memory_space<vmem>>, vector<1x32x1xf32>
    %458 = vector.shape_cast %457 : vector<1x32x1xf32> to vector<32x1xf32>
    %459 = vector.shape_cast %456 : vector<32x1xf32> to vector<1x32x1xf32>
    tpu.vector_store %arg19[%c0_162, %c0_163, %c0_164], %459 {strides = array<i32>} : memref<1x32x1xf32, #tpu.memory_space<vmem>>, vector<1x32x1xf32>,
    return
  }
  func.func @transform_0(%arg0: i32) -> (i32, i32, i32) {
    %c0_i32 = arith.constant 0 : i32
    %c0_i32_0 = arith.constant 0 : i32
    %c0_i32_1 = arith.constant 0 : i32
    return %arg0, %c0_i32, %c0_i32_0 : i32, i32, i32
  }
  func.func @transform_1(%arg0: i32) -> (i32, i32) {
    %c0_i32 = arith.constant 0 : i32
    %c0_i32_0 = arith.constant 0 : i32
    %c0_i32_1 = arith.constant 0 : i32
    return %c0_i32, %c0_i32_0 : i32, i32
  }
  func.func @transform_2(%arg0: i32) -> (i32, i32) {
    %c0_i32 = arith.constant 0 : i32
    %c0_i32_0 = arith.constant 0 : i32
    %c0_i32_1 = arith.constant 0 : i32
    return %c0_i32, %c0_i32_0 : i32, i32
  }
  func.func @transform_3(%arg0: i32) -> (i32, i32) {
    %c0_i32 = arith.constant 0 : i32
    %c0_i32_0 = arith.constant 0 : i32
    %c0_i32_1 = arith.constant 0 : i32
    return %c0_i32, %c0_i32_0 : i32, i32
  }
  func.func @transform_4(%arg0: i32) -> (i32, i32) {
    %c0_i32 = arith.constant 0 : i32
    %c0_i32_0 = arith.constant 0 : i32
    %c0_i32_1 = arith.constant 0 : i32
    return %c0_i32, %c0_i32_0 : i32, i32
  }
  func.func @transform_5(%arg0: i32) -> (i32, i32) {
    %c0_i32 = arith.constant 0 : i32
    %c0_i32_0 = arith.constant 0 : i32
    %c0_i32_1 = arith.constant 0 : i32
    return %c0_i32, %c0_i32_0 : i32, i32
  }
  func.func @transform_6(%arg0: i32) -> (i32, i32) {
    %c0_i32 = arith.constant 0 : i32
    %c0_i32_0 = arith.constant 0 : i32
    %c0_i32_1 = arith.constant 0 : i32
    return %c0_i32, %c0_i32_0 : i32, i32
  }
  func.func @transform_7(%arg0: i32) -> (i32, i32) {
    %c0_i32 = arith.constant 0 : i32
    %c0_i32_0 = arith.constant 0 : i32
    %c0_i32_1 = arith.constant 0 : i32
    return %c0_i32, %c0_i32_0 : i32, i32
  }
  func.func @transform_8(%arg0: i32) -> (i32, i32) {
    %c0_i32 = arith.constant 0 : i32
    %c0_i32_0 = arith.constant 0 : i32
    %c0_i32_1 = arith.constant 0 : i32
    return %c0_i32, %c0_i32_0 : i32, i32
  }
  func.func @transform_9(%arg0: i32) -> (i32, i32) {
    %c0_i32 = arith.constant 0 : i32
    %c0_i32_0 = arith.constant 0 : i32
    %c0_i32_1 = arith.constant 0 : i32
    return %c0_i32, %c0_i32_0 : i32, i32
  }
  func.func @transform_10(%arg0: i32) -> (i32, i32) {
    %c0_i32 = arith.constant 0 : i32
    %c0_i32_0 = arith.constant 0 : i32
    %c0_i32_1 = arith.constant 0 : i32
    return %c0_i32, %c0_i32_0 : i32, i32
  }
  func.func @transform_11(%arg0: i32) -> (i32, i32) {
    %c0_i32 = arith.constant 0 : i32
    %c0_i32_0 = arith.constant 0 : i32
    %c0_i32_1 = arith.constant 0 : i32
    return %c0_i32, %c0_i32_0 : i32, i32
  }
  func.func @transform_12(%arg0: i32) -> (i32, i32) {
    %c0_i32 = arith.constant 0 : i32
    %c0_i32_0 = arith.constant 0 : i32
    %c0_i32_1 = arith.constant 0 : i32
    return %c0_i32, %c0_i32_0 : i32, i32
  }
  func.func @transform_13(%arg0: i32) -> (i32, i32) {
    %c0_i32 = arith.constant 0 : i32
    %c0_i32_0 = arith.constant 0 : i32
    %c0_i32_1 = arith.constant 0 : i32
    return %c0_i32, %c0_i32_0 : i32, i32
  }
  func.func @transform_14(%arg0: i32) -> (i32, i32) {
    %c0_i32 = arith.constant 0 : i32
    %c0_i32_0 = arith.constant 0 : i32
    %c0_i32_1 = arith.constant 0 : i32
    return %c0_i32, %c0_i32_0 : i32, i32
  }
  func.func @transform_15(%arg0: i32) -> (i32, i32) {
    %c0_i32 = arith.constant 0 : i32
    %c0_i32_0 = arith.constant 0 : i32
    %c0_i32_1 = arith.constant 0 : i32
    return %c0_i32, %c0_i32_0 : i32, i32
  }
  func.func @transform_16(%arg0: i32) -> (i32, i32) {
    %c0_i32 = arith.constant 0 : i32
    %c0_i32_0 = arith.constant 0 : i32
    %c0_i32_1 = arith.constant 0 : i32
    return %c0_i32, %c0_i32_0 : i32, i32
  }
  func.func @transform_17(%arg0: i32) -> (i32, i32) {
    %c0_i32 = arith.constant 0 : i32
    %c0_i32_0 = arith.constant 0 : i32
    %c0_i32_1 = arith.constant 0 : i32
    return %c0_i32, %c0_i32_0 : i32, i32
  }
  func.func @transform_18(%arg0: i32) -> (i32, i32, i32) {
    %c0_i32 = arith.constant 0 : i32
    %c0_i32_0 = arith.constant 0 : i32
    %c0_i32_1 = arith.constant 0 : i32
    return %arg0, %c0_i32, %c0_i32_0 : i32, i32, i32
  }
}

</mosaic_0001>

<llo_original>
// kernel: vgg4_forward.1
$region0: #{vgg4_forward.1}
  #allocation0 [shape = 'u32[]', space=smem, size = 0x4, offset = 0x4, fixed_abs, tag = 'smem constant byte address 0x4 - core index']
  #allocation1 [shape = 'u32[144,128]{1,0:T(1,128)}', space=vmem, size = 0x12000, scoped, tag = 'internal scratch']
  %s0 = inlined_call_operand.vmem [shape: f32[2,1,256], index: 0, kind: input, shape index: {}]
  %s1 = inlined_call_operand.vmem [shape: bf16[16,9], index: 1, kind: input, shape index: {}]
  %s2 = inlined_call_operand.vmem [shape: f32[16,1], index: 2, kind: input, shape index: {}]
  %s3 = inlined_call_operand.vmem [shape: f32[16,1], index: 3, kind: input, shape index: {}]
  %s4 = inlined_call_operand.vmem [shape: bf16[16,144], index: 4, kind: input, shape index: {}]
  %s5 = inlined_call_operand.vmem [shape: f32[16,1], index: 5, kind: input, shape index: {}]
  %s6 = inlined_call_operand.vmem [shape: f32[16,1], index: 6, kind: input, shape index: {}]
  %s7 = inlined_call_operand.vmem [shape: f32[16,16], index: 7, kind: input, shape index: {}]
  %s8 = inlined_call_operand.vmem [shape: f32[256,64], index: 8, kind: input, shape index: {}]
  %s9 = inlined_call_operand.vmem [shape: bf16[32,144], index: 9, kind: input, shape index: {}]
  %s10 = inlined_call_operand.vmem [shape: f32[32,1], index: 10, kind: input, shape index: {}]
  %s11 = inlined_call_operand.vmem [shape: f32[32,1], index: 11, kind: input, shape index: {}]
  %s12 = inlined_call_operand.vmem [shape: bf16[32,288], index: 12, kind: input, shape index: {}]
  %s13 = inlined_call_operand.vmem [shape: f32[32,1], index: 13, kind: input, shape index: {}]
  %s14 = inlined_call_operand.vmem [shape: f32[32,1], index: 14, kind: input, shape index: {}]
  %s15 = inlined_call_operand.vmem [shape: f32[32,32], index: 15, kind: input, shape index: {}]
  %s16 = inlined_call_operand.vmem [shape: f32[64,16], index: 16, kind: input, shape index: {}]
  %s17 = inlined_call_operand.vmem [shape: bf16[32,32], index: 17, kind: input, shape index: {}]
  %s18 = inlined_call_operand.vmem [shape: f32[2,32,1], index: 18, kind: output, shape index: {}]
  %s19 = sld [smem:[#allocation0]]
  $region105: #{vgg4_forward.1} parent=0
    _
  %s21 = ssub.s32 1, %s19
  %s22 = scalar_select 0, %s21, %s19
  loop: start=0, step=1, limit=4
  $region2: #{vgg4_forward.1} parent=0 // loop_pre_header
    _
  $region3: #{vgg4_forward.1} parent=0 // loop_header
    %s24 = sphi 0, %s28
    %p25 = scmp.ge.s32.totalorder %s24, 4
    %s34 = sphi 0, %s36
    %s37 = sphi 0, %s34
    %s38 = sphi 0, %s37
    %s54 = sphi 0, %s38
    %s58 = sphi 0, %s58
    %s60 = sphi 0, %s58
    %s61 = sphi 0, %s60
    %s75 = sphi 0, %s61
    %s79 = sphi 0, %s79
    %s81 = sphi 0, %s79
    %s82 = sphi 0, %s81
    %s96 = sphi 0, %s82
    %s100 = sphi 0, %s100
    %s102 = sphi 0, %s100
    %s103 = sphi 0, %s102
    %s117 = sphi 0, %s103
    %s121 = sphi 0, %s121
    %s123 = sphi 0, %s121
    %s124 = sphi 0, %s123
    %s138 = sphi 0, %s124
    %s142 = sphi 0, %s142
    %s144 = sphi 0, %s142
    %s145 = sphi 0, %s144
    %s159 = sphi 0, %s145
    %s163 = sphi 0, %s163
    %s165 = sphi 0, %s163
    %s166 = sphi 0, %s165
    %s180 = sphi 0, %s166
    %s184 = sphi 0, %s184
    %s186 = sphi 0, %s184
    %s187 = sphi 0, %s186
    %s201 = sphi 0, %s187
    %s205 = sphi 0, %s205
    %s207 = sphi 0, %s205
    %s208 = sphi 0, %s207
    %s222 = sphi 0, %s208
    %s226 = sphi 0, %s226
    %s228 = sphi 0, %s226
    %s229 = sphi 0, %s228
    %s243 = sphi 0, %s229
    %s247 = sphi 0, %s247
    %s249 = sphi 0, %s247
    %s250 = sphi 0, %s249
    %s264 = sphi 0, %s250
    %s268 = sphi 0, %s268
    %s270 = sphi 0, %s268
    %s271 = sphi 0, %s270
    %s285 = sphi 0, %s271
    %s289 = sphi 0, %s289
    %s291 = sphi 0, %s289
    %s292 = sphi 0, %s291
    %s306 = sphi 0, %s292
    %s310 = sphi 0, %s310
    %s312 = sphi 0, %s310
    %s313 = sphi 0, %s312
    %s327 = sphi 0, %s313
    %s331 = sphi 0, %s331
    %s333 = sphi 0, %s331
    %s334 = sphi 0, %s333
    %s348 = sphi 0, %s334
    %s352 = sphi 0, %s352
    %s354 = sphi 0, %s352
    %s355 = sphi 0, %s354
    %s369 = sphi 0, %s355
    %s373 = sphi 0, %s373
    %s375 = sphi 0, %s373
    %s376 = sphi 0, %s375
    %s390 = sphi 0, %s376
    %s394 = sphi 0, %s394
    %s396 = sphi 0, %s394
    %s397 = sphi 0, %s396
    %s411 = sphi 0, %s397
    %s417 = sphi 0, %s419
    %s420 = sphi 0, %s417
    %s421 = sphi 0, %s420
    %s437 = sphi 0, %s421
  $region4: #{vgg4_forward.1} parent=0 // loop_header_branch
    %27 = sbr.rel (%p25) target = $region8
  $region5: #{vgg4_forward.1} parent=0 // loop_body
    %s29 = ssub.s32 %s24, 1
    %s30 = ssub.s32 %s24, 2
    %s31 = sadd.s32 %s24, 1
    %s32 = ssub.s32 %s24, %s31
    %p33 = scmp.eq.s32.totalorder %s32, 0
    %s35 = sadd.s32 %s34, 1
    %s36 = scalar_select %p33, %s34, %s35
    %p39 = pneg %p33
    %p40 = scmp.eq.s32.totalorder %s24, 1
    %p41 = por %p39, %p40
    %p42 = scmp.ne.s32.totalorder %s34, %s37
    %p43 = scmp.eq.s32.totalorder %s24, 0
    %p44 = por %p42, %p43
    %p45 = scmp.ne.s32.totalorder %s34, %s37
    %p46 = scmp.eq.s32.totalorder %s29, 1
    %p47 = por %p45, %p46
    %p48 = scmp.ne.s32.totalorder %s37, %s38
    %p49 = scmp.eq.s32.totalorder %s29, 0
    %p50 = por %p48, %p49
    %p51 = scmp.ne.s32.totalorder %s37, %s38
    %p52 = scmp.eq.s32.totalorder %s30, 1
    %p53 = por %p51, %p52
    %p55 = scmp.ne.s32.totalorder %s38, %s54
    %p56 = scmp.eq.s32.totalorder %s30, 0
    %p57 = por %p55, %p56
    %s59 = sadd.s32 %s58, 1
    %p62 = scmp.eq.s32.totalorder %s24, 1
    %p63 = scmp.ne.s32.totalorder %s58, %s60
    %p64 = scmp.eq.s32.totalorder %s24, 0
    %p65 = por %p63, %p64
    %p66 = scmp.ne.s32.totalorder %s58, %s60
    %p67 = scmp.eq.s32.totalorder %s29, 1
    %p68 = por %p66, %p67
    %p69 = scmp.ne.s32.totalorder %s60, %s61
    %p70 = scmp.eq.s32.totalorder %s29, 0
    %p71 = por %p69, %p70
    %p72 = scmp.ne.s32.totalorder %s60, %s61
    %p73 = scmp.eq.s32.totalorder %s30, 1
    %p74 = por %p72, %p73
    %p76 = scmp.ne.s32.totalorder %s61, %s75
    %p77 = scmp.eq.s32.totalorder %s30, 0
    %p78 = por %p76, %p77
    %s80 = sadd.s32 %s79, 1
    %p83 = scmp.eq.s32.totalorder %s24, 1
    %p84 = scmp.ne.s32.totalorder %s79, %s81
    %p85 = scmp.eq.s32.totalorder %s24, 0
    %p86 = por %p84, %p85
    %p87 = scmp.ne.s32.totalorder %s79, %s81
    %p88 = scmp.eq.s32.totalorder %s29, 1
    %p89 = por %p87, %p88
    %p90 = scmp.ne.s32.totalorder %s81, %s82
    %p91 = scmp.eq.s32.totalorder %s29, 0
    %p92 = por %p90, %p91
    %p93 = scmp.ne.s32.totalorder %s81, %s82
    %p94 = scmp.eq.s32.totalorder %s30, 1
    %p95 = por %p93, %p94
    %p97 = scmp.ne.s32.totalorder %s82, %s96
    %p98 = scmp.eq.s32.totalorder %s30, 0
    %p99 = por %p97, %p98
    %s101 = sadd.s32 %s100, 1
    %p104 = scmp.eq.s32.totalorder %s24, 1
    %p105 = scmp.ne.s32.totalorder %s100, %s102
    %p106 = scmp.eq.s32.totalorder %s24, 0
    %p107 = por %p105, %p106
    %p108 = scmp.ne.s32.totalorder %s100, %s102
    %p109 = scmp.eq.s32.totalorder %s29, 1
    %p110 = por %p108, %p109
    %p111 = scmp.ne.s32.totalorder %s102, %s103
    %p112 = scmp.eq.s32.totalorder %s29, 0
    %p113 = por %p111, %p112
    %p114 = scmp.ne.s32.totalorder %s102, %s103
    %p115 = scmp.eq.s32.totalorder %s30, 1
    %p116 = por %p114, %p115
    %p118 = scmp.ne.s32.totalorder %s103, %s117
    %p119 = scmp.eq.s32.totalorder %s30, 0
    %p120 = por %p118, %p119
    %s122 = sadd.s32 %s121, 1
    %p125 = scmp.eq.s32.totalorder %s24, 1
    %p126 = scmp.ne.s32.totalorder %s121, %s123
    %p127 = scmp.eq.s32.totalorder %s24, 0
    %p128 = por %p126, %p127
    %p129 = scmp.ne.s32.totalorder %s121, %s123
    %p130 = scmp.eq.s32.totalorder %s29, 1
    %p131 = por %p129, %p130
    %p132 = scmp.ne.s32.totalorder %s123, %s124
    %p133 = scmp.eq.s32.totalorder %s29, 0
    %p134 = por %p132, %p133
    %p135 = scmp.ne.s32.totalorder %s123, %s124
    %p136 = scmp.eq.s32.totalorder %s30, 1
    %p137 = por %p135, %p136
    %p139 = scmp.ne.s32.totalorder %s124, %s138
    %p140 = scmp.eq.s32.totalorder %s30, 0
    %p141 = por %p139, %p140
    %s143 = sadd.s32 %s142, 1
    %p146 = scmp.eq.s32.totalorder %s24, 1
    %p147 = scmp.ne.s32.totalorder %s142, %s144
    %p148 = scmp.eq.s32.totalorder %s24, 0
    %p149 = por %p147, %p148
    %p150 = scmp.ne.s32.totalorder %s142, %s144
    %p151 = scmp.eq.s32.totalorder %s29, 1
    %p152 = por %p150, %p151
    %p153 = scmp.ne.s32.totalorder %s144, %s145
    %p154 = scmp.eq.s32.totalorder %s29, 0
    %p155 = por %p153, %p154
    %p156 = scmp.ne.s32.totalorder %s144, %s145
    %p157 = scmp.eq.s32.totalorder %s30, 1
    %p158 = por %p156, %p157
    %p160 = scmp.ne.s32.totalorder %s145, %s159
    %p161 = scmp.eq.s32.totalorder %s30, 0
    %p162 = por %p160, %p161
    %s164 = sadd.s32 %s163, 1
    %p167 = scmp.eq.s32.totalorder %s24, 1
    %p168 = scmp.ne.s32.totalorder %s163, %s165
    %p169 = scmp.eq.s32.totalorder %s24, 0
    %p170 = por %p168, %p169
    %p171 = scmp.ne.s32.totalorder %s163, %s165
    %p172 = scmp.eq.s32.totalorder %s29, 1
    %p173 = por %p171, %p172
    %p174 = scmp.ne.s32.totalorder %s165, %s166
    %p175 = scmp.eq.s32.totalorder %s29, 0
    %p176 = por %p174, %p175
    %p177 = scmp.ne.s32.totalorder %s165, %s166
    %p178 = scmp.eq.s32.totalorder %s30, 1
    %p179 = por %p177, %p178
    %p181 = scmp.ne.s32.totalorder %s166, %s180
    %p182 = scmp.eq.s32.totalorder %s30, 0
    %p183 = por %p181, %p182
    %s185 = sadd.s32 %s184, 1
    %p188 = scmp.eq.s32.totalorder %s24, 1
    %p189 = scmp.ne.s32.totalorder %s184, %s186
    %p190 = scmp.eq.s32.totalorder %s24, 0
    %p191 = por %p189, %p190
    %p192 = scmp.ne.s32.totalorder %s184, %s186
    %p193 = scmp.eq.s32.totalorder %s29, 1
    %p194 = por %p192, %p193
    %p195 = scmp.ne.s32.totalorder %s186, %s187
    %p196 = scmp.eq.s32.totalorder %s29, 0
    %p197 = por %p195, %p196
    %p198 = scmp.ne.s32.totalorder %s186, %s187
    %p199 = scmp.eq.s32.totalorder %s30, 1
    %p200 = por %p198, %p199
    %p202 = scmp.ne.s32.totalorder %s187, %s201
    %p203 = scmp.eq.s32.totalorder %s30, 0
    %p204 = por %p202, %p203
    %s206 = sadd.s32 %s205, 1
    %p209 = scmp.eq.s32.totalorder %s24, 1
    %p210 = scmp.ne.s32.totalorder %s205, %s207
    %p211 = scmp.eq.s32.totalorder %s24, 0
    %p212 = por %p210, %p211
    %p213 = scmp.ne.s32.totalorder %s205, %s207
    %p214 = scmp.eq.s32.totalorder %s29, 1
    %p215 = por %p213, %p214
    %p216 = scmp.ne.s32.totalorder %s207, %s208
    %p217 = scmp.eq.s32.totalorder %s29, 0
    %p218 = por %p216, %p217
    %p219 = scmp.ne.s32.totalorder %s207, %s208
    %p220 = scmp.eq.s32.totalorder %s30, 1
    %p221 = por %p219, %p220
    %p223 = scmp.ne.s32.totalorder %s208, %s222
    %p224 = scmp.eq.s32.totalorder %s30, 0
    %p225 = por %p223, %p224
    %s227 = sadd.s32 %s226, 1
    %p230 = scmp.eq.s32.totalorder %s24, 1
    %p231 = scmp.ne.s32.totalorder %s226, %s228
    %p232 = scmp.eq.s32.totalorder %s24, 0
    %p233 = por %p231, %p232
    %p234 = scmp.ne.s32.totalorder %s226, %s228
    %p235 = scmp.eq.s32.totalorder %s29, 1
    %p236 = por %p234, %p235
    %p237 = scmp.ne.s32.totalorder %s228, %s229
    %p238 = scmp.eq.s32.totalorder %s29, 0
    %p239 = por %p237, %p238
    %p240 = scmp.ne.s32.totalorder %s228, %s229
    %p241 = scmp.eq.s32.totalorder %s30, 1
    %p242 = por %p240, %p241
    %p244 = scmp.ne.s32.totalorder %s229, %s243
    %p245 = scmp.eq.s32.totalorder %s30, 0
    %p246 = por %p244, %p245
    %s248 = sadd.s32 %s247, 1
    %p251 = scmp.eq.s32.totalorder %s24, 1
    %p252 = scmp.ne.s32.totalorder %s247, %s249
    %p253 = scmp.eq.s32.totalorder %s24, 0
    %p254 = por %p252, %p253
    %p255 = scmp.ne.s32.totalorder %s247, %s249
    %p256 = scmp.eq.s32.totalorder %s29, 1
    %p257 = por %p255, %p256
    %p258 = scmp.ne.s32.totalorder %s249, %s250
    %p259 = scmp.eq.s32.totalorder %s29, 0
    %p260 = por %p258, %p259
    %p261 = scmp.ne.s32.totalorder %s249, %s250
    %p262 = scmp.eq.s32.totalorder %s30, 1
    %p263 = por %p261, %p262
    %p265 = scmp.ne.s32.totalorder %s250, %s264
    %p266 = scmp.eq.s32.totalorder %s30, 0
    %p267 = por %p265, %p266
    %s269 = sadd.s32 %s268, 1
    %p272 = scmp.eq.s32.totalorder %s24, 1
    %p273 = scmp.ne.s32.totalorder %s268, %s270
    %p274 = scmp.eq.s32.totalorder %s24, 0
    %p275 = por %p273, %p274
    %p276 = scmp.ne.s32.totalorder %s268, %s270
    %p277 = scmp.eq.s32.totalorder %s29, 1
    %p278 = por %p276, %p277
    %p279 = scmp.ne.s32.totalorder %s270, %s271
    %p280 = scmp.eq.s32.totalorder %s29, 0
    %p281 = por %p279, %p280
    %p282 = scmp.ne.s32.totalorder %s270, %s271
    %p283 = scmp.eq.s32.totalorder %s30, 1
    %p284 = por %p282, %p283
    %p286 = scmp.ne.s32.totalorder %s271, %s285
    %p287 = scmp.eq.s32.totalorder %s30, 0
    %p288 = por %p286, %p287
    %s290 = sadd.s32 %s289, 1
    %p293 = scmp.eq.s32.totalorder %s24, 1
    %p294 = scmp.ne.s32.totalorder %s289, %s291
    %p295 = scmp.eq.s32.totalorder %s24, 0
    %p296 = por %p294, %p295
    %p297 = scmp.ne.s32.totalorder %s289, %s291
    %p298 = scmp.eq.s32.totalorder %s29, 1
    %p299 = por %p297, %p298
    %p300 = scmp.ne.s32.totalorder %s291, %s292
    %p301 = scmp.eq.s32.totalorder %s29, 0
    %p302 = por %p300, %p301
    %p303 = scmp.ne.s32.totalorder %s291, %s292
    %p304 = scmp.eq.s32.totalorder %s30, 1
    %p305 = por %p303, %p304
    %p307 = scmp.ne.s32.totalorder %s292, %s306
    %p308 = scmp.eq.s32.totalorder %s30, 0
    %p309 = por %p307, %p308
    %s311 = sadd.s32 %s310, 1
    %p314 = scmp.eq.s32.totalorder %s24, 1
    %p315 = scmp.ne.s32.totalorder %s310, %s312
    %p316 = scmp.eq.s32.totalorder %s24, 0
    %p317 = por %p315, %p316
    %p318 = scmp.ne.s32.totalorder %s310, %s312
    %p319 = scmp.eq.s32.totalorder %s29, 1
    %p320 = por %p318, %p319
    %p321 = scmp.ne.s32.totalorder %s312, %s313
    %p322 = scmp.eq.s32.totalorder %s29, 0
    %p323 = por %p321, %p322
    %p324 = scmp.ne.s32.totalorder %s312, %s313
    %p325 = scmp.eq.s32.totalorder %s30, 1
    %p326 = por %p324, %p325
    %p328 = scmp.ne.s32.totalorder %s313, %s327
    %p329 = scmp.eq.s32.totalorder %s30, 0
    %p330 = por %p328, %p329
    %s332 = sadd.s32 %s331, 1
    %p335 = scmp.eq.s32.totalorder %s24, 1
    %p336 = scmp.ne.s32.totalorder %s331, %s333
    %p337 = scmp.eq.s32.totalorder %s24, 0
    %p338 = por %p336, %p337
    %p339 = scmp.ne.s32.totalorder %s331, %s333
    %p340 = scmp.eq.s32.totalorder %s29, 1
    %p341 = por %p339, %p340
    %p342 = scmp.ne.s32.totalorder %s333, %s334
    %p343 = scmp.eq.s32.totalorder %s29, 0
    %p344 = por %p342, %p343
    %p345 = scmp.ne.s32.totalorder %s333, %s334
    %p346 = scmp.eq.s32.totalorder %s30, 1
    %p347 = por %p345, %p346
    %p349 = scmp.ne.s32.totalorder %s334, %s348
    %p350 = scmp.eq.s32.totalorder %s30, 0
    %p351 = por %p349, %p350
    %s353 = sadd.s32 %s352, 1
    %p356 = scmp.eq.s32.totalorder %s24, 1
    %p357 = scmp.ne.s32.totalorder %s352, %s354
    %p358 = scmp.eq.s32.totalorder %s24, 0
    %p359 = por %p357, %p358
    %p360 = scmp.ne.s32.totalorder %s352, %s354
    %p361 = scmp.eq.s32.totalorder %s29, 1
    %p362 = por %p360, %p361
    %p363 = scmp.ne.s32.totalorder %s354, %s355
    %p364 = scmp.eq.s32.totalorder %s29, 0
    %p365 = por %p363, %p364
    %p366 = scmp.ne.s32.totalorder %s354, %s355
    %p367 = scmp.eq.s32.totalorder %s30, 1
    %p368 = por %p366, %p367
    %p370 = scmp.ne.s32.totalorder %s355, %s369
    %p371 = scmp.eq.s32.totalorder %s30, 0
    %p372 = por %p370, %p371
    %s374 = sadd.s32 %s373, 1
    %p377 = scmp.eq.s32.totalorder %s24, 1
    %p378 = scmp.ne.s32.totalorder %s373, %s375
    %p379 = scmp.eq.s32.totalorder %s24, 0
    %p380 = por %p378, %p379
    %p381 = scmp.ne.s32.totalorder %s373, %s375
    %p382 = scmp.eq.s32.totalorder %s29, 1
    %p383 = por %p381, %p382
    %p384 = scmp.ne.s32.totalorder %s375, %s376
    %p385 = scmp.eq.s32.totalorder %s29, 0
    %p386 = por %p384, %p385
    %p387 = scmp.ne.s32.totalorder %s375, %s376
    %p388 = scmp.eq.s32.totalorder %s30, 1
    %p389 = por %p387, %p388
    %p391 = scmp.ne.s32.totalorder %s376, %s390
    %p392 = scmp.eq.s32.totalorder %s30, 0
    %p393 = por %p391, %p392
    %s395 = sadd.s32 %s394, 1
    %p398 = scmp.eq.s32.totalorder %s24, 1
    %p399 = scmp.ne.s32.totalorder %s394, %s396
    %p400 = scmp.eq.s32.totalorder %s24, 0
    %p401 = por %p399, %p400
    %p402 = scmp.ne.s32.totalorder %s394, %s396
    %p403 = scmp.eq.s32.totalorder %s29, 1
    %p404 = por %p402, %p403
    %p405 = scmp.ne.s32.totalorder %s396, %s397
    %p406 = scmp.eq.s32.totalorder %s29, 0
    %p407 = por %p405, %p406
    %p408 = scmp.ne.s32.totalorder %s396, %s397
    %p409 = scmp.eq.s32.totalorder %s30, 1
    %p410 = por %p408, %p409
    %p412 = scmp.ne.s32.totalorder %s397, %s411
    %p413 = scmp.eq.s32.totalorder %s30, 0
    %p414 = por %p412, %p413
    %s415 = ssub.s32 %s24, %s31
    %p416 = scmp.eq.s32.totalorder %s415, 0
    %s418 = sadd.s32 %s417, 1
    %s419 = scalar_select %p416, %s417, %s418
    %p422 = pneg %p416
    %p423 = scmp.eq.s32.totalorder %s24, 1
    %p424 = por %p422, %p423
    %p425 = scmp.ne.s32.totalorder %s417, %s420
    %p426 = scmp.eq.s32.totalorder %s24, 0
    %p427 = por %p425, %p426
    %p428 = scmp.ne.s32.totalorder %s417, %s420
    %p429 = scmp.eq.s32.totalorder %s29, 1
    %p430 = por %p428, %p429
    %p431 = scmp.ne.s32.totalorder %s420, %s421
    %p432 = scmp.eq.s32.totalorder %s29, 0
    %p433 = por %p431, %p432
    %p434 = scmp.ne.s32.totalorder %s420, %s421
    %p435 = scmp.eq.s32.totalorder %s30, 1
    %p436 = por %p434, %p435
    %p438 = scmp.ne.s32.totalorder %s421, %s437
    %p439 = scmp.eq.s32.totalorder %s30, 0
    %p440 = por %p438, %p439
    %p441 = scmp.le.s32.totalorder 1, %s24
    %p442 = scmp.lt.s32.totalorder %s24, 3
    %p443 = pnand %p441, %p442
    %p444 = pneg %p443
    // Predicated region
    $region9: #{vgg4_forward.1} parent=5 // pred_check
      _
    $region10: #{vgg4_forward.1} parent=5 // pred_check_branch
      %446 = sbr.rel (%p443) target = $region12
    $region11: #{vgg4_forward.1} parent=5 // pred_region
      %s447 = ssub.s32 %s24, 1
      // Predicated region
      $region13: #{vgg4_forward.1} parent=11 // pred_check
        %p448 = pneg %p71
      $region14: #{vgg4_forward.1} parent=11 // pred_check_branch
        %450 = sbr.rel (%p448) target = $region16
      $region15: #{vgg4_forward.1} parent=11 // pred_region
        _
      $region16: #{vgg4_forward.1} parent=11 // pred_fallthru
        _
      // Predicated region
      $region17: #{vgg4_forward.1} parent=11 // pred_check
        %p451 = pneg %p92
      $region18: #{vgg4_forward.1} parent=11 // pred_check_branch
        %453 = sbr.rel (%p451) target = $region20
      $region19: #{vgg4_forward.1} parent=11 // pred_region
        _
      $region20: #{vgg4_forward.1} parent=11 // pred_fallthru
        _
      // Predicated region
      $region21: #{vgg4_forward.1} parent=11 // pred_check
        %p454 = pneg %p113
      $region22: #{vgg4_forward.1} parent=11 // pred_check_branch
        %456 = sbr.rel (%p454) target = $region24
      $region23: #{vgg4_forward.1} parent=11 // pred_region
        _
      $region24: #{vgg4_forward.1} parent=11 // pred_fallthru
        _
      // Predicated region
      $region25: #{vgg4_forward.1} parent=11 // pred_check
        %p457 = pneg %p134
      $region26: #{vgg4_forward.1} parent=11 // pred_check_branch
        %459 = sbr.rel (%p457) target = $region28
      $region27: #{vgg4_forward.1} parent=11 // pred_region
        _
      $region28: #{vgg4_forward.1} parent=11 // pred_fallthru
        _
      // Predicated region
      $region29: #{vgg4_forward.1} parent=11 // pred_check
        %p460 = pneg %p155
      $region30: #{vgg4_forward.1} parent=11 // pred_check_branch
        %462 = sbr.rel (%p460) target = $region32
      $region31: #{vgg4_forward.1} parent=11 // pred_region
        _
      $region32: #{vgg4_forward.1} parent=11 // pred_fallthru
        _
      // Predicated region
      $region33: #{vgg4_forward.1} parent=11 // pred_check
        %p463 = pneg %p176
      $region34: #{vgg4_forward.1} parent=11 // pred_check_branch
        %465 = sbr.rel (%p463) target = $region36
      $region35: #{vgg4_forward.1} parent=11 // pred_region
        _
      $region36: #{vgg4_forward.1} parent=11 // pred_fallthru
        _
      // Predicated region
      $region37: #{vgg4_forward.1} parent=11 // pred_check
        %p466 = pneg %p197
      $region38: #{vgg4_forward.1} parent=11 // pred_check_branch
        %468 = sbr.rel (%p466) target = $region40
      $region39: #{vgg4_forward.1} parent=11 // pred_region
        _
      $region40: #{vgg4_forward.1} parent=11 // pred_fallthru
        _
      // Predicated region
      $region41: #{vgg4_forward.1} parent=11 // pred_check
        %p469 = pneg %p218
      $region42: #{vgg4_forward.1} parent=11 // pred_check_branch
        %471 = sbr.rel (%p469) target = $region44
      $region43: #{vgg4_forward.1} parent=11 // pred_region
        _
      $region44: #{vgg4_forward.1} parent=11 // pred_fallthru
        _
      // Predicated region
      $region45: #{vgg4_forward.1} parent=11 // pred_check
        %p472 = pneg %p239
      $region46: #{vgg4_forward.1} parent=11 // pred_check_branch
        %474 = sbr.rel (%p472) target = $region48
      $region47: #{vgg4_forward.1} parent=11 // pred_region
        _
      $region48: #{vgg4_forward.1} parent=11 // pred_fallthru
        _
      // Predicated region
      $region49: #{vgg4_forward.1} parent=11 // pred_check
        %p475 = pneg %p260
      $region50: #{vgg4_forward.1} parent=11 // pred_check_branch
        %477 = sbr.rel (%p475) target = $region52
      $region51: #{vgg4_forward.1} parent=11 // pred_region
        _
      $region52: #{vgg4_forward.1} parent=11 // pred_fallthru
        _
      // Predicated region
      $region53: #{vgg4_forward.1} parent=11 // pred_check
        %p478 = pneg %p281
      $region54: #{vgg4_forward.1} parent=11 // pred_check_branch
        %480 = sbr.rel (%p478) target = $region56
      $region55: #{vgg4_forward.1} parent=11 // pred_region
        _
      $region56: #{vgg4_forward.1} parent=11 // pred_fallthru
        _
      // Predicated region
      $region57: #{vgg4_forward.1} parent=11 // pred_check
        %p481 = pneg %p302
      $region58: #{vgg4_forward.1} parent=11 // pred_check_branch
        %483 = sbr.rel (%p481) target = $region60
      $region59: #{vgg4_forward.1} parent=11 // pred_region
        _
      $region60: #{vgg4_forward.1} parent=11 // pred_fallthru
        _
      // Predicated region
      $region61: #{vgg4_forward.1} parent=11 // pred_check
        %p484 = pneg %p323
      $region62: #{vgg4_forward.1} parent=11 // pred_check_branch
        %486 = sbr.rel (%p484) target = $region64
      $region63: #{vgg4_forward.1} parent=11 // pred_region
        _
      $region64: #{vgg4_forward.1} parent=11 // pred_fallthru
        _
      // Predicated region
      $region65: #{vgg4_forward.1} parent=11 // pred_check
        %p487 = pneg %p344
      $region66: #{vgg4_forward.1} parent=11 // pred_check_branch
        %489 = sbr.rel (%p487) target = $region68
      $region67: #{vgg4_forward.1} parent=11 // pred_region
        _
      $region68: #{vgg4_forward.1} parent=11 // pred_fallthru
        _
      // Predicated region
      $region69: #{vgg4_forward.1} parent=11 // pred_check
        %p490 = pneg %p365
      $region70: #{vgg4_forward.1} parent=11 // pred_check_branch
        %492 = sbr.rel (%p490) target = $region72
      $region71: #{vgg4_forward.1} parent=11 // pred_region
        _
      $region72: #{vgg4_forward.1} parent=11 // pred_fallthru
        _
      // Predicated region
      $region73: #{vgg4_forward.1} parent=11 // pred_check
        %p493 = pneg %p386
      $region74: #{vgg4_forward.1} parent=11 // pred_check_branch
        %495 = sbr.rel (%p493) target = $region76
      $region75: #{vgg4_forward.1} parent=11 // pred_region
        _
      $region76: #{vgg4_forward.1} parent=11 // pred_fallthru
        _
      // Predicated region
      $region77: #{vgg4_forward.1} parent=11 // pred_check
        %p496 = pneg %p407
      $region78: #{vgg4_forward.1} parent=11 // pred_check_branch
        %498 = sbr.rel (%p496) target = $region80
      $region79: #{vgg4_forward.1} parent=11 // pred_region
        _
      $region80: #{vgg4_forward.1} parent=11 // pred_fallthru
        _
    $region12: #{vgg4_forward.1} parent=5 // pred_fallthru
      _
    %p499 = scmp.lt.s32.totalorder %s24, 2
    // Predicated region
    $region81: #{vgg4_forward.1} parent=5 // pred_check
      %p500 = pneg %p499
    $region82: #{vgg4_forward.1} parent=5 // pred_check_branch
      %502 = sbr.rel (%p500) target = $region84
    $region83: #{vgg4_forward.1} parent=5 // pred_region
      // Predicated region
      $region85: #{vgg4_forward.1} parent=83 // pred_check
        %p503 = pneg %p44
      $region86: #{vgg4_forward.1} parent=83 // pred_check_branch
        %505 = sbr.rel (%p503) target = $region88
      $region87: #{vgg4_forward.1} parent=83 // pred_region
        %p506 = scmp.lt.s32.totalorder %s24, 1
        %s507 = scalar_select %p506, %s24, 1
        %s508 = smul.addr %s507, 2
        %s509 = scalar_lea.vmem %s0, %s508
      $region88: #{vgg4_forward.1} parent=83 // pred_fallthru
        _
    $region84: #{vgg4_forward.1} parent=5 // pred_fallthru
      _
    %p510 = scmp.le.s32.totalorder 1, %s24
    %p511 = scmp.lt.s32.totalorder %s24, 3
    %p512 = pnand %p510, %p511
    %p513 = pneg %p512
    // Predicated region
    $region89: #{vgg4_forward.1} parent=5 // pred_check
      _
    $region90: #{vgg4_forward.1} parent=5 // pred_check_branch
      %515 = sbr.rel (%p512) target = $region92
    $region91: #{vgg4_forward.1} parent=5 // pred_region
      %s516 = ssub.s32 %s24, 1
      %p517 = scmp.lt.s32.totalorder %s29, 1
      %s518 = scalar_select %p517, %s29, 1
      %s519 = smul.addr %s518, 2
      %s520 = scalar_lea.vmem %s0, %s519
      %p521 = pneg %p50
      %p522 = pneg %p47
      %p523 = pneg %p71
      %p524 = pneg %p68
      %p525 = pneg %p92
      %p526 = pneg %p89
      %p527 = pneg %p113
      %p528 = pneg %p110
      %p529 = pneg %p134
      %p530 = pneg %p131
      %p531 = pneg %p155
      %p532 = pneg %p152
      %p533 = pneg %p176
      %p534 = pneg %p173
      %p535 = pneg %p197
      %p536 = pneg %p194
      %p537 = pneg %p218
      %p538 = pneg %p215
      %p539 = pneg %p239
      %p540 = pneg %p236
      %p541 = pneg %p260
      %p542 = pneg %p257
      %p543 = pneg %p281
      %p544 = pneg %p278
      %p545 = pneg %p302
      %p546 = pneg %p299
      %p547 = pneg %p323
      %p548 = pneg %p320
      %p549 = pneg %p344
      %p550 = pneg %p341
      %p551 = pneg %p365
      %p552 = pneg %p362
      %p553 = pneg %p386
      %p554 = pneg %p383
      %p555 = pneg %p407
      %p556 = pneg %p404
      %p557 = pneg %p433
      %p558 = pneg %p430
      %p559 = scmp.lt.s32.totalorder %s29, 1
      %s560 = scalar_select %p559, %s29, 1
      %s561 = smul.addr %s560, 4
      %s562 = smul.addr %s561, 8
      %s563 = scalar_lea.vmem %s18, %s562
      %p564 = scmp.lt.s32.totalorder %s29, 1
      %s565 = scalar_select %p564, %s29, 1
      %s566 = smul.addr %s565, 2
      %s567 = scalar_lea.vmem %s0, %s566
      %p568 = scmp.lt.s32.totalorder %s29, 1
      %s569 = scalar_select %p568, %s29, 1
      %s570 = smul.addr %s569, 4
      %s571 = smul.addr %s570, 8
      %s572 = scalar_lea.vmem %s18, %s571
      %v574 = vld [vmem:[%s567] sm:$0x3]
      %v575 = vld [vmem:[%s1] sm:$0xf]
      %v576 = vld [vmem:[%s1 + $0x4] sm:$0xf]
      %v577 = vld [vmem:[%s7] sm:$0xff]
      %v578 = vld [vmem:[%s7 + $0x8] sm:$0xff]
      %v579 = vld [vmem:[%s2] sm:$0xff]
      %v580 = vld [vmem:[%s2 + $0x8] sm:$0xff]
      %v581 = vld [vmem:[%s3] sm:$0xff]
      %v582 = vld [vmem:[%s3 + $0x8] sm:$0xff]
      %v583 = vlaneseq
      %v584 = vand.u32 %v583, 127
      %v585 = vadd.s32 %v584, 128
      %vm586 = vcmp.lt.s32.totalorder %v584, 0
      %v587 = vsub.s32 0, %v584
      %v588 = vsel %vm586, %v587, %v584
      %v589 = vshrl.u32 %v588, 4
      %v590 = vand.u32 %v588, 15
      %v591 = vsub.s32 0, %v590
      %v592 = vsel %vm586, %v591, %v590
      %vm593 = vcmp.lt.s32.totalorder %v585, 0
      %v594 = vsub.s32 0, %v585
      %v595 = vsel %vm593, %v594, %v585
      %v596 = vshrl.u32 %v595, 4
      %v597 = vand.u32 %v595, 15
      %v598 = vsub.s32 0, %v597
      %v599 = vsel %vm593, %v598, %v597
      %vm600 = vcmp.ne.s32.totalorder %v592, 0
      %vm601 = vcmp.ne.s32.totalorder %v599, 0
      %vm602 = vcmp.lt.s32.totalorder %v592, 0
      %vm603 = vcmp.lt.s32.totalorder %v599, 0
      %vm604 = vmand %vm602, %vm600
      %vm605 = vmand %vm603, %vm601
      %v606 = vadd.s32 %v592, 16
      %v607 = vadd.s32 %v599, 16
      %v608 = vsel %vm604, %v606, %v592
      %v609 = vsel %vm605, %v607, %v599
      %vm610 = vcmp.ge.s32.totalorder %v608, 1
      %vm611 = vcmp.ge.s32.totalorder %v609, 1
      %vm612 = vcmp.lt.s32.totalorder %v608, 15
      %vm613 = vcmp.lt.s32.totalorder %v609, 15
      %v615 = vlaneseq
      %v616 = vshrl.u32 %v615, 7
      %v617 = vsub.s32 0, %v616
      %v618 = vrot.slane %v574, %v617
      %v619 = vlaneseq
      %v620 = vshrl.u32 %v619, 7
      %v621 = vsub.s32 1, %v620
      %v622 = vrot.slane %v574, %v621
      %623 = vrot.lane.b32.xlu0 %v618, 17
      %v624 = vpop.permute.xlu0 %623
      %625 = vrot.lane.b32.xlu0 %v622, 17
      %v626 = vpop.permute.xlu0 %625
      %vm627 = vcmask 138240
      %v628 = vsel %vm627, %v624, %v626
      %v631 = vsel %vm627, 0.0, %v624
      %v632 = vsel %vm610, %v631, 0.0
      %v633 = vsel %vm611, %v628, 0.0
      %634 = vrot.lane.b32.xlu0 %v618, 16
      %v635 = vpop.permute.xlu0 %634
      %636 = vrot.lane.b32.xlu0 %v622, 16
      %v637 = vpop.permute.xlu0 %636
      %vm638 = vcmask 130048
      %v639 = vsel %vm638, %v635, %v637
      %v642 = vsel %vm638, 0.0, %v635
      %643 = vrot.lane.b32.xlu0 %v618, 15
      %v644 = vpop.permute.xlu0 %643
      %645 = vrot.lane.b32.xlu0 %v622, 15
      %v646 = vpop.permute.xlu0 %645
      %vm647 = vcmask 121856
      %v648 = vsel %vm647, %v644, %v646
      %v651 = vsel %vm647, 0.0, %v644
      %v652 = vsel %vm612, %v651, 0.0
      %v653 = vsel %vm613, %v648, 0.0
      %654 = vrot.lane.b32.xlu0 %v618, 1
      %v655 = vpop.permute.xlu0 %654
      %656 = vrot.lane.b32.xlu0 %v622, 1
      %v657 = vpop.permute.xlu0 %656
      %vm658 = vcmask 7168
      %v659 = vsel %vm658, %v655, %v657
      %v662 = vsel %vm658, 0.0, %v655
      %v663 = vsel %vm610, %v662, 0.0
      %v664 = vsel %vm611, %v659, 0.0
      %665 = vrot.lane.b32.xlu0 %v618, 127
      %v666 = vpop.permute.xlu0 %665
      %667 = vrot.lane.b32.xlu0 %v622, 127
      %v668 = vpop.permute.xlu0 %667
      %vm669 = vcmask 1039360
      %v670 = vsel %vm669, %v666, %v668
      %v673 = vsel %vm669, %v668, 0.0
      %v674 = vsel %vm612, %v670, 0.0
      %v675 = vsel %vm613, %v673, 0.0
      %676 = vrot.lane.b32.xlu0 %v618, 113
      %v677 = vpop.permute.xlu0 %676
      %678 = vrot.lane.b32.xlu0 %v622, 113
      %v679 = vpop.permute.xlu0 %678
      %vm680 = vcmask 924672
      %v681 = vsel %vm680, %v677, %v679
      %v684 = vsel %vm680, %v679, 0.0
      %v685 = vsel %vm610, %v681, 0.0
      %v686 = vsel %vm611, %v684, 0.0
      %687 = vrot.lane.b32.xlu0 %v618, 112
      %v688 = vpop.permute.xlu0 %687
      %689 = vrot.lane.b32.xlu0 %v622, 112
      %v690 = vpop.permute.xlu0 %689
      %vm691 = vcmask 916480
      %v692 = vsel %vm691, %v688, %v690
      %v695 = vsel %vm691, %v690, 0.0
      %696 = vrot.lane.b32.xlu0 %v618, 111
      %v697 = vpop.permute.xlu0 %696
      %698 = vrot.lane.b32.xlu0 %v622, 111
      %v699 = vpop.permute.xlu0 %698
      %vm700 = vcmask 908288
      %v701 = vsel %vm700, %v697, %v699
      %v704 = vsel %vm700, %v699, 0.0
      %v705 = vsel %vm612, %v701, 0.0
      %v706 = vsel %vm613, %v704, 0.0
      %v707 = vunpack.c.l.bf16 %v575
      %v708 = vunpack.c.l.bf16 %v576
      %710 = vset.pattern.permute.xlu0 0
      %711 = vperm.xlu0 %710, %v707
      %v712 = vpop.permute.xlu0 %711
      %715 = vset.pattern.permute.xlu0 0
      %716 = vperm.xlu0 %715, %v708
      %v717 = vpop.permute.xlu0 %716
      %v719 = vlaneseq
      %v720 = vshrl.u32 %v719, 7
      %v721 = vsub.s32 0, %v720
      %v722 = vrot.slane %v632, %v721
      %v723 = vlaneseq
      %v724 = vshrl.u32 %v723, 7
      %v725 = vsub.s32 0, %v724
      %v726 = vrot.slane %v633, %v725
      %v727 = vmul.f32 %v712, %v722
      %v728 = vmul.f32 %v712, %v726
      %v729 = vmul.f32 %v717, %v722
      %v730 = vmul.f32 %v717, %v726
      %v731 = vadd.f32 %v727, 0.0
      %v732 = vadd.f32 %v728, 0.0
      %v733 = vadd.f32 %v729, 0.0
      %v734 = vadd.f32 %v730, 0.0
      %735 = vset.pattern.permute.xlu0 1
      %736 = vperm.xlu0 %735, %v707
      %v737 = vpop.permute.xlu0 %736
      %739 = vset.pattern.permute.xlu0 1
      %740 = vperm.xlu0 %739, %v708
      %v741 = vpop.permute.xlu0 %740
      %v743 = vlaneseq
      %v744 = vshrl.u32 %v743, 7
      %v745 = vsub.s32 0, %v744
      %v746 = vrot.slane %v642, %v745
      %v747 = vlaneseq
      %v748 = vshrl.u32 %v747, 7
      %v749 = vsub.s32 0, %v748
      %v750 = vrot.slane %v639, %v749
      %v751 = vmul.f32 %v737, %v746
      %v752 = vmul.f32 %v737, %v750
      %v753 = vmul.f32 %v741, %v746
      %v754 = vmul.f32 %v741, %v750
      %v755 = vadd.f32 %v731, %v751
      %v756 = vadd.f32 %v732, %v752
      %v757 = vadd.f32 %v733, %v753
      %v758 = vadd.f32 %v734, %v754
      %759 = vset.pattern.permute.xlu0 2
      %760 = vperm.xlu0 %759, %v707
      %v761 = vpop.permute.xlu0 %760
      %763 = vset.pattern.permute.xlu0 2
      %764 = vperm.xlu0 %763, %v708
      %v765 = vpop.permute.xlu0 %764
      %v767 = vlaneseq
      %v768 = vshrl.u32 %v767, 7
      %v769 = vsub.s32 0, %v768
      %v770 = vrot.slane %v652, %v769
      %v771 = vlaneseq
      %v772 = vshrl.u32 %v771, 7
      %v773 = vsub.s32 0, %v772
      %v774 = vrot.slane %v653, %v773
      %v775 = vmul.f32 %v761, %v770
      %v776 = vmul.f32 %v761, %v774
      %v777 = vmul.f32 %v765, %v770
      %v778 = vmul.f32 %v765, %v774
      %v779 = vadd.f32 %v755, %v775
      %v780 = vadd.f32 %v756, %v776
      %v781 = vadd.f32 %v757, %v777
      %v782 = vadd.f32 %v758, %v778
      %783 = vset.pattern.permute.xlu0 3
      %784 = vperm.xlu0 %783, %v707
      %v785 = vpop.permute.xlu0 %784
      %787 = vset.pattern.permute.xlu0 3
      %788 = vperm.xlu0 %787, %v708
      %v789 = vpop.permute.xlu0 %788
      %v791 = vlaneseq
      %v792 = vshrl.u32 %v791, 7
      %v793 = vsub.s32 0, %v792
      %v794 = vrot.slane %v663, %v793
      %v795 = vlaneseq
      %v796 = vshrl.u32 %v795, 7
      %v797 = vsub.s32 0, %v796
      %v798 = vrot.slane %v664, %v797
      %v799 = vmul.f32 %v785, %v794
      %v800 = vmul.f32 %v785, %v798
      %v801 = vmul.f32 %v789, %v794
      %v802 = vmul.f32 %v789, %v798
      %v803 = vadd.f32 %v779, %v799
      %v804 = vadd.f32 %v780, %v800
      %v805 = vadd.f32 %v781, %v801
      %v806 = vadd.f32 %v782, %v802
      %807 = vset.pattern.permute.xlu0 4
      %808 = vperm.xlu0 %807, %v707
      %v809 = vpop.permute.xlu0 %808
      %811 = vset.pattern.permute.xlu0 4
      %812 = vperm.xlu0 %811, %v708
      %v813 = vpop.permute.xlu0 %812
      %v817 = vmul.f32 %v809, %v618
      %v818 = vmul.f32 %v809, %v622
      %v819 = vmul.f32 %v813, %v618
      %v820 = vmul.f32 %v813, %v622
      %v821 = vadd.f32 %v803, %v817
      %v822 = vadd.f32 %v804, %v818
      %v823 = vadd.f32 %v805, %v819
      %v824 = vadd.f32 %v806, %v820
      %825 = vset.pattern.permute.xlu0 5
      %826 = vperm.xlu0 %825, %v707
      %v827 = vpop.permute.xlu0 %826
      %829 = vset.pattern.permute.xlu0 5
      %830 = vperm.xlu0 %829, %v708
      %v831 = vpop.permute.xlu0 %830
      %v833 = vlaneseq
      %v834 = vshrl.u32 %v833, 7
      %v835 = vsub.s32 0, %v834
      %v836 = vrot.slane %v674, %v835
      %v837 = vlaneseq
      %v838 = vshrl.u32 %v837, 7
      %v839 = vsub.s32 0, %v838
      %v840 = vrot.slane %v675, %v839
      %v841 = vmul.f32 %v827, %v836
      %v842 = vmul.f32 %v827, %v840
      %v843 = vmul.f32 %v831, %v836
      %v844 = vmul.f32 %v831, %v840
      %v845 = vadd.f32 %v821, %v841
      %v846 = vadd.f32 %v822, %v842
      %v847 = vadd.f32 %v823, %v843
      %v848 = vadd.f32 %v824, %v844
      %849 = vset.pattern.permute.xlu0 6
      %850 = vperm.xlu0 %849, %v707
      %v851 = vpop.permute.xlu0 %850
      %853 = vset.pattern.permute.xlu0 6
      %854 = vperm.xlu0 %853, %v708
      %v855 = vpop.permute.xlu0 %854
      %v857 = vlaneseq
      %v858 = vshrl.u32 %v857, 7
      %v859 = vsub.s32 0, %v858
      %v860 = vrot.slane %v685, %v859
      %v861 = vlaneseq
      %v862 = vshrl.u32 %v861, 7
      %v863 = vsub.s32 0, %v862
      %v864 = vrot.slane %v686, %v863
      %v865 = vmul.f32 %v851, %v860
      %v866 = vmul.f32 %v851, %v864
      %v867 = vmul.f32 %v855, %v860
      %v868 = vmul.f32 %v855, %v864
      %v869 = vadd.f32 %v845, %v865
      %v870 = vadd.f32 %v846, %v866
      %v871 = vadd.f32 %v847, %v867
      %v872 = vadd.f32 %v848, %v868
      %873 = vset.pattern.permute.xlu0 7
      %874 = vperm.xlu0 %873, %v707
      %v875 = vpop.permute.xlu0 %874
      %877 = vset.pattern.permute.xlu0 7
      %878 = vperm.xlu0 %877, %v708
      %v879 = vpop.permute.xlu0 %878
      %v881 = vlaneseq
      %v882 = vshrl.u32 %v881, 7
      %v883 = vsub.s32 0, %v882
      %v884 = vrot.slane %v692, %v883
      %v885 = vlaneseq
      %v886 = vshrl.u32 %v885, 7
      %v887 = vsub.s32 0, %v886
      %v888 = vrot.slane %v695, %v887
      %v889 = vmul.f32 %v875, %v884
      %v890 = vmul.f32 %v875, %v888
      %v891 = vmul.f32 %v879, %v884
      %v892 = vmul.f32 %v879, %v888
      %v893 = vadd.f32 %v869, %v889
      %v894 = vadd.f32 %v870, %v890
      %v895 = vadd.f32 %v871, %v891
      %v896 = vadd.f32 %v872, %v892
      %897 = vset.pattern.permute.xlu0 8
      %898 = vperm.xlu0 %897, %v707
      %v899 = vpop.permute.xlu0 %898
      %901 = vset.pattern.permute.xlu0 8
      %902 = vperm.xlu0 %901, %v708
      %v903 = vpop.permute.xlu0 %902
      %v905 = vlaneseq
      %v906 = vshrl.u32 %v905, 7
      %v907 = vsub.s32 0, %v906
      %v908 = vrot.slane %v705, %v907
      %v909 = vlaneseq
      %v910 = vshrl.u32 %v909, 7
      %v911 = vsub.s32 0, %v910
      %v912 = vrot.slane %v706, %v911
      %v913 = vmul.f32 %v899, %v908
      %v914 = vmul.f32 %v899, %v912
      %v915 = vmul.f32 %v903, %v908
      %v916 = vmul.f32 %v903, %v912
      %v917 = vadd.f32 %v893, %v913
      %v918 = vadd.f32 %v894, %v914
      %v919 = vadd.f32 %v895, %v915
      %v920 = vadd.f32 %v896, %v916
      %v922 = vsel %vm638, %v577, 0
      %v925 = vsel %vm638, %v578, 0
      %927 = vmatprep.subr.mxu0 %v918
      %928 = vmatpush1.msra.mxu0 %v917
      %929 = vmatprep.subr.mxu0 %v920
      %930 = vmatpush1.msra.mxu0 %v919
      %931 = vmatprep.subr.mxu0 0.0
      %932 = vmatpush1.msra.mxu0 0.0
      %933 = vmatprep.subr.mxu0 0.0
      %934 = vmatpush1.msra.mxu0 0.0
      %935 = vmatprep.subr.mxu0 0.0
      %936 = vmatpush1.msra.mxu0 0.0
      %937 = vmatprep.subr.mxu0 0.0
      %938 = vmatpush1.msra.mxu0 0.0
      %939 = vmatprep.subr.mxu0 0.0
      %940 = vmatpush1.msra.mxu0 0.0
      %941 = vmatprep.subr.mxu0 0.0
      %942 = vmatpush1.msra.mxu0 0.0
      %943 = vmatprep.subr.mxu0 0.0
      %944 = vmatpush1.msra.mxu0 0.0
      %945 = vmatprep.subr.mxu0 0.0
      %946 = vmatpush1.msra.mxu0 0.0
      %947 = vmatprep.subr.mxu0 0.0
      %948 = vmatpush1.msra.mxu0 0.0
      %949 = vmatprep.subr.mxu0 0.0
      %950 = vmatpush1.msra.mxu0 0.0
      %951 = vmatprep.subr.mxu0 0.0
      %952 = vmatpush1.msra.mxu0 0.0
      %953 = vmatprep.subr.mxu0 0.0
      %954 = vmatpush1.msra.mxu0 0.0
      %955 = vmatprep.subr.mxu0 0.0
      %956 = vmatpush1.msra.mxu0 0.0
      %957 = vmatprep.subr.mxu0 0.0
      %958 = vmatpush1.msra.mxu0 0.0
      %959 = vmatprep.subr.mxu0 0.0
      %960 = vmatpush1.msra.mxu0 0.0
      %961 = vmatprep.subr.mxu0 0.0
      %962 = vmatpush1.msra.mxu0 0.0
      %963 = vmatprep.subr.mxu0 0.0
      %964 = vmatpush1.msra.mxu0 0.0
      %965 = vmatprep.subr.mxu0 0.0
      %966 = vmatpush1.msra.mxu0 0.0
      %967 = vmatprep.subr.mxu0 0.0
      %968 = vmatpush1.msra.mxu0 0.0
      %969 = vmatprep.subr.mxu0 0.0
      %970 = vmatpush1.msra.mxu0 0.0
      %971 = vmatprep.subr.mxu0 0.0
      %972 = vmatpush1.msra.mxu0 0.0
      %973 = vmatprep.subr.mxu0 0.0
      %974 = vmatpush1.msra.mxu0 0.0
      %975 = vmatprep.subr.mxu0 0.0
      %976 = vmatpush1.msra.mxu0 0.0
      %977 = vmatprep.subr.mxu0 0.0
      %978 = vmatpush1.msra.mxu0 0.0
      %979 = vmatprep.subr.mxu0 0.0
      %980 = vmatpush1.msra.mxu0 0.0
      %981 = vmatprep.subr.mxu0 0.0
      %982 = vmatpush1.msra.mxu0 0.0
      %983 = vmatprep.subr.mxu0 0.0
      %984 = vmatpush1.msra.mxu0 0.0
      %985 = vmatprep.subr.mxu0 0.0
      %986 = vmatpush1.msra.mxu0 0.0
      %987 = vmatprep.subr.mxu0 0.0
      %988 = vmatpush1.msra.mxu0 0.0
      %989 = vmatprep.subr.mxu0 0.0
      %990 = vmatpush1.msra.mxu0 0.0
      %991 = vmatprep.mubr.f32.mxu0 0.0
      %992 = vmatmul.mubr.f32.gmra.mrb[0].mxu0 %v922
      %v993 = vpop.f32.mrb[0].mxu0
      %v994 = vadd.f32 0.0, %v993
      %v995 = vpop.f32.mrb[0].mxu0
      %v996 = vadd.f32 0.0, %v995
      %997 = vmatprep.mubr.f32.mxu0 0.0
      %998 = vmatmul.mubr.f32.gmra.mrb[0].mxu0 %v925
      %v999 = vpop.f32.mrb[0].mxu0
      %v1000 = vadd.f32 0.0, %v999
      %v1001 = vpop.f32.mrb[0].mxu0
      %v1002 = vadd.f32 0.0, %v1001
      %1003 = vdwg.mxu0
      %v1004 = vadd.f32 %v994, %v996
      %1005 = vadd.xlane.f32.xlu0 %v1004
      %v1006 = vpop.xlane.xlu0 %1005
      %v1007 = vadd.f32 %v1000, %v1002
      %1008 = vadd.xlane.f32.xlu0 %v1007
      %v1009 = vpop.xlane.xlu0 %1008
      %v1010 = vmul.f32 %v917, %v917
      %v1011 = vmul.f32 %v918, %v918
      %v1012 = vmul.f32 %v919, %v919
      %v1013 = vmul.f32 %v920, %v920
      %1014 = vmatprep.subr.mxu0 %v1011
      %1015 = vmatpush1.msra.mxu0 %v1010
      %1016 = vmatprep.subr.mxu0 %v1013
      %1017 = vmatpush1.msra.mxu0 %v1012
      %1018 = vmatprep.subr.mxu0 0.0
      %1019 = vmatpush1.msra.mxu0 0.0
      %1020 = vmatprep.subr.mxu0 0.0
      %1021 = vmatpush1.msra.mxu0 0.0
      %1022 = vmatprep.subr.mxu0 0.0
      %1023 = vmatpush1.msra.mxu0 0.0
      %1024 = vmatprep.subr.mxu0 0.0
      %1025 = vmatpush1.msra.mxu0 0.0
      %1026 = vmatprep.subr.mxu0 0.0
      %1027 = vmatpush1.msra.mxu0 0.0
      %1028 = vmatprep.subr.mxu0 0.0
      %1029 = vmatpush1.msra.mxu0 0.0
      %1030 = vmatprep.subr.mxu0 0.0
      %1031 = vmatpush1.msra.mxu0 0.0
      %1032 = vmatprep.subr.mxu0 0.0
      %1033 = vmatpush1.msra.mxu0 0.0
      %1034 = vmatprep.subr.mxu0 0.0
      %1035 = vmatpush1.msra.mxu0 0.0
      %1036 = vmatprep.subr.mxu0 0.0
      %1037 = vmatpush1.msra.mxu0 0.0
      %1038 = vmatprep.subr.mxu0 0.0
      %1039 = vmatpush1.msra.mxu0 0.0
      %1040 = vmatprep.subr.mxu0 0.0
      %1041 = vmatpush1.msra.mxu0 0.0
      %1042 = vmatprep.subr.mxu0 0.0
      %1043 = vmatpush1.msra.mxu0 0.0
      %1044 = vmatprep.subr.mxu0 0.0
      %1045 = vmatpush1.msra.mxu0 0.0
      %1046 = vmatprep.subr.mxu0 0.0
      %1047 = vmatpush1.msra.mxu0 0.0
      %1048 = vmatprep.subr.mxu0 0.0
      %1049 = vmatpush1.msra.mxu0 0.0
      %1050 = vmatprep.subr.mxu0 0.0
      %1051 = vmatpush1.msra.mxu0 0.0
      %1052 = vmatprep.subr.mxu0 0.0
      %1053 = vmatpush1.msra.mxu0 0.0
      %1054 = vmatprep.subr.mxu0 0.0
      %1055 = vmatpush1.msra.mxu0 0.0
      %1056 = vmatprep.subr.mxu0 0.0
      %1057 = vmatpush1.msra.mxu0 0.0
      %1058 = vmatprep.subr.mxu0 0.0
      %1059 = vmatpush1.msra.mxu0 0.0
      %1060 = vmatprep.subr.mxu0 0.0
      %1061 = vmatpush1.msra.mxu0 0.0
      %1062 = vmatprep.subr.mxu0 0.0
      %1063 = vmatpush1.msra.mxu0 0.0
      %1064 = vmatprep.subr.mxu0 0.0
      %1065 = vmatpush1.msra.mxu0 0.0
      %1066 = vmatprep.subr.mxu0 0.0
      %1067 = vmatpush1.msra.mxu0 0.0
      %1068 = vmatprep.subr.mxu0 0.0
      %1069 = vmatpush1.msra.mxu0 0.0
      %1070 = vmatprep.subr.mxu0 0.0
      %1071 = vmatpush1.msra.mxu0 0.0
      %1072 = vmatprep.subr.mxu0 0.0
      %1073 = vmatpush1.msra.mxu0 0.0
      %1074 = vmatprep.subr.mxu0 0.0
      %1075 = vmatpush1.msra.mxu0 0.0
      %1076 = vmatprep.subr.mxu0 0.0
      %1077 = vmatpush1.msra.mxu0 0.0
      %1078 = vmatprep.mubr.f32.mxu0 0.0
      %1079 = vmatmul.mubr.f32.gmra.mrb[0].mxu0 %v922
      %v1080 = vpop.f32.mrb[0].mxu0
      %v1081 = vadd.f32 0.0, %v1080
      %v1082 = vpop.f32.mrb[0].mxu0
      %v1083 = vadd.f32 0.0, %v1082
      %1084 = vmatprep.mubr.f32.mxu0 0.0
      %1085 = vmatmul.mubr.f32.gmra.mrb[0].mxu0 %v925
      %v1086 = vpop.f32.mrb[0].mxu0
      %v1087 = vadd.f32 0.0, %v1086
      %v1088 = vpop.f32.mrb[0].mxu0
      %v1089 = vadd.f32 0.0, %v1088
      %1090 = vdwg.mxu0
      %v1091 = vadd.f32 %v1081, %v1083
      %1092 = vadd.xlane.f32.xlu0 %v1091
      %v1093 = vpop.xlane.xlu0 %1092
      %v1094 = vadd.f32 %v1087, %v1089
      %1095 = vadd.xlane.f32.xlu0 %v1094
      %v1096 = vpop.xlane.xlu0 %1095
      %v1097 = vmul.f32 %v1006, %v1006
      %v1098 = vmul.f32 %v1009, %v1009
      %v1099 = vsub.f32 %v1093, %v1097
      %v1100 = vsub.f32 %v1096, %v1098
      %v1101 = vmax.f32 %v1099, 0.0
      %v1102 = vmax.f32 %v1100, 0.0
      %v1103 = vadd.f32 %v1101, 1e-05
      %v1104 = vadd.f32 %v1102, 1e-05
      %v1105 = vrsqrt.pop %v1103
      %v1106 = vrsqrt.pop %v1104
      %v1107 = vmul.f32 %v1105, %v579
      %v1108 = vmul.f32 %v1106, %v580
      %v1109 = vmul.f32 %v1006, %v1107
      %v1110 = vmul.f32 %v1009, %v1108
      %v1111 = vsub.f32 %v581, %v1109
      %v1112 = vsub.f32 %v582, %v1110
      %1114 = vset.pattern.permute.xlu0 0
      %1115 = vperm.xlu0 %1114, %v1107
      %v1116 = vpop.permute.xlu0 %1115
      %1119 = vset.pattern.permute.xlu0 0
      %1120 = vperm.xlu0 %1119, %v1108
      %v1121 = vpop.permute.xlu0 %1120
      %v1123 = vmul.f32 %v917, %v1116
      %v1124 = vmul.f32 %v918, %v1116
      %v1125 = vmul.f32 %v919, %v1121
      %v1126 = vmul.f32 %v920, %v1121
      %1128 = vset.pattern.permute.xlu0 0
      %1129 = vperm.xlu0 %1128, %v1111
      %v1130 = vpop.permute.xlu0 %1129
      %1133 = vset.pattern.permute.xlu0 0
      %1134 = vperm.xlu0 %1133, %v1112
      %v1135 = vpop.permute.xlu0 %1134
      %v1137 = vadd.f32 %v1123, %v1130
      %v1138 = vadd.f32 %v1124, %v1130
      %v1139 = vadd.f32 %v1125, %v1135
      %v1140 = vadd.f32 %v1126, %v1135
      %v1141 = vmax.f32 %v1137, 0.0
      %v1142 = vmax.f32 %v1138, 0.0
      %v1143 = vmax.f32 %v1139, 0.0
      %v1144 = vmax.f32 %v1140, 0.0
      %v1145 = vld [vmem:[%s4] sm:$0xff]
      %v1146 = vld [vmem:[%s4 + $0x8] sm:$0xff]
      %v1147 = vld [vmem:[%s5] sm:$0xff]
      %v1148 = vld [vmem:[%s5 + $0x8] sm:$0xff]
      %v1149 = vld [vmem:[%s6] sm:$0xff]
      %v1150 = vld [vmem:[%s6 + $0x8] sm:$0xff]
      %1155 = vrot.lane.b32.xlu0 %v1141, 17
      %v1156 = vpop.permute.xlu0 %1155
      %1157 = vrot.lane.b32.xlu0 %v1142, 17
      %v1158 = vpop.permute.xlu0 %1157
      %1159 = vrot.lane.b32.xlu0 %v1143, 17
      %v1160 = vpop.permute.xlu0 %1159
      %1161 = vrot.lane.b32.xlu0 %v1144, 17
      %v1162 = vpop.permute.xlu0 %1161
      %v1163 = vsel %vm627, %v1156, %v1158
      %v1164 = vsel %vm627, %v1160, %v1162
      %v1169 = vsel %vm627, 0.0, %v1156
      %v1170 = vsel %vm627, 0.0, %v1160
      %v1171 = vsel %vm610, 1, 0
      %v1172 = vsel %vm611, 1, 0
      %vm1173 = vcmp.eq.s32.totalorder %v1171, 1
      %vm1174 = vcmp.eq.s32.totalorder %v1172, 1
      %v1175 = vsel %vm1173, %v1169, 0.0
      %v1176 = vsel %vm1174, %v1163, 0.0
      %v1177 = vsel %vm1173, %v1170, 0.0
      %v1178 = vsel %vm1174, %v1164, 0.0
      %1179 = vrot.lane.b32.xlu0 %v1141, 16
      %v1180 = vpop.permute.xlu0 %1179
      %1181 = vrot.lane.b32.xlu0 %v1142, 16
      %v1182 = vpop.permute.xlu0 %1181
      %1183 = vrot.lane.b32.xlu0 %v1143, 16
      %v1184 = vpop.permute.xlu0 %1183
      %1185 = vrot.lane.b32.xlu0 %v1144, 16
      %v1186 = vpop.permute.xlu0 %1185
      %v1187 = vsel %vm638, %v1180, %v1182
      %v1188 = vsel %vm638, %v1184, %v1186
      %v1193 = vsel %vm638, 0.0, %v1180
      %v1194 = vsel %vm638, 0.0, %v1184
      %1195 = vrot.lane.b32.xlu0 %v1141, 15
      %v1196 = vpop.permute.xlu0 %1195
      %1197 = vrot.lane.b32.xlu0 %v1142, 15
      %v1198 = vpop.permute.xlu0 %1197
      %1199 = vrot.lane.b32.xlu0 %v1143, 15
      %v1200 = vpop.permute.xlu0 %1199
      %1201 = vrot.lane.b32.xlu0 %v1144, 15
      %v1202 = vpop.permute.xlu0 %1201
      %v1203 = vsel %vm647, %v1196, %v1198
      %v1204 = vsel %vm647, %v1200, %v1202
      %v1209 = vsel %vm647, 0.0, %v1196
      %v1210 = vsel %vm647, 0.0, %v1200
      %v1211 = vsel %vm612, 1, 0
      %v1212 = vsel %vm613, 1, 0
      %vm1213 = vcmp.eq.s32.totalorder %v1211, 1
      %vm1214 = vcmp.eq.s32.totalorder %v1212, 1
      %v1215 = vsel %vm1213, %v1209, 0.0
      %v1216 = vsel %vm1214, %v1203, 0.0
      %v1217 = vsel %vm1213, %v1210, 0.0
      %v1218 = vsel %vm1214, %v1204, 0.0
      %1219 = vrot.lane.b32.xlu0 %v1141, 1
      %v1220 = vpop.permute.xlu0 %1219
      %1221 = vrot.lane.b32.xlu0 %v1142, 1
      %v1222 = vpop.permute.xlu0 %1221
      %1223 = vrot.lane.b32.xlu0 %v1143, 1
      %v1224 = vpop.permute.xlu0 %1223
      %1225 = vrot.lane.b32.xlu0 %v1144, 1
      %v1226 = vpop.permute.xlu0 %1225
      %v1227 = vsel %vm658, %v1220, %v1222
      %v1228 = vsel %vm658, %v1224, %v1226
      %v1233 = vsel %vm658, 0.0, %v1220
      %v1234 = vsel %vm658, 0.0, %v1224
      %v1235 = vsel %vm1173, %v1233, 0.0
      %v1236 = vsel %vm1174, %v1227, 0.0
      %v1237 = vsel %vm1173, %v1234, 0.0
      %v1238 = vsel %vm1174, %v1228, 0.0
      %1239 = vrot.lane.b32.xlu0 %v1141, 127
      %v1240 = vpop.permute.xlu0 %1239
      %1241 = vrot.lane.b32.xlu0 %v1142, 127
      %v1242 = vpop.permute.xlu0 %1241
      %1243 = vrot.lane.b32.xlu0 %v1143, 127
      %v1244 = vpop.permute.xlu0 %1243
      %1245 = vrot.lane.b32.xlu0 %v1144, 127
      %v1246 = vpop.permute.xlu0 %1245
      %v1247 = vsel %vm669, %v1240, %v1242
      %v1248 = vsel %vm669, %v1244, %v1246
      %v1253 = vsel %vm669, %v1242, 0.0
      %v1254 = vsel %vm669, %v1246, 0.0
      %v1255 = vsel %vm1213, %v1247, 0.0
      %v1256 = vsel %vm1214, %v1253, 0.0
      %v1257 = vsel %vm1213, %v1248, 0.0
      %v1258 = vsel %vm1214, %v1254, 0.0
      %1259 = vrot.lane.b32.xlu0 %v1141, 113
      %v1260 = vpop.permute.xlu0 %1259
      %1261 = vrot.lane.b32.xlu0 %v1142, 113
      %v1262 = vpop.permute.xlu0 %1261
      %1263 = vrot.lane.b32.xlu0 %v1143, 113
      %v1264 = vpop.permute.xlu0 %1263
      %1265 = vrot.lane.b32.xlu0 %v1144, 113
      %v1266 = vpop.permute.xlu0 %1265
      %v1267 = vsel %vm680, %v1260, %v1262
      %v1268 = vsel %vm680, %v1264, %v1266
      %v1273 = vsel %vm680, %v1262, 0.0
      %v1274 = vsel %vm680, %v1266, 0.0
      %v1275 = vsel %vm1173, %v1267, 0.0
      %v1276 = vsel %vm1174, %v1273, 0.0
      %v1277 = vsel %vm1173, %v1268, 0.0
      %v1278 = vsel %vm1174, %v1274, 0.0
      %1279 = vrot.lane.b32.xlu0 %v1141, 112
      %v1280 = vpop.permute.xlu0 %1279
      %1281 = vrot.lane.b32.xlu0 %v1142, 112
      %v1282 = vpop.permute.xlu0 %1281
      %1283 = vrot.lane.b32.xlu0 %v1143, 112
      %v1284 = vpop.permute.xlu0 %1283
      %1285 = vrot.lane.b32.xlu0 %v1144, 112
      %v1286 = vpop.permute.xlu0 %1285
      %v1287 = vsel %vm691, %v1280, %v1282
      %v1288 = vsel %vm691, %v1284, %v1286
      %v1293 = vsel %vm691, %v1282, 0.0
      %v1294 = vsel %vm691, %v1286, 0.0
      %1295 = vrot.lane.b32.xlu0 %v1141, 111
      %v1296 = vpop.permute.xlu0 %1295
      %1297 = vrot.lane.b32.xlu0 %v1142, 111
      %v1298 = vpop.permute.xlu0 %1297
      %1299 = vrot.lane.b32.xlu0 %v1143, 111
      %v1300 = vpop.permute.xlu0 %1299
      %1301 = vrot.lane.b32.xlu0 %v1144, 111
      %v1302 = vpop.permute.xlu0 %1301
      %v1303 = vsel %vm700, %v1296, %v1298
      %v1304 = vsel %vm700, %v1300, %v1302
      %v1309 = vsel %vm700, %v1298, 0.0
      %v1310 = vsel %vm700, %v1302, 0.0
      %v1311 = vsel %vm1213, %v1303, 0.0
      %v1312 = vsel %vm1214, %v1309, 0.0
      %v1313 = vsel %vm1213, %v1304, 0.0
      %v1314 = vsel %vm1214, %v1310, 0.0
      %v1315 = vpack.c.bf16 %v1177, %v1175
      %v1316 = vpack.c.bf16 %v1178, %v1176
      %v1317 = vpack.c.bf16 %v1194, %v1193
      %v1318 = vpack.c.bf16 %v1188, %v1187
      %v1319 = vpack.c.bf16 %v1217, %v1215
      %v1320 = vpack.c.bf16 %v1218, %v1216
      %v1321 = vpack.c.bf16 %v1237, %v1235
      %v1322 = vpack.c.bf16 %v1238, %v1236
      %v1323 = vpack.c.bf16 %v1143, %v1141
      %v1324 = vpack.c.bf16 %v1144, %v1142
      %v1325 = vpack.c.bf16 %v1257, %v1255
      %v1326 = vpack.c.bf16 %v1258, %v1256
      %v1327 = vpack.c.bf16 %v1277, %v1275
      %v1328 = vpack.c.bf16 %v1278, %v1276
      %v1329 = vpack.c.bf16 %v1288, %v1287
      %v1330 = vpack.c.bf16 %v1294, %v1293
      %v1331 = vpack.c.bf16 %v1313, %v1311
      %v1332 = vpack.c.bf16 %v1314, %v1312
      %v1335 = vunpack.c.l.b16 %v1145
      %v1336 = vunpack.c.h.b16 %v1145
      %v1337 = vunpack.c.l.b16 %v1146
      %v1338 = vunpack.c.h.b16 %v1146
      %v1339 = vpack.c.b16 %v1337, %v1335
      %v1340 = vpack.c.b16 %v1338, %v1336
      %v1343 = vsel %vm638, %v1340, 0
      %1345 = vmatprep.subr.bf16.mxu0 %v1316
      %1346 = vmatpush1.bf16.msra.mxu0 %v1315
      %1347 = vmatprep.subr.bf16.mxu0 %v1318
      %1348 = vmatpush1.bf16.msra.mxu0 %v1317
      %1349 = vmatprep.subr.bf16.mxu0 %v1320
      %1350 = vmatpush1.bf16.msra.mxu0 %v1319
      %1351 = vmatprep.subr.bf16.mxu0 %v1322
      %1352 = vmatpush1.bf16.msra.mxu0 %v1321
      %1353 = vmatprep.subr.bf16.mxu0 %v1324
      %1354 = vmatpush1.bf16.msra.mxu0 %v1323
      %1355 = vmatprep.subr.bf16.mxu0 %v1326
      %1356 = vmatpush1.bf16.msra.mxu0 %v1325
      %1357 = vmatprep.subr.bf16.mxu0 %v1328
      %1358 = vmatpush1.bf16.msra.mxu0 %v1327
      %1359 = vmatprep.subr.bf16.mxu0 %v1330
      %1360 = vmatpush1.bf16.msra.mxu0 %v1329
      %1361 = vmatprep.subr.bf16.mxu0 %v1332
      %1362 = vmatpush1.bf16.msra.mxu0 %v1331
      %1363 = vmatprep.subr.bf16.mxu0 0
      %1364 = vmatpush1.bf16.msra.mxu0 0
      %1365 = vmatprep.subr.bf16.mxu0 0
      %1366 = vmatpush1.bf16.msra.mxu0 0
      %1367 = vmatprep.subr.bf16.mxu0 0
      %1368 = vmatpush1.bf16.msra.mxu0 0
      %1369 = vmatprep.subr.bf16.mxu0 0
      %1370 = vmatpush1.bf16.msra.mxu0 0
      %1371 = vmatprep.subr.bf16.mxu0 0
      %1372 = vmatpush1.bf16.msra.mxu0 0
      %1373 = vmatprep.subr.bf16.mxu0 0
      %1374 = vmatpush1.bf16.msra.mxu0 0
      %1375 = vmatprep.subr.bf16.mxu0 0
      %1376 = vmatpush1.bf16.msra.mxu0 0
      %1377 = vmatprep.mubr.bf16.mxu0 %v1343
      %1378 = vmatmul.mubr.bf16.gmra.mrb[0].mxu0 %v1339
      %v1379 = vpop.f32.mrb[0].mxu0
      %v1380 = vadd.f32 0.0, %v1379
      %v1381 = vpop.f32.mrb[0].mxu0
      %v1382 = vadd.f32 0.0, %v1381
      %v1383 = vpop.f32.mrb[0].mxu0
      %v1384 = vadd.f32 0.0, %v1383
      %v1385 = vpop.f32.mrb[0].mxu0
      %v1386 = vadd.f32 0.0, %v1385
      %1387 = vdwg.mxu0
      %1388 = vmatprep.subr.mxu0 %v1382
      %1389 = vmatpush1.msra.mxu0 %v1380
      %1390 = vmatprep.subr.mxu0 %v1386
      %1391 = vmatpush1.msra.mxu0 %v1384
      %1392 = vmatprep.subr.mxu0 0.0
      %1393 = vmatpush1.msra.mxu0 0.0
      %1394 = vmatprep.subr.mxu0 0.0
      %1395 = vmatpush1.msra.mxu0 0.0
      %1396 = vmatprep.subr.mxu0 0.0
      %1397 = vmatpush1.msra.mxu0 0.0
      %1398 = vmatprep.subr.mxu0 0.0
      %1399 = vmatpush1.msra.mxu0 0.0
      %1400 = vmatprep.subr.mxu0 0.0
      %1401 = vmatpush1.msra.mxu0 0.0
      %1402 = vmatprep.subr.mxu0 0.0
      %1403 = vmatpush1.msra.mxu0 0.0
      %1404 = vmatprep.subr.mxu0 0.0
      %1405 = vmatpush1.msra.mxu0 0.0
      %1406 = vmatprep.subr.mxu0 0.0
      %1407 = vmatpush1.msra.mxu0 0.0
      %1408 = vmatprep.subr.mxu0 0.0
      %1409 = vmatpush1.msra.mxu0 0.0
      %1410 = vmatprep.subr.mxu0 0.0
      %1411 = vmatpush1.msra.mxu0 0.0
      %1412 = vmatprep.subr.mxu0 0.0
      %1413 = vmatpush1.msra.mxu0 0.0
      %1414 = vmatprep.subr.mxu0 0.0
      %1415 = vmatpush1.msra.mxu0 0.0
      %1416 = vmatprep.subr.mxu0 0.0
      %1417 = vmatpush1.msra.mxu0 0.0
      %1418 = vmatprep.subr.mxu0 0.0
      %1419 = vmatpush1.msra.mxu0 0.0
      %1420 = vmatprep.subr.mxu0 0.0
      %1421 = vmatpush1.msra.mxu0 0.0
      %1422 = vmatprep.subr.mxu0 0.0
      %1423 = vmatpush1.msra.mxu0 0.0
      %1424 = vmatprep.subr.mxu0 0.0
      %1425 = vmatpush1.msra.mxu0 0.0
      %1426 = vmatprep.subr.mxu0 0.0
      %1427 = vmatpush1.msra.mxu0 0.0
      %1428 = vmatprep.subr.mxu0 0.0
      %1429 = vmatpush1.msra.mxu0 0.0
      %1430 = vmatprep.subr.mxu0 0.0
      %1431 = vmatpush1.msra.mxu0 0.0
      %1432 = vmatprep.subr.mxu0 0.0
      %1433 = vmatpush1.msra.mxu0 0.0
      %1434 = vmatprep.subr.mxu0 0.0
      %1435 = vmatpush1.msra.mxu0 0.0
      %1436 = vmatprep.subr.mxu0 0.0
      %1437 = vmatpush1.msra.mxu0 0.0
      %1438 = vmatprep.subr.mxu0 0.0
      %1439 = vmatpush1.msra.mxu0 0.0
      %1440 = vmatprep.subr.mxu0 0.0
      %1441 = vmatpush1.msra.mxu0 0.0
      %1442 = vmatprep.subr.mxu0 0.0
      %1443 = vmatpush1.msra.mxu0 0.0
      %1444 = vmatprep.subr.mxu0 0.0
      %1445 = vmatpush1.msra.mxu0 0.0
      %1446 = vmatprep.subr.mxu0 0.0
      %1447 = vmatpush1.msra.mxu0 0.0
      %1448 = vmatprep.subr.mxu0 0.0
      %1449 = vmatpush1.msra.mxu0 0.0
      %1450 = vmatprep.subr.mxu0 0.0
      %1451 = vmatpush1.msra.mxu0 0.0
      %1452 = vmatprep.mubr.f32.mxu0 0.0
      %1453 = vmatmul.mubr.f32.gmra.mrb[0].mxu0 %v922
      %v1454 = vpop.f32.mrb[0].mxu0
      %v1455 = vadd.f32 0.0, %v1454
      %v1456 = vpop.f32.mrb[0].mxu0
      %v1457 = vadd.f32 0.0, %v1456
      %1458 = vmatprep.mubr.f32.mxu0 0.0
      %1459 = vmatmul.mubr.f32.gmra.mrb[0].mxu0 %v925
      %v1460 = vpop.f32.mrb[0].mxu0
      %v1461 = vadd.f32 0.0, %v1460
      %v1462 = vpop.f32.mrb[0].mxu0
      %v1463 = vadd.f32 0.0, %v1462
      %1464 = vdwg.mxu0
      %v1465 = vadd.f32 %v1455, %v1457
      %1466 = vadd.xlane.f32.xlu0 %v1465
      %v1467 = vpop.xlane.xlu0 %1466
      %v1468 = vadd.f32 %v1461, %v1463
      %1469 = vadd.xlane.f32.xlu0 %v1468
      %v1470 = vpop.xlane.xlu0 %1469
      %v1471 = vmul.f32 %v1380, %v1380
      %v1472 = vmul.f32 %v1382, %v1382
      %v1473 = vmul.f32 %v1384, %v1384
      %v1474 = vmul.f32 %v1386, %v1386
      %1475 = vmatprep.subr.mxu0 %v1472
      %1476 = vmatpush1.msra.mxu0 %v1471
      %1477 = vmatprep.subr.mxu0 %v1474
      %1478 = vmatpush1.msra.mxu0 %v1473
      %1479 = vmatprep.subr.mxu0 0.0
      %1480 = vmatpush1.msra.mxu0 0.0
      %1481 = vmatprep.subr.mxu0 0.0
      %1482 = vmatpush1.msra.mxu0 0.0
      %1483 = vmatprep.subr.mxu0 0.0
      %1484 = vmatpush1.msra.mxu0 0.0
      %1485 = vmatprep.subr.mxu0 0.0
      %1486 = vmatpush1.msra.mxu0 0.0
      %1487 = vmatprep.subr.mxu0 0.0
      %1488 = vmatpush1.msra.mxu0 0.0
      %1489 = vmatprep.subr.mxu0 0.0
      %1490 = vmatpush1.msra.mxu0 0.0
      %1491 = vmatprep.subr.mxu0 0.0
      %1492 = vmatpush1.msra.mxu0 0.0
      %1493 = vmatprep.subr.mxu0 0.0
      %1494 = vmatpush1.msra.mxu0 0.0
      %1495 = vmatprep.subr.mxu0 0.0
      %1496 = vmatpush1.msra.mxu0 0.0
      %1497 = vmatprep.subr.mxu0 0.0
      %1498 = vmatpush1.msra.mxu0 0.0
      %1499 = vmatprep.subr.mxu0 0.0
      %1500 = vmatpush1.msra.mxu0 0.0
      %1501 = vmatprep.subr.mxu0 0.0
      %1502 = vmatpush1.msra.mxu0 0.0
      %1503 = vmatprep.subr.mxu0 0.0
      %1504 = vmatpush1.msra.mxu0 0.0
      %1505 = vmatprep.subr.mxu0 0.0
      %1506 = vmatpush1.msra.mxu0 0.0
      %1507 = vmatprep.subr.mxu0 0.0
      %1508 = vmatpush1.msra.mxu0 0.0
      %1509 = vmatprep.subr.mxu0 0.0
      %1510 = vmatpush1.msra.mxu0 0.0
      %1511 = vmatprep.subr.mxu0 0.0
      %1512 = vmatpush1.msra.mxu0 0.0
      %1513 = vmatprep.subr.mxu0 0.0
      %1514 = vmatpush1.msra.mxu0 0.0
      %1515 = vmatprep.subr.mxu0 0.0
      %1516 = vmatpush1.msra.mxu0 0.0
      %1517 = vmatprep.subr.mxu0 0.0
      %1518 = vmatpush1.msra.mxu0 0.0
      %1519 = vmatprep.subr.mxu0 0.0
      %1520 = vmatpush1.msra.mxu0 0.0
      %1521 = vmatprep.subr.mxu0 0.0
      %1522 = vmatpush1.msra.mxu0 0.0
      %1523 = vmatprep.subr.mxu0 0.0
      %1524 = vmatpush1.msra.mxu0 0.0
      %1525 = vmatprep.subr.mxu0 0.0
      %1526 = vmatpush1.msra.mxu0 0.0
      %1527 = vmatprep.subr.mxu0 0.0
      %1528 = vmatpush1.msra.mxu0 0.0
      %1529 = vmatprep.subr.mxu0 0.0
      %1530 = vmatpush1.msra.mxu0 0.0
      %1531 = vmatprep.subr.mxu0 0.0
      %1532 = vmatpush1.msra.mxu0 0.0
      %1533 = vmatprep.subr.mxu0 0.0
      %1534 = vmatpush1.msra.mxu0 0.0
      %1535 = vmatprep.subr.mxu0 0.0
      %1536 = vmatpush1.msra.mxu0 0.0
      %1537 = vmatprep.subr.mxu0 0.0
      %1538 = vmatpush1.msra.mxu0 0.0
      %1539 = vmatprep.mubr.f32.mxu0 0.0
      %1540 = vmatmul.mubr.f32.gmra.mrb[0].mxu0 %v922
      %v1541 = vpop.f32.mrb[0].mxu0
      %v1542 = vadd.f32 0.0, %v1541
      %v1543 = vpop.f32.mrb[0].mxu0
      %v1544 = vadd.f32 0.0, %v1543
      %1545 = vmatprep.mubr.f32.mxu0 0.0
      %1546 = vmatmul.mubr.f32.gmra.mrb[0].mxu0 %v925
      %v1547 = vpop.f32.mrb[0].mxu0
      %v1548 = vadd.f32 0.0, %v1547
      %v1549 = vpop.f32.mrb[0].mxu0
      %v1550 = vadd.f32 0.0, %v1549
      %1551 = vdwg.mxu0
      %v1552 = vadd.f32 %v1542, %v1544
      %1553 = vadd.xlane.f32.xlu0 %v1552
      %v1554 = vpop.xlane.xlu0 %1553
      %v1555 = vadd.f32 %v1548, %v1550
      %1556 = vadd.xlane.f32.xlu0 %v1555
      %v1557 = vpop.xlane.xlu0 %1556
      %v1558 = vmul.f32 %v1467, %v1467
      %v1559 = vmul.f32 %v1470, %v1470
      %v1560 = vsub.f32 %v1554, %v1558
      %v1561 = vsub.f32 %v1557, %v1559
      %v1562 = vmax.f32 %v1560, 0.0
      %v1563 = vmax.f32 %v1561, 0.0
      %v1564 = vadd.f32 %v1562, 1e-05
      %v1565 = vadd.f32 %v1563, 1e-05
      %v1566 = vrsqrt.pop %v1564
      %v1567 = vrsqrt.pop %v1565
      %v1568 = vmul.f32 %v1566, %v1147
      %v1569 = vmul.f32 %v1567, %v1148
      %v1570 = vmul.f32 %v1467, %v1568
      %v1571 = vmul.f32 %v1470, %v1569
      %v1572 = vsub.f32 %v1149, %v1570
      %v1573 = vsub.f32 %v1150, %v1571
      %1575 = vset.pattern.permute.xlu0 0
      %1576 = vperm.xlu0 %1575, %v1568
      %v1577 = vpop.permute.xlu0 %1576
      %1580 = vset.pattern.permute.xlu0 0
      %1581 = vperm.xlu0 %1580, %v1569
      %v1582 = vpop.permute.xlu0 %1581
      %v1584 = vmul.f32 %v1380, %v1577
      %v1585 = vmul.f32 %v1382, %v1577
      %v1586 = vmul.f32 %v1384, %v1582
      %v1587 = vmul.f32 %v1386, %v1582
      %1589 = vset.pattern.permute.xlu0 0
      %1590 = vperm.xlu0 %1589, %v1572
      %v1591 = vpop.permute.xlu0 %1590
      %1594 = vset.pattern.permute.xlu0 0
      %1595 = vperm.xlu0 %1594, %v1573
      %v1596 = vpop.permute.xlu0 %1595
      %v1598 = vadd.f32 %v1584, %v1591
      %v1599 = vadd.f32 %v1585, %v1591
      %v1600 = vadd.f32 %v1586, %v1596
      %v1601 = vadd.f32 %v1587, %v1596
      %v1602 = vmax.f32 %v1598, 0.0
      %v1603 = vmax.f32 %v1599, 0.0
      %v1604 = vmax.f32 %v1600, 0.0
      %v1605 = vmax.f32 %v1601, 0.0
      %v1606 = vld [vmem:[%s8] sm:$0xff]
      %v1607 = vld [vmem:[%s8 + $0x8] sm:$0xff]
      %v1608 = vld [vmem:[%s8 + $0x10] sm:$0xff]
      %v1609 = vld [vmem:[%s8 + $0x18] sm:$0xff]
      %v1610 = vld [vmem:[%s8 + $0x20] sm:$0xff]
      %v1611 = vld [vmem:[%s8 + $0x28] sm:$0xff]
      %v1612 = vld [vmem:[%s8 + $0x30] sm:$0xff]
      %v1613 = vld [vmem:[%s8 + $0x38] sm:$0xff]
      %v1614 = vld [vmem:[%s8 + $0x40] sm:$0xff]
      %v1615 = vld [vmem:[%s8 + $0x48] sm:$0xff]
      %v1616 = vld [vmem:[%s8 + $0x50] sm:$0xff]
      %v1617 = vld [vmem:[%s8 + $0x58] sm:$0xff]
      %v1618 = vld [vmem:[%s8 + $0x60] sm:$0xff]
      %v1619 = vld [vmem:[%s8 + $0x68] sm:$0xff]
      %v1620 = vld [vmem:[%s8 + $0x70] sm:$0xff]
      %v1621 = vld [vmem:[%s8 + $0x78] sm:$0xff]
      %v1622 = vld [vmem:[%s8 + $0x80] sm:$0xff]
      %v1623 = vld [vmem:[%s8 + $0x88] sm:$0xff]
      %v1624 = vld [vmem:[%s8 + $0x90] sm:$0xff]
      %v1625 = vld [vmem:[%s8 + $0x98] sm:$0xff]
      %v1626 = vld [vmem:[%s8 + $0xa0] sm:$0xff]
      %v1627 = vld [vmem:[%s8 + $0xa8] sm:$0xff]
      %v1628 = vld [vmem:[%s8 + $0xb0] sm:$0xff]
      %v1629 = vld [vmem:[%s8 + $0xb8] sm:$0xff]
      %v1630 = vld [vmem:[%s8 + $0xc0] sm:$0xff]
      %v1631 = vld [vmem:[%s8 + $0xc8] sm:$0xff]
      %v1632 = vld [vmem:[%s8 + $0xd0] sm:$0xff]
      %v1633 = vld [vmem:[%s8 + $0xd8] sm:$0xff]
      %v1634 = vld [vmem:[%s8 + $0xe0] sm:$0xff]
      %v1635 = vld [vmem:[%s8 + $0xe8] sm:$0xff]
      %v1636 = vld [vmem:[%s8 + $0xf0] sm:$0xff]
      %v1637 = vld [vmem:[%s8 + $0xf8] sm:$0xff]
      %1642 = vrot.lane.b32.xlu0 %v1602, 127
      %v1643 = vpop.permute.xlu0 %1642
      %1644 = vrot.lane.b32.xlu0 %v1603, 127
      %v1645 = vpop.permute.xlu0 %1644
      %1646 = vrot.lane.b32.xlu0 %v1604, 127
      %v1647 = vpop.permute.xlu0 %1646
      %1648 = vrot.lane.b32.xlu0 %v1605, 127
      %v1649 = vpop.permute.xlu0 %1648
      %v1650 = vsel %vm669, %v1643, %v1645
      %v1651 = vsel %vm669, %v1647, %v1649
      %v1656 = vsel %vm669, %v1645, 0.0
      %v1657 = vsel %vm669, %v1649, 0.0
      %v1658 = vmax.f32 %v1602, %v1650
      %v1659 = vmax.f32 %v1603, %v1656
      %v1660 = vmax.f32 %v1604, %v1651
      %v1661 = vmax.f32 %v1605, %v1657
      %1666 = vrot.lane.b32.xlu0 %v1658, 112
      %v1667 = vpop.permute.xlu0 %1666
      %1668 = vrot.lane.b32.xlu0 %v1659, 112
      %v1669 = vpop.permute.xlu0 %1668
      %1670 = vrot.lane.b32.xlu0 %v1660, 112
      %v1671 = vpop.permute.xlu0 %1670
      %1672 = vrot.lane.b32.xlu0 %v1661, 112
      %v1673 = vpop.permute.xlu0 %1672
      %v1674 = vsel %vm691, %v1667, %v1669
      %v1675 = vsel %vm691, %v1671, %v1673
      %v1680 = vsel %vm691, %v1669, 0.0
      %v1681 = vsel %vm691, %v1673, 0.0
      %v1682 = vmax.f32 %v1658, %v1674
      %v1683 = vmax.f32 %v1659, %v1680
      %v1684 = vmax.f32 %v1660, %v1675
      %v1685 = vmax.f32 %v1661, %v1681
      %1686 = vmatprep.subr.mxu0 0.0
      %1687 = vmatpush1.msra.mxu0 %v1606
      %1688 = vmatprep.subr.mxu0 0.0
      %1689 = vmatpush1.msra.mxu0 %v1607
      %1690 = vmatprep.subr.mxu0 0.0
      %1691 = vmatpush1.msra.mxu0 %v1608
      %1692 = vmatprep.subr.mxu0 0.0
      %1693 = vmatpush1.msra.mxu0 %v1609
      %1694 = vmatprep.subr.mxu0 0.0
      %1695 = vmatpush1.msra.mxu0 %v1610
      %1696 = vmatprep.subr.mxu0 0.0
      %1697 = vmatpush1.msra.mxu0 %v1611
      %1698 = vmatprep.subr.mxu0 0.0
      %1699 = vmatpush1.msra.mxu0 %v1612
      %1700 = vmatprep.subr.mxu0 0.0
      %1701 = vmatpush1.msra.mxu0 %v1613
      %1702 = vmatprep.subr.mxu0 0.0
      %1703 = vmatpush1.msra.mxu0 %v1614
      %1704 = vmatprep.subr.mxu0 0.0
      %1705 = vmatpush1.msra.mxu0 %v1615
      %1706 = vmatprep.subr.mxu0 0.0
      %1707 = vmatpush1.msra.mxu0 %v1616
      %1708 = vmatprep.subr.mxu0 0.0
      %1709 = vmatpush1.msra.mxu0 %v1617
      %1710 = vmatprep.subr.mxu0 0.0
      %1711 = vmatpush1.msra.mxu0 %v1618
      %1712 = vmatprep.subr.mxu0 0.0
      %1713 = vmatpush1.msra.mxu0 %v1619
      %1714 = vmatprep.subr.mxu0 0.0
      %1715 = vmatpush1.msra.mxu0 %v1620
      %1716 = vmatprep.subr.mxu0 0.0
      %1717 = vmatpush1.msra.mxu0 %v1621
      %1718 = vmatprep.subr.mxu0 0.0
      %1719 = vmatpush1.msra.mxu0 %v1622
      %1720 = vmatprep.subr.mxu0 0.0
      %1721 = vmatpush1.msra.mxu0 %v1623
      %1722 = vmatprep.subr.mxu0 0.0
      %1723 = vmatpush1.msra.mxu0 %v1624
      %1724 = vmatprep.subr.mxu0 0.0
      %1725 = vmatpush1.msra.mxu0 %v1625
      %1726 = vmatprep.subr.mxu0 0.0
      %1727 = vmatpush1.msra.mxu0 %v1626
      %1728 = vmatprep.subr.mxu0 0.0
      %1729 = vmatpush1.msra.mxu0 %v1627
      %1730 = vmatprep.subr.mxu0 0.0
      %1731 = vmatpush1.msra.mxu0 %v1628
      %1732 = vmatprep.subr.mxu0 0.0
      %1733 = vmatpush1.msra.mxu0 %v1629
      %1734 = vmatprep.subr.mxu0 0.0
      %1735 = vmatpush1.msra.mxu0 %v1630
      %1736 = vmatprep.subr.mxu0 0.0
      %1737 = vmatpush1.msra.mxu0 %v1631
      %1738 = vmatprep.subr.mxu0 0.0
      %1739 = vmatpush1.msra.mxu0 %v1632
      %1740 = vmatprep.subr.mxu0 0.0
      %1741 = vmatpush1.msra.mxu0 %v1633
      %1742 = vmatprep.subr.mxu0 0.0
      %1743 = vmatpush1.msra.mxu0 %v1634
      %1744 = vmatprep.subr.mxu0 0.0
      %1745 = vmatpush1.msra.mxu0 %v1635
      %1746 = vmatprep.subr.mxu0 0.0
      %1747 = vmatpush1.msra.mxu0 %v1636
      %1748 = vmatprep.subr.mxu0 0.0
      %1749 = vmatpush1.msra.mxu0 %v1637
      %1750 = vmatprep.mubr.f32.mxu0 %v1683
      %1751 = vmatmul.mubr.f32.gmra.mrb[0].mxu0 %v1682
      %v1752 = vpop.f32.mrb[0].mxu0
      %v1753 = vadd.f32 0.0, %v1752
      %v1754 = vpop.f32.mrb[0].mxu0
      %1755 = vmatprep.mubr.f32.mxu0 %v1685
      %1756 = vmatmul.mubr.f32.gmra.mrb[0].mxu0 %v1684
      %v1757 = vpop.f32.mrb[0].mxu0
      %v1758 = vadd.f32 0.0, %v1757
      %v1759 = vpop.f32.mrb[0].mxu0
      %1760 = vdwg.mxu0
      %v1761 = vld [vmem:[%s9] sm:$0xff]
      %v1762 = vld [vmem:[%s9 + $0x8] sm:$0xff]
      %v1763 = vld [vmem:[%s9 + $0x10] sm:$0xff]
      %v1764 = vld [vmem:[%s9 + $0x18] sm:$0xff]
      %v1765 = vld [vmem:[%s15] sm:$0xff]
      %v1766 = vld [vmem:[%s15 + $0x8] sm:$0xff]
      %v1767 = vld [vmem:[%s15 + $0x10] sm:$0xff]
      %v1768 = vld [vmem:[%s15 + $0x18] sm:$0xff]
      %v1769 = vld [vmem:[%s10] sm:$0xff]
      %v1770 = vld [vmem:[%s10 + $0x8] sm:$0xff]
      %v1771 = vld [vmem:[%s10 + $0x10] sm:$0xff]
      %v1772 = vld [vmem:[%s10 + $0x18] sm:$0xff]
      %v1773 = vld [vmem:[%s11] sm:$0xff]
      %v1774 = vld [vmem:[%s11 + $0x8] sm:$0xff]
      %v1775 = vld [vmem:[%s11 + $0x10] sm:$0xff]
      %v1776 = vld [vmem:[%s11 + $0x18] sm:$0xff]
      %vm1777 = vcmp.lt.s32.totalorder %v584, 0
      %v1778 = vsub.s32 0, %v584
      %v1779 = vsel %vm1777, %v1778, %v584
      %v1780 = vshrl.u32 %v1779, 3
      %v1781 = vand.u32 %v1779, 7
      %v1782 = vsub.s32 0, %v1781
      %v1783 = vsel %vm1777, %v1782, %v1781
      %vm1784 = vcmp.ne.s32.totalorder %v1783, 0
      %vm1785 = vcmp.lt.s32.totalorder %v1783, 0
      %vm1786 = vmand %vm1785, %vm1784
      %v1787 = vadd.s32 %v1783, 8
      %v1788 = vsel %vm1786, %v1787, %v1783
      %vm1789 = vcmp.ge.s32.totalorder %v1788, 1
      %vm1790 = vcmp.lt.s32.totalorder %v1788, 7
      %1793 = vrot.lane.b32.xlu0 %v1753, 9
      %v1794 = vpop.permute.xlu0 %1793
      %1795 = vrot.lane.b32.xlu0 %v1758, 9
      %v1796 = vpop.permute.xlu0 %1795
      %vm1799 = vcmask 72704
      %v1800 = vsel %vm1799, 0.0, %v1794
      %v1801 = vsel %vm1799, 0.0, %v1796
      %v1802 = vsel %vm1789, 1, 0
      %vm1803 = vcmp.eq.s32.totalorder %v1802, 1
      %v1804 = vsel %vm1803, %v1800, 0.0
      %v1805 = vsel %vm1803, %v1801, 0.0
      %1806 = vrot.lane.b32.xlu0 %v1753, 8
      %v1807 = vpop.permute.xlu0 %1806
      %1808 = vrot.lane.b32.xlu0 %v1758, 8
      %v1809 = vpop.permute.xlu0 %1808
      %vm1812 = vcmask 64512
      %v1813 = vsel %vm1812, 0.0, %v1807
      %v1814 = vsel %vm1812, 0.0, %v1809
      %1815 = vrot.lane.b32.xlu0 %v1753, 7
      %v1816 = vpop.permute.xlu0 %1815
      %1817 = vrot.lane.b32.xlu0 %v1758, 7
      %v1818 = vpop.permute.xlu0 %1817
      %vm1821 = vcmask 56320
      %v1822 = vsel %vm1821, 0.0, %v1816
      %v1823 = vsel %vm1821, 0.0, %v1818
      %v1824 = vsel %vm1790, 1, 0
      %vm1825 = vcmp.eq.s32.totalorder %v1824, 1
      %v1826 = vsel %vm1825, %v1822, 0.0
      %v1827 = vsel %vm1825, %v1823, 0.0
      %1828 = vrot.lane.b32.xlu0 %v1753, 1
      %v1829 = vpop.permute.xlu0 %1828
      %1830 = vrot.lane.b32.xlu0 %v1758, 1
      %v1831 = vpop.permute.xlu0 %1830
      %v1834 = vsel %vm658, 0.0, %v1829
      %v1835 = vsel %vm658, 0.0, %v1831
      %v1836 = vsel %vm1803, %v1834, 0.0
      %v1837 = vsel %vm1803, %v1835, 0.0
      %1838 = vrot.lane.b32.xlu0 %v1753, 127
      %v1839 = vpop.permute.xlu0 %1838
      %1840 = vrot.lane.b32.xlu0 %v1758, 127
      %v1841 = vpop.permute.xlu0 %1840
      %vm1844 = vcmask 515072
      %v1845 = vsel %vm1844, %v1839, 0.0
      %v1846 = vsel %vm1844, %v1841, 0.0
      %v1847 = vsel %vm1825, %v1845, 0.0
      %v1848 = vsel %vm1825, %v1846, 0.0
      %1849 = vrot.lane.b32.xlu0 %v1753, 121
      %v1850 = vpop.permute.xlu0 %1849
      %1851 = vrot.lane.b32.xlu0 %v1758, 121
      %v1852 = vpop.permute.xlu0 %1851
      %vm1855 = vcmask 465920
      %v1856 = vsel %vm1855, %v1850, 0.0
      %v1857 = vsel %vm1855, %v1852, 0.0
      %v1858 = vsel %vm1803, %v1856, 0.0
      %v1859 = vsel %vm1803, %v1857, 0.0
      %1860 = vrot.lane.b32.xlu0 %v1753, 120
      %v1861 = vpop.permute.xlu0 %1860
      %1862 = vrot.lane.b32.xlu0 %v1758, 120
      %v1863 = vpop.permute.xlu0 %1862
      %vm1866 = vcmask 457728
      %v1867 = vsel %vm1866, %v1861, 0.0
      %v1868 = vsel %vm1866, %v1863, 0.0
      %1869 = vrot.lane.b32.xlu0 %v1753, 119
      %v1870 = vpop.permute.xlu0 %1869
      %1871 = vrot.lane.b32.xlu0 %v1758, 119
      %v1872 = vpop.permute.xlu0 %1871
      %vm1875 = vcmask 449536
      %v1876 = vsel %vm1875, %v1870, 0.0
      %v1877 = vsel %vm1875, %v1872, 0.0
      %v1878 = vsel %vm1825, %v1876, 0.0
      %v1879 = vsel %vm1825, %v1877, 0.0
      %v1880 = vpack.c.bf16 %v1805, %v1804
      %v1881 = vpack.c.bf16 %v1814, %v1813
      %v1882 = vpack.c.bf16 %v1827, %v1826
      %v1883 = vpack.c.bf16 %v1837, %v1836
      %v1884 = vpack.c.bf16 %v1758, %v1753
      %v1885 = vpack.c.bf16 %v1848, %v1847
      %v1886 = vpack.c.bf16 %v1859, %v1858
      %v1887 = vpack.c.bf16 %v1868, %v1867
      %v1888 = vpack.c.bf16 %v1879, %v1878
      %v1893 = vunpack.c.l.b16 %v1761
      %v1894 = vunpack.c.h.b16 %v1761
      %v1895 = vunpack.c.l.b16 %v1762
      %v1896 = vunpack.c.h.b16 %v1762
      %v1897 = vunpack.c.l.b16 %v1763
      %v1898 = vunpack.c.h.b16 %v1763
      %v1899 = vunpack.c.l.b16 %v1764
      %v1900 = vunpack.c.h.b16 %v1764
      %v1901 = vpack.c.b16 %v1895, %v1893
      %v1902 = vpack.c.b16 %v1896, %v1894
      %v1903 = vpack.c.b16 %v1899, %v1897
      %v1904 = vpack.c.b16 %v1900, %v1898
      %v1908 = vsel %vm638, %v1902, 0
      %v1911 = vsel %vm638, %v1904, 0
      %1913 = vmatprep.subr.bf16.mxu0 0
      %1914 = vmatpush1.bf16.msra.mxu0 %v1880
      %1915 = vmatprep.subr.bf16.mxu0 0
      %1916 = vmatpush1.bf16.msra.mxu0 %v1881
      %1917 = vmatprep.subr.bf16.mxu0 0
      %1918 = vmatpush1.bf16.msra.mxu0 %v1882
      %1919 = vmatprep.subr.bf16.mxu0 0
      %1920 = vmatpush1.bf16.msra.mxu0 %v1883
      %1921 = vmatprep.subr.bf16.mxu0 0
      %1922 = vmatpush1.bf16.msra.mxu0 %v1884
      %1923 = vmatprep.subr.bf16.mxu0 0
      %1924 = vmatpush1.bf16.msra.mxu0 %v1885
      %1925 = vmatprep.subr.bf16.mxu0 0
      %1926 = vmatpush1.bf16.msra.mxu0 %v1886
      %1927 = vmatprep.subr.bf16.mxu0 0
      %1928 = vmatpush1.bf16.msra.mxu0 %v1887
      %1929 = vmatprep.subr.bf16.mxu0 0
      %1930 = vmatpush1.bf16.msra.mxu0 %v1888
      %1931 = vmatprep.subr.bf16.mxu0 0
      %1932 = vmatpush1.bf16.msra.mxu0 0
      %1933 = vmatprep.subr.bf16.mxu0 0
      %1934 = vmatpush1.bf16.msra.mxu0 0
      %1935 = vmatprep.subr.bf16.mxu0 0
      %1936 = vmatpush1.bf16.msra.mxu0 0
      %1937 = vmatprep.subr.bf16.mxu0 0
      %1938 = vmatpush1.bf16.msra.mxu0 0
      %1939 = vmatprep.subr.bf16.mxu0 0
      %1940 = vmatpush1.bf16.msra.mxu0 0
      %1941 = vmatprep.subr.bf16.mxu0 0
      %1942 = vmatpush1.bf16.msra.mxu0 0
      %1943 = vmatprep.subr.bf16.mxu0 0
      %1944 = vmatpush1.bf16.msra.mxu0 0
      %1945 = vmatprep.mubr.bf16.mxu0 %v1908
      %1946 = vmatmul.mubr.bf16.gmra.mrb[0].mxu0 %v1901
      %v1947 = vpop.f32.mrb[0].mxu0
      %v1948 = vadd.f32 0.0, %v1947
      %v1949 = vpop.f32.mrb[0].mxu0
      %v1950 = vpop.f32.mrb[0].mxu0
      %v1951 = vadd.f32 0.0, %v1950
      %v1952 = vpop.f32.mrb[0].mxu0
      %1953 = vmatprep.mubr.bf16.mxu0 %v1911
      %1954 = vmatmul.mubr.bf16.gmra.mrb[0].mxu0 %v1903
      %v1955 = vpop.f32.mrb[0].mxu0
      %v1956 = vadd.f32 0.0, %v1955
      %v1957 = vpop.f32.mrb[0].mxu0
      %v1958 = vpop.f32.mrb[0].mxu0
      %v1959 = vadd.f32 0.0, %v1958
      %v1960 = vpop.f32.mrb[0].mxu0
      %1961 = vdwg.mxu0
      %vm1962 = vcmask 261120
      %v1964 = vsel %vm1962, %v1765, 0
      %v1967 = vsel %vm1962, %v1766, 0
      %v1970 = vsel %vm1962, %v1767, 0
      %v1973 = vsel %vm1962, %v1768, 0
      %1975 = vmatprep.subr.mxu0 0.0
      %1976 = vmatpush1.msra.mxu0 %v1948
      %1977 = vmatprep.subr.mxu0 0.0
      %1978 = vmatpush1.msra.mxu0 %v1951
      %1979 = vmatprep.subr.mxu0 0.0
      %1980 = vmatpush1.msra.mxu0 %v1956
      %1981 = vmatprep.subr.mxu0 0.0
      %1982 = vmatpush1.msra.mxu0 %v1959
      %1983 = vmatprep.subr.mxu0 0.0
      %1984 = vmatpush1.msra.mxu0 0.0
      %1985 = vmatprep.subr.mxu0 0.0
      %1986 = vmatpush1.msra.mxu0 0.0
      %1987 = vmatprep.subr.mxu0 0.0
      %1988 = vmatpush1.msra.mxu0 0.0
      %1989 = vmatprep.subr.mxu0 0.0
      %1990 = vmatpush1.msra.mxu0 0.0
      %1991 = vmatprep.subr.mxu0 0.0
      %1992 = vmatpush1.msra.mxu0 0.0
      %1993 = vmatprep.subr.mxu0 0.0
      %1994 = vmatpush1.msra.mxu0 0.0
      %1995 = vmatprep.subr.mxu0 0.0
      %1996 = vmatpush1.msra.mxu0 0.0
      %1997 = vmatprep.subr.mxu0 0.0
      %1998 = vmatpush1.msra.mxu0 0.0
      %1999 = vmatprep.subr.mxu0 0.0
      %2000 = vmatpush1.msra.mxu0 0.0
      %2001 = vmatprep.subr.mxu0 0.0
      %2002 = vmatpush1.msra.mxu0 0.0
      %2003 = vmatprep.subr.mxu0 0.0
      %2004 = vmatpush1.msra.mxu0 0.0
      %2005 = vmatprep.subr.mxu0 0.0
      %2006 = vmatpush1.msra.mxu0 0.0
      %2007 = vmatprep.subr.mxu0 0.0
      %2008 = vmatpush1.msra.mxu0 0.0
      %2009 = vmatprep.subr.mxu0 0.0
      %2010 = vmatpush1.msra.mxu0 0.0
      %2011 = vmatprep.subr.mxu0 0.0
      %2012 = vmatpush1.msra.mxu0 0.0
      %2013 = vmatprep.subr.mxu0 0.0
      %2014 = vmatpush1.msra.mxu0 0.0
      %2015 = vmatprep.subr.mxu0 0.0
      %2016 = vmatpush1.msra.mxu0 0.0
      %2017 = vmatprep.subr.mxu0 0.0
      %2018 = vmatpush1.msra.mxu0 0.0
      %2019 = vmatprep.subr.mxu0 0.0
      %2020 = vmatpush1.msra.mxu0 0.0
      %2021 = vmatprep.subr.mxu0 0.0
      %2022 = vmatpush1.msra.mxu0 0.0
      %2023 = vmatprep.subr.mxu0 0.0
      %2024 = vmatpush1.msra.mxu0 0.0
      %2025 = vmatprep.subr.mxu0 0.0
      %2026 = vmatpush1.msra.mxu0 0.0
      %2027 = vmatprep.subr.mxu0 0.0
      %2028 = vmatpush1.msra.mxu0 0.0
      %2029 = vmatprep.subr.mxu0 0.0
      %2030 = vmatpush1.msra.mxu0 0.0
      %2031 = vmatprep.subr.mxu0 0.0
      %2032 = vmatpush1.msra.mxu0 0.0
      %2033 = vmatprep.subr.mxu0 0.0
      %2034 = vmatpush1.msra.mxu0 0.0
      %2035 = vmatprep.subr.mxu0 0.0
      %2036 = vmatpush1.msra.mxu0 0.0
      %2037 = vmatprep.subr.mxu0 0.0
      %2038 = vmatpush1.msra.mxu0 0.0
      %2039 = vmatprep.mubr.f32.mxu0 0.0
      %2040 = vmatmul.mubr.f32.gmra.mrb[0].mxu0 %v1964
      %v2041 = vpop.f32.mrb[0].mxu0
      %v2042 = vadd.f32 0.0, %v2041
      %v2043 = vpop.f32.mrb[0].mxu0
      %2044 = vmatprep.mubr.f32.mxu0 0.0
      %2045 = vmatmul.mubr.f32.gmra.mrb[0].mxu0 %v1967
      %v2046 = vpop.f32.mrb[0].mxu0
      %v2047 = vadd.f32 0.0, %v2046
      %v2048 = vpop.f32.mrb[0].mxu0
      %2049 = vmatprep.mubr.f32.mxu0 0.0
      %2050 = vmatmul.mubr.f32.gmra.mrb[0].mxu0 %v1970
      %v2051 = vpop.f32.mrb[0].mxu0
      %v2052 = vadd.f32 0.0, %v2051
      %v2053 = vpop.f32.mrb[0].mxu0
      %2054 = vmatprep.mubr.f32.mxu0 0.0
      %2055 = vmatmul.mubr.f32.gmra.mrb[0].mxu0 %v1973
      %v2056 = vpop.f32.mrb[0].mxu0
      %v2057 = vadd.f32 0.0, %v2056
      %v2058 = vpop.f32.mrb[0].mxu0
      %2059 = vdwg.mxu0
      %vm2060 = vcmask 523264
      %v2061 = vsel %vm2060, %v2042, 0.0
      %2062 = vadd.xlane.f32.xlu0 %v2061
      %v2063 = vpop.xlane.xlu0 %2062
      %v2064 = vsel %vm2060, %v2047, 0.0
      %2065 = vadd.xlane.f32.xlu0 %v2064
      %v2066 = vpop.xlane.xlu0 %2065
      %v2067 = vsel %vm2060, %v2052, 0.0
      %2068 = vadd.xlane.f32.xlu0 %v2067
      %v2069 = vpop.xlane.xlu0 %2068
      %v2070 = vsel %vm2060, %v2057, 0.0
      %2071 = vadd.xlane.f32.xlu0 %v2070
      %v2072 = vpop.xlane.xlu0 %2071
      %v2073 = vmul.f32 %v1948, %v1948
      %v2074 = vmul.f32 %v1951, %v1951
      %v2075 = vmul.f32 %v1956, %v1956
      %v2076 = vmul.f32 %v1959, %v1959
      %2077 = vmatprep.subr.mxu0 0.0
      %2078 = vmatpush1.msra.mxu0 %v2073
      %2079 = vmatprep.subr.mxu0 0.0
      %2080 = vmatpush1.msra.mxu0 %v2074
      %2081 = vmatprep.subr.mxu0 0.0
      %2082 = vmatpush1.msra.mxu0 %v2075
      %2083 = vmatprep.subr.mxu0 0.0
      %2084 = vmatpush1.msra.mxu0 %v2076
      %2085 = vmatprep.subr.mxu0 0.0
      %2086 = vmatpush1.msra.mxu0 0.0
      %2087 = vmatprep.subr.mxu0 0.0
      %2088 = vmatpush1.msra.mxu0 0.0
      %2089 = vmatprep.subr.mxu0 0.0
      %2090 = vmatpush1.msra.mxu0 0.0
      %2091 = vmatprep.subr.mxu0 0.0
      %2092 = vmatpush1.msra.mxu0 0.0
      %2093 = vmatprep.subr.mxu0 0.0
      %2094 = vmatpush1.msra.mxu0 0.0
      %2095 = vmatprep.subr.mxu0 0.0
      %2096 = vmatpush1.msra.mxu0 0.0
      %2097 = vmatprep.subr.mxu0 0.0
      %2098 = vmatpush1.msra.mxu0 0.0
      %2099 = vmatprep.subr.mxu0 0.0
      %2100 = vmatpush1.msra.mxu0 0.0
      %2101 = vmatprep.subr.mxu0 0.0
      %2102 = vmatpush1.msra.mxu0 0.0
      %2103 = vmatprep.subr.mxu0 0.0
      %2104 = vmatpush1.msra.mxu0 0.0
      %2105 = vmatprep.subr.mxu0 0.0
      %2106 = vmatpush1.msra.mxu0 0.0
      %2107 = vmatprep.subr.mxu0 0.0
      %2108 = vmatpush1.msra.mxu0 0.0
      %2109 = vmatprep.subr.mxu0 0.0
      %2110 = vmatpush1.msra.mxu0 0.0
      %2111 = vmatprep.subr.mxu0 0.0
      %2112 = vmatpush1.msra.mxu0 0.0
      %2113 = vmatprep.subr.mxu0 0.0
      %2114 = vmatpush1.msra.mxu0 0.0
      %2115 = vmatprep.subr.mxu0 0.0
      %2116 = vmatpush1.msra.mxu0 0.0
      %2117 = vmatprep.subr.mxu0 0.0
      %2118 = vmatpush1.msra.mxu0 0.0
      %2119 = vmatprep.subr.mxu0 0.0
      %2120 = vmatpush1.msra.mxu0 0.0
      %2121 = vmatprep.subr.mxu0 0.0
      %2122 = vmatpush1.msra.mxu0 0.0
      %2123 = vmatprep.subr.mxu0 0.0
      %2124 = vmatpush1.msra.mxu0 0.0
      %2125 = vmatprep.subr.mxu0 0.0
      %2126 = vmatpush1.msra.mxu0 0.0
      %2127 = vmatprep.subr.mxu0 0.0
      %2128 = vmatpush1.msra.mxu0 0.0
      %2129 = vmatprep.subr.mxu0 0.0
      %2130 = vmatpush1.msra.mxu0 0.0
      %2131 = vmatprep.subr.mxu0 0.0
      %2132 = vmatpush1.msra.mxu0 0.0
      %2133 = vmatprep.subr.mxu0 0.0
      %2134 = vmatpush1.msra.mxu0 0.0
      %2135 = vmatprep.subr.mxu0 0.0
      %2136 = vmatpush1.msra.mxu0 0.0
      %2137 = vmatprep.subr.mxu0 0.0
      %2138 = vmatpush1.msra.mxu0 0.0
      %2139 = vmatprep.subr.mxu0 0.0
      %2140 = vmatpush1.msra.mxu0 0.0
      %2141 = vmatprep.mubr.f32.mxu0 0.0
      %2142 = vmatmul.mubr.f32.gmra.mrb[0].mxu0 %v1964
      %v2143 = vpop.f32.mrb[0].mxu0
      %v2144 = vadd.f32 0.0, %v2143
      %v2145 = vpop.f32.mrb[0].mxu0
      %2146 = vmatprep.mubr.f32.mxu0 0.0
      %2147 = vmatmul.mubr.f32.gmra.mrb[0].mxu0 %v1967
      %v2148 = vpop.f32.mrb[0].mxu0
      %v2149 = vadd.f32 0.0, %v2148
      %v2150 = vpop.f32.mrb[0].mxu0
      %2151 = vmatprep.mubr.f32.mxu0 0.0
      %2152 = vmatmul.mubr.f32.gmra.mrb[0].mxu0 %v1970
      %v2153 = vpop.f32.mrb[0].mxu0
      %v2154 = vadd.f32 0.0, %v2153
      %v2155 = vpop.f32.mrb[0].mxu0
      %2156 = vmatprep.mubr.f32.mxu0 0.0
      %2157 = vmatmul.mubr.f32.gmra.mrb[0].mxu0 %v1973
      %v2158 = vpop.f32.mrb[0].mxu0
      %v2159 = vadd.f32 0.0, %v2158
      %v2160 = vpop.f32.mrb[0].mxu0
      %2161 = vdwg.mxu0
      %v2162 = vsel %vm2060, %v2144, 0.0
      %2163 = vadd.xlane.f32.xlu0 %v2162
      %v2164 = vpop.xlane.xlu0 %2163
      %v2165 = vsel %vm2060, %v2149, 0.0
      %2166 = vadd.xlane.f32.xlu0 %v2165
      %v2167 = vpop.xlane.xlu0 %2166
      %v2168 = vsel %vm2060, %v2154, 0.0
      %2169 = vadd.xlane.f32.xlu0 %v2168
      %v2170 = vpop.xlane.xlu0 %2169
      %v2171 = vsel %vm2060, %v2159, 0.0
      %2172 = vadd.xlane.f32.xlu0 %v2171
      %v2173 = vpop.xlane.xlu0 %2172
      %v2174 = vmul.f32 %v2063, %v2063
      %v2175 = vmul.f32 %v2066, %v2066
      %v2176 = vmul.f32 %v2069, %v2069
      %v2177 = vmul.f32 %v2072, %v2072
      %v2178 = vsub.f32 %v2164, %v2174
      %v2179 = vsub.f32 %v2167, %v2175
      %v2180 = vsub.f32 %v2170, %v2176
      %v2181 = vsub.f32 %v2173, %v2177
      %v2182 = vmax.f32 %v2178, 0.0
      %v2183 = vmax.f32 %v2179, 0.0
      %v2184 = vmax.f32 %v2180, 0.0
      %v2185 = vmax.f32 %v2181, 0.0
      %v2186 = vadd.f32 %v2182, 1e-05
      %v2187 = vadd.f32 %v2183, 1e-05
      %v2188 = vadd.f32 %v2184, 1e-05
      %v2189 = vadd.f32 %v2185, 1e-05
      %v2190 = vrsqrt.pop %v2186
      %v2191 = vrsqrt.pop %v2187
      %v2192 = vrsqrt.pop %v2188
      %v2193 = vrsqrt.pop %v2189
      %v2194 = vmul.f32 %v2190, %v1769
      %v2195 = vmul.f32 %v2191, %v1770
      %v2196 = vmul.f32 %v2192, %v1771
      %v2197 = vmul.f32 %v2193, %v1772
      %v2198 = vmul.f32 %v2063, %v2194
      %v2199 = vmul.f32 %v2066, %v2195
      %v2200 = vmul.f32 %v2069, %v2196
      %v2201 = vmul.f32 %v2072, %v2197
      %v2202 = vsub.f32 %v1773, %v2198
      %v2203 = vsub.f32 %v1774, %v2199
      %v2204 = vsub.f32 %v1775, %v2200
      %v2205 = vsub.f32 %v1776, %v2201
      %2207 = vset.pattern.permute.xlu0 0
      %2208 = vperm.xlu0 %2207, %v2194
      %v2209 = vpop.permute.xlu0 %2208
      %2212 = vset.pattern.permute.xlu0 0
      %2213 = vperm.xlu0 %2212, %v2195
      %v2214 = vpop.permute.xlu0 %2213
      %2217 = vset.pattern.permute.xlu0 0
      %2218 = vperm.xlu0 %2217, %v2196
      %v2219 = vpop.permute.xlu0 %2218
      %2222 = vset.pattern.permute.xlu0 0
      %2223 = vperm.xlu0 %2222, %v2197
      %v2224 = vpop.permute.xlu0 %2223
      %v2226 = vmul.f32 %v1948, %v2209
      %v2227 = vmul.f32 %v1951, %v2214
      %v2228 = vmul.f32 %v1956, %v2219
      %v2229 = vmul.f32 %v1959, %v2224
      %2231 = vset.pattern.permute.xlu0 0
      %2232 = vperm.xlu0 %2231, %v2202
      %v2233 = vpop.permute.xlu0 %2232
      %2236 = vset.pattern.permute.xlu0 0
      %2237 = vperm.xlu0 %2236, %v2203
      %v2238 = vpop.permute.xlu0 %2237
      %2241 = vset.pattern.permute.xlu0 0
      %2242 = vperm.xlu0 %2241, %v2204
      %v2243 = vpop.permute.xlu0 %2242
      %2246 = vset.pattern.permute.xlu0 0
      %2247 = vperm.xlu0 %2246, %v2205
      %v2248 = vpop.permute.xlu0 %2247
      %v2250 = vadd.f32 %v2226, %v2233
      %v2251 = vadd.f32 %v2227, %v2238
      %v2252 = vadd.f32 %v2228, %v2243
      %v2253 = vadd.f32 %v2229, %v2248
      %v2254 = vmax.f32 %v2250, 0.0
      %v2255 = vmax.f32 %v2251, 0.0
      %v2256 = vmax.f32 %v2252, 0.0
      %v2257 = vmax.f32 %v2253, 0.0
      %v2258 = vld [vmem:[%s12] sm:$0xff]
      %v2259 = vld [vmem:[%s12 + $0x8] sm:$0xf]
      %v2260 = vld [vmem:[%s12 + $0xc] sm:$0xff]
      %v2261 = vld [vmem:[%s12 + $0x14] sm:$0xf]
      %v2262 = vld [vmem:[%s12 + $0x18] sm:$0xff]
      %v2263 = vld [vmem:[%s12 + $0x20] sm:$0xf]
      %v2264 = vld [vmem:[%s12 + $0x24] sm:$0xff]
      %v2265 = vld [vmem:[%s12 + $0x2c] sm:$0xf]
      %v2266 = vld [vmem:[%s13] sm:$0xff]
      %v2267 = vld [vmem:[%s13 + $0x8] sm:$0xff]
      %v2268 = vld [vmem:[%s13 + $0x10] sm:$0xff]
      %v2269 = vld [vmem:[%s13 + $0x18] sm:$0xff]
      %v2270 = vld [vmem:[%s14] sm:$0xff]
      %v2271 = vld [vmem:[%s14 + $0x8] sm:$0xff]
      %v2272 = vld [vmem:[%s14 + $0x10] sm:$0xff]
      %v2273 = vld [vmem:[%s14 + $0x18] sm:$0xff]
      %2278 = vrot.lane.b32.xlu0 %v2254, 9
      %v2279 = vpop.permute.xlu0 %2278
      %2280 = vrot.lane.b32.xlu0 %v2255, 9
      %v2281 = vpop.permute.xlu0 %2280
      %2282 = vrot.lane.b32.xlu0 %v2256, 9
      %v2283 = vpop.permute.xlu0 %2282
      %2284 = vrot.lane.b32.xlu0 %v2257, 9
      %v2285 = vpop.permute.xlu0 %2284
      %v2290 = vsel %vm1799, 0.0, %v2279
      %v2291 = vsel %vm1799, 0.0, %v2281
      %v2292 = vsel %vm1799, 0.0, %v2283
      %v2293 = vsel %vm1799, 0.0, %v2285
      %v2294 = vsel %vm1803, %v2290, 0.0
      %v2295 = vsel %vm1803, %v2291, 0.0
      %v2296 = vsel %vm1803, %v2292, 0.0
      %v2297 = vsel %vm1803, %v2293, 0.0
      %2298 = vrot.lane.b32.xlu0 %v2254, 8
      %v2299 = vpop.permute.xlu0 %2298
      %2300 = vrot.lane.b32.xlu0 %v2255, 8
      %v2301 = vpop.permute.xlu0 %2300
      %2302 = vrot.lane.b32.xlu0 %v2256, 8
      %v2303 = vpop.permute.xlu0 %2302
      %2304 = vrot.lane.b32.xlu0 %v2257, 8
      %v2305 = vpop.permute.xlu0 %2304
      %v2310 = vsel %vm1812, 0.0, %v2299
      %v2311 = vsel %vm1812, 0.0, %v2301
      %v2312 = vsel %vm1812, 0.0, %v2303
      %v2313 = vsel %vm1812, 0.0, %v2305
      %2314 = vrot.lane.b32.xlu0 %v2254, 7
      %v2315 = vpop.permute.xlu0 %2314
      %2316 = vrot.lane.b32.xlu0 %v2255, 7
      %v2317 = vpop.permute.xlu0 %2316
      %2318 = vrot.lane.b32.xlu0 %v2256, 7
      %v2319 = vpop.permute.xlu0 %2318
      %2320 = vrot.lane.b32.xlu0 %v2257, 7
      %v2321 = vpop.permute.xlu0 %2320
      %v2326 = vsel %vm1821, 0.0, %v2315
      %v2327 = vsel %vm1821, 0.0, %v2317
      %v2328 = vsel %vm1821, 0.0, %v2319
      %v2329 = vsel %vm1821, 0.0, %v2321
      %v2330 = vsel %vm1825, %v2326, 0.0
      %v2331 = vsel %vm1825, %v2327, 0.0
      %v2332 = vsel %vm1825, %v2328, 0.0
      %v2333 = vsel %vm1825, %v2329, 0.0
      %2334 = vrot.lane.b32.xlu0 %v2254, 1
      %v2335 = vpop.permute.xlu0 %2334
      %2336 = vrot.lane.b32.xlu0 %v2255, 1
      %v2337 = vpop.permute.xlu0 %2336
      %2338 = vrot.lane.b32.xlu0 %v2256, 1
      %v2339 = vpop.permute.xlu0 %2338
      %2340 = vrot.lane.b32.xlu0 %v2257, 1
      %v2341 = vpop.permute.xlu0 %2340
      %v2346 = vsel %vm658, 0.0, %v2335
      %v2347 = vsel %vm658, 0.0, %v2337
      %v2348 = vsel %vm658, 0.0, %v2339
      %v2349 = vsel %vm658, 0.0, %v2341
      %v2350 = vsel %vm1803, %v2346, 0.0
      %v2351 = vsel %vm1803, %v2347, 0.0
      %v2352 = vsel %vm1803, %v2348, 0.0
      %v2353 = vsel %vm1803, %v2349, 0.0
      %2354 = vrot.lane.b32.xlu0 %v2254, 127
      %v2355 = vpop.permute.xlu0 %2354
      %2356 = vrot.lane.b32.xlu0 %v2255, 127
      %v2357 = vpop.permute.xlu0 %2356
      %2358 = vrot.lane.b32.xlu0 %v2256, 127
      %v2359 = vpop.permute.xlu0 %2358
      %2360 = vrot.lane.b32.xlu0 %v2257, 127
      %v2361 = vpop.permute.xlu0 %2360
      %v2366 = vsel %vm1844, %v2355, 0.0
      %v2367 = vsel %vm1844, %v2357, 0.0
      %v2368 = vsel %vm1844, %v2359, 0.0
      %v2369 = vsel %vm1844, %v2361, 0.0
      %v2370 = vsel %vm1825, %v2366, 0.0
      %v2371 = vsel %vm1825, %v2367, 0.0
      %v2372 = vsel %vm1825, %v2368, 0.0
      %v2373 = vsel %vm1825, %v2369, 0.0
      %2374 = vrot.lane.b32.xlu0 %v2254, 121
      %v2375 = vpop.permute.xlu0 %2374
      %2376 = vrot.lane.b32.xlu0 %v2255, 121
      %v2377 = vpop.permute.xlu0 %2376
      %2378 = vrot.lane.b32.xlu0 %v2256, 121
      %v2379 = vpop.permute.xlu0 %2378
      %2380 = vrot.lane.b32.xlu0 %v2257, 121
      %v2381 = vpop.permute.xlu0 %2380
      %v2386 = vsel %vm1855, %v2375, 0.0
      %v2387 = vsel %vm1855, %v2377, 0.0
      %v2388 = vsel %vm1855, %v2379, 0.0
      %v2389 = vsel %vm1855, %v2381, 0.0
      %v2390 = vsel %vm1803, %v2386, 0.0
      %v2391 = vsel %vm1803, %v2387, 0.0
      %v2392 = vsel %vm1803, %v2388, 0.0
      %v2393 = vsel %vm1803, %v2389, 0.0
      %2394 = vrot.lane.b32.xlu0 %v2254, 120
      %v2395 = vpop.permute.xlu0 %2394
      %2396 = vrot.lane.b32.xlu0 %v2255, 120
      %v2397 = vpop.permute.xlu0 %2396
      %2398 = vrot.lane.b32.xlu0 %v2256, 120
      %v2399 = vpop.permute.xlu0 %2398
      %2400 = vrot.lane.b32.xlu0 %v2257, 120
      %v2401 = vpop.permute.xlu0 %2400
      %v2406 = vsel %vm1866, %v2395, 0.0
      %v2407 = vsel %vm1866, %v2397, 0.0
      %v2408 = vsel %vm1866, %v2399, 0.0
      %v2409 = vsel %vm1866, %v2401, 0.0
      %2410 = vrot.lane.b32.xlu0 %v2254, 119
      %v2411 = vpop.permute.xlu0 %2410
      %2412 = vrot.lane.b32.xlu0 %v2255, 119
      %v2413 = vpop.permute.xlu0 %2412
      %2414 = vrot.lane.b32.xlu0 %v2256, 119
      %v2415 = vpop.permute.xlu0 %2414
      %2416 = vrot.lane.b32.xlu0 %v2257, 119
      %v2417 = vpop.permute.xlu0 %2416
      %v2422 = vsel %vm1875, %v2411, 0.0
      %v2423 = vsel %vm1875, %v2413, 0.0
      %v2424 = vsel %vm1875, %v2415, 0.0
      %v2425 = vsel %vm1875, %v2417, 0.0
      %v2426 = vsel %vm1825, %v2422, 0.0
      %v2427 = vsel %vm1825, %v2423, 0.0
      %v2428 = vsel %vm1825, %v2424, 0.0
      %v2429 = vsel %vm1825, %v2425, 0.0
      %v2430 = vpack.c.bf16 %v2295, %v2294
      %v2431 = vpack.c.bf16 %v2297, %v2296
      %v2432 = vpack.c.bf16 %v2311, %v2310
      %v2433 = vpack.c.bf16 %v2313, %v2312
      %v2434 = vpack.c.bf16 %v2331, %v2330
      %v2435 = vpack.c.bf16 %v2333, %v2332
      %v2436 = vpack.c.bf16 %v2351, %v2350
      %v2437 = vpack.c.bf16 %v2353, %v2352
      %v2438 = vpack.c.bf16 %v2255, %v2254
      %v2439 = vpack.c.bf16 %v2257, %v2256
      %v2440 = vpack.c.bf16 %v2371, %v2370
      %v2441 = vpack.c.bf16 %v2373, %v2372
      %v2442 = vpack.c.bf16 %v2391, %v2390
      %v2443 = vpack.c.bf16 %v2393, %v2392
      %v2444 = vpack.c.bf16 %v2407, %v2406
      %v2445 = vpack.c.bf16 %v2409, %v2408
      %v2446 = vpack.c.bf16 %v2427, %v2426
      %v2447 = vpack.c.bf16 %v2429, %v2428
      %v2456 = vunpack.c.l.b16 %v2258
      %v2457 = vunpack.c.h.b16 %v2258
      %v2458 = vunpack.c.l.b16 %v2259
      %v2459 = vunpack.c.l.b16 %v2260
      %v2460 = vunpack.c.h.b16 %v2260
      %v2461 = vunpack.c.l.b16 %v2261
      %v2462 = vunpack.c.l.b16 %v2262
      %v2463 = vunpack.c.h.b16 %v2262
      %v2464 = vunpack.c.l.b16 %v2263
      %v2465 = vunpack.c.l.b16 %v2264
      %v2466 = vunpack.c.h.b16 %v2264
      %v2467 = vunpack.c.l.b16 %v2265
      %v2468 = vpack.c.b16 %v2459, %v2456
      %v2469 = vpack.c.b16 %v2460, %v2457
      %v2470 = vpack.c.b16 %v2461, %v2458
      %v2471 = vpack.c.b16 %v2465, %v2462
      %v2472 = vpack.c.b16 %v2466, %v2463
      %v2473 = vpack.c.b16 %v2467, %v2464
      %v2479 = vsel %vm1962, %v2470, 0
      %v2482 = vsel %vm1962, %v2473, 0
      %2484 = vmatprep.subr.bf16.mxu0 0
      %2485 = vmatpush1.bf16.msra.mxu0 %v2430
      %2486 = vmatprep.subr.bf16.mxu0 0
      %2487 = vmatpush1.bf16.msra.mxu0 %v2431
      %2488 = vmatprep.subr.bf16.mxu0 0
      %2489 = vmatpush1.bf16.msra.mxu0 %v2432
      %2490 = vmatprep.subr.bf16.mxu0 0
      %2491 = vmatpush1.bf16.msra.mxu0 %v2433
      %2492 = vmatprep.subr.bf16.mxu0 0
      %2493 = vmatpush1.bf16.msra.mxu0 %v2434
      %2494 = vmatprep.subr.bf16.mxu0 0
      %2495 = vmatpush1.bf16.msra.mxu0 %v2435
      %2496 = vmatprep.subr.bf16.mxu0 0
      %2497 = vmatpush1.bf16.msra.mxu0 %v2436
      %2498 = vmatprep.subr.bf16.mxu0 0
      %2499 = vmatpush1.bf16.msra.mxu0 %v2437
      %2500 = vmatprep.subr.bf16.mxu0 0
      %2501 = vmatpush1.bf16.msra.mxu0 %v2438
      %2502 = vmatprep.subr.bf16.mxu0 0
      %2503 = vmatpush1.bf16.msra.mxu0 %v2439
      %2504 = vmatprep.subr.bf16.mxu0 0
      %2505 = vmatpush1.bf16.msra.mxu0 %v2440
      %2506 = vmatprep.subr.bf16.mxu0 0
      %2507 = vmatpush1.bf16.msra.mxu0 %v2441
      %2508 = vmatprep.subr.bf16.mxu0 0
      %2509 = vmatpush1.bf16.msra.mxu0 %v2442
      %2510 = vmatprep.subr.bf16.mxu0 0
      %2511 = vmatpush1.bf16.msra.mxu0 %v2443
      %2512 = vmatprep.subr.bf16.mxu0 0
      %2513 = vmatpush1.bf16.msra.mxu0 %v2444
      %2514 = vmatprep.subr.bf16.mxu0 0
      %2515 = vmatpush1.bf16.msra.mxu0 %v2445
      %2516 = vmatprep.mubr.bf16.mxu0 %v2469
      %2517 = vmatmul.mubr.bf16.gmra.mrb[0].mxu0 %v2468
      %v2518 = vpop.f32.mrb[0].mxu0
      %v2519 = vadd.f32 0.0, %v2518
      %v2520 = vpop.f32.mrb[0].mxu0
      %v2521 = vpop.f32.mrb[0].mxu0
      %v2522 = vadd.f32 0.0, %v2521
      %v2523 = vpop.f32.mrb[0].mxu0
      %2524 = vmatprep.mubr.bf16.mxu0 %v2472
      %2525 = vmatmul.mubr.bf16.gmra.mrb[0].mxu0 %v2471
      %v2526 = vpop.f32.mrb[0].mxu0
      %v2527 = vadd.f32 0.0, %v2526
      %v2528 = vpop.f32.mrb[0].mxu0
      %v2529 = vpop.f32.mrb[0].mxu0
      %v2530 = vadd.f32 0.0, %v2529
      %v2531 = vpop.f32.mrb[0].mxu0
      %2532 = vdwg.mxu0
      %2533 = vmatprep.subr.bf16.mxu0 0
      %2534 = vmatpush1.bf16.msra.mxu0 %v2446
      %2535 = vmatprep.subr.bf16.mxu0 0
      %2536 = vmatpush1.bf16.msra.mxu0 %v2447
      %2537 = vmatprep.subr.bf16.mxu0 0
      %2538 = vmatpush1.bf16.msra.mxu0 0
      %2539 = vmatprep.subr.bf16.mxu0 0
      %2540 = vmatpush1.bf16.msra.mxu0 0
      %2541 = vmatprep.subr.bf16.mxu0 0
      %2542 = vmatpush1.bf16.msra.mxu0 0
      %2543 = vmatprep.subr.bf16.mxu0 0
      %2544 = vmatpush1.bf16.msra.mxu0 0
      %2545 = vmatprep.subr.bf16.mxu0 0
      %2546 = vmatpush1.bf16.msra.mxu0 0
      %2547 = vmatprep.subr.bf16.mxu0 0
      %2548 = vmatpush1.bf16.msra.mxu0 0
      %2549 = vmatprep.subr.bf16.mxu0 0
      %2550 = vmatpush1.bf16.msra.mxu0 0
      %2551 = vmatprep.subr.bf16.mxu0 0
      %2552 = vmatpush1.bf16.msra.mxu0 0
      %2553 = vmatprep.subr.bf16.mxu0 0
      %2554 = vmatpush1.bf16.msra.mxu0 0
      %2555 = vmatprep.subr.bf16.mxu0 0
      %2556 = vmatpush1.bf16.msra.mxu0 0
      %2557 = vmatprep.subr.bf16.mxu0 0
      %2558 = vmatpush1.bf16.msra.mxu0 0
      %2559 = vmatprep.subr.bf16.mxu0 0
      %2560 = vmatpush1.bf16.msra.mxu0 0
      %2561 = vmatprep.subr.bf16.mxu0 0
      %2562 = vmatpush1.bf16.msra.mxu0 0
      %2563 = vmatprep.subr.bf16.mxu0 0
      %2564 = vmatpush1.bf16.msra.mxu0 0
      %2565 = vmatprep.mubr.bf16.mxu0 0
      %2566 = vmatmul.mubr.bf16.gmra.mrb[0].mxu0 %v2479
      %v2567 = vpop.f32.mrb[0].mxu0
      %v2568 = vadd.f32 %v2519, %v2567
      %v2569 = vpop.f32.mrb[0].mxu0
      %v2570 = vpop.f32.mrb[0].mxu0
      %v2571 = vadd.f32 %v2522, %v2570
      %v2572 = vpop.f32.mrb[0].mxu0
      %2573 = vmatprep.mubr.bf16.mxu0 0
      %2574 = vmatmul.mubr.bf16.gmra.mrb[0].mxu0 %v2482
      %v2575 = vpop.f32.mrb[0].mxu0
      %v2576 = vadd.f32 %v2527, %v2575
      %v2577 = vpop.f32.mrb[0].mxu0
      %v2578 = vpop.f32.mrb[0].mxu0
      %v2579 = vadd.f32 %v2530, %v2578
      %v2580 = vpop.f32.mrb[0].mxu0
      %2581 = vdwg.mxu0
      %2582 = vmatprep.subr.mxu0 0.0
      %2583 = vmatpush1.msra.mxu0 %v2568
      %2584 = vmatprep.subr.mxu0 0.0
      %2585 = vmatpush1.msra.mxu0 %v2571
      %2586 = vmatprep.subr.mxu0 0.0
      %2587 = vmatpush1.msra.mxu0 %v2576
      %2588 = vmatprep.subr.mxu0 0.0
      %2589 = vmatpush1.msra.mxu0 %v2579
      %2590 = vmatprep.subr.mxu0 0.0
      %2591 = vmatpush1.msra.mxu0 0.0
      %2592 = vmatprep.subr.mxu0 0.0
      %2593 = vmatpush1.msra.mxu0 0.0
      %2594 = vmatprep.subr.mxu0 0.0
      %2595 = vmatpush1.msra.mxu0 0.0
      %2596 = vmatprep.subr.mxu0 0.0
      %2597 = vmatpush1.msra.mxu0 0.0
      %2598 = vmatprep.subr.mxu0 0.0
      %2599 = vmatpush1.msra.mxu0 0.0
      %2600 = vmatprep.subr.mxu0 0.0
      %2601 = vmatpush1.msra.mxu0 0.0
      %2602 = vmatprep.subr.mxu0 0.0
      %2603 = vmatpush1.msra.mxu0 0.0
      %2604 = vmatprep.subr.mxu0 0.0
      %2605 = vmatpush1.msra.mxu0 0.0
      %2606 = vmatprep.subr.mxu0 0.0
      %2607 = vmatpush1.msra.mxu0 0.0
      %2608 = vmatprep.subr.mxu0 0.0
      %2609 = vmatpush1.msra.mxu0 0.0
      %2610 = vmatprep.subr.mxu0 0.0
      %2611 = vmatpush1.msra.mxu0 0.0
      %2612 = vmatprep.subr.mxu0 0.0
      %2613 = vmatpush1.msra.mxu0 0.0
      %2614 = vmatprep.subr.mxu0 0.0
      %2615 = vmatpush1.msra.mxu0 0.0
      %2616 = vmatprep.subr.mxu0 0.0
      %2617 = vmatpush1.msra.mxu0 0.0
      %2618 = vmatprep.subr.mxu0 0.0
      %2619 = vmatpush1.msra.mxu0 0.0
      %2620 = vmatprep.subr.mxu0 0.0
      %2621 = vmatpush1.msra.mxu0 0.0
      %2622 = vmatprep.subr.mxu0 0.0
      %2623 = vmatpush1.msra.mxu0 0.0
      %2624 = vmatprep.subr.mxu0 0.0
      %2625 = vmatpush1.msra.mxu0 0.0
      %2626 = vmatprep.subr.mxu0 0.0
      %2627 = vmatpush1.msra.mxu0 0.0
      %2628 = vmatprep.subr.mxu0 0.0
      %2629 = vmatpush1.msra.mxu0 0.0
      %2630 = vmatprep.subr.mxu0 0.0
      %2631 = vmatpush1.msra.mxu0 0.0
      %2632 = vmatprep.subr.mxu0 0.0
      %2633 = vmatpush1.msra.mxu0 0.0
      %2634 = vmatprep.subr.mxu0 0.0
      %2635 = vmatpush1.msra.mxu0 0.0
      %2636 = vmatprep.subr.mxu0 0.0
      %2637 = vmatpush1.msra.mxu0 0.0
      %2638 = vmatprep.subr.mxu0 0.0
      %2639 = vmatpush1.msra.mxu0 0.0
      %2640 = vmatprep.subr.mxu0 0.0
      %2641 = vmatpush1.msra.mxu0 0.0
      %2642 = vmatprep.subr.mxu0 0.0
      %2643 = vmatpush1.msra.mxu0 0.0
      %2644 = vmatprep.subr.mxu0 0.0
      %2645 = vmatpush1.msra.mxu0 0.0
      %2646 = vmatprep.mubr.f32.mxu0 0.0
      %2647 = vmatmul.mubr.f32.gmra.mrb[0].mxu0 %v1964
      %v2648 = vpop.f32.mrb[0].mxu0
      %v2649 = vadd.f32 0.0, %v2648
      %v2650 = vpop.f32.mrb[0].mxu0
      %2651 = vmatprep.mubr.f32.mxu0 0.0
      %2652 = vmatmul.mubr.f32.gmra.mrb[0].mxu0 %v1967
      %v2653 = vpop.f32.mrb[0].mxu0
      %v2654 = vadd.f32 0.0, %v2653
      %v2655 = vpop.f32.mrb[0].mxu0
      %2656 = vmatprep.mubr.f32.mxu0 0.0
      %2657 = vmatmul.mubr.f32.gmra.mrb[0].mxu0 %v1970
      %v2658 = vpop.f32.mrb[0].mxu0
      %v2659 = vadd.f32 0.0, %v2658
      %v2660 = vpop.f32.mrb[0].mxu0
      %2661 = vmatprep.mubr.f32.mxu0 0.0
      %2662 = vmatmul.mubr.f32.gmra.mrb[0].mxu0 %v1973
      %v2663 = vpop.f32.mrb[0].mxu0
      %v2664 = vadd.f32 0.0, %v2663
      %v2665 = vpop.f32.mrb[0].mxu0
      %2666 = vdwg.mxu0
      %v2667 = vsel %vm2060, %v2649, 0.0
      %2668 = vadd.xlane.f32.xlu0 %v2667
      %v2669 = vpop.xlane.xlu0 %2668
      %v2670 = vsel %vm2060, %v2654, 0.0
      %2671 = vadd.xlane.f32.xlu0 %v2670
      %v2672 = vpop.xlane.xlu0 %2671
      %v2673 = vsel %vm2060, %v2659, 0.0
      %2674 = vadd.xlane.f32.xlu0 %v2673
      %v2675 = vpop.xlane.xlu0 %2674
      %v2676 = vsel %vm2060, %v2664, 0.0
      %2677 = vadd.xlane.f32.xlu0 %v2676
      %v2678 = vpop.xlane.xlu0 %2677
      %v2679 = vmul.f32 %v2568, %v2568
      %v2680 = vmul.f32 %v2571, %v2571
      %v2681 = vmul.f32 %v2576, %v2576
      %v2682 = vmul.f32 %v2579, %v2579
      %2683 = vmatprep.subr.mxu0 0.0
      %2684 = vmatpush1.msra.mxu0 %v2679
      %2685 = vmatprep.subr.mxu0 0.0
      %2686 = vmatpush1.msra.mxu0 %v2680
      %2687 = vmatprep.subr.mxu0 0.0
      %2688 = vmatpush1.msra.mxu0 %v2681
      %2689 = vmatprep.subr.mxu0 0.0
      %2690 = vmatpush1.msra.mxu0 %v2682
      %2691 = vmatprep.subr.mxu0 0.0
      %2692 = vmatpush1.msra.mxu0 0.0
      %2693 = vmatprep.subr.mxu0 0.0
      %2694 = vmatpush1.msra.mxu0 0.0
      %2695 = vmatprep.subr.mxu0 0.0
      %2696 = vmatpush1.msra.mxu0 0.0
      %2697 = vmatprep.subr.mxu0 0.0
      %2698 = vmatpush1.msra.mxu0 0.0
      %2699 = vmatprep.subr.mxu0 0.0
      %2700 = vmatpush1.msra.mxu0 0.0
      %2701 = vmatprep.subr.mxu0 0.0
      %2702 = vmatpush1.msra.mxu0 0.0
      %2703 = vmatprep.subr.mxu0 0.0
      %2704 = vmatpush1.msra.mxu0 0.0
      %2705 = vmatprep.subr.mxu0 0.0
      %2706 = vmatpush1.msra.mxu0 0.0
      %2707 = vmatprep.subr.mxu0 0.0
      %2708 = vmatpush1.msra.mxu0 0.0
      %2709 = vmatprep.subr.mxu0 0.0
      %2710 = vmatpush1.msra.mxu0 0.0
      %2711 = vmatprep.subr.mxu0 0.0
      %2712 = vmatpush1.msra.mxu0 0.0
      %2713 = vmatprep.subr.mxu0 0.0
      %2714 = vmatpush1.msra.mxu0 0.0
      %2715 = vmatprep.subr.mxu0 0.0
      %2716 = vmatpush1.msra.mxu0 0.0
      %2717 = vmatprep.subr.mxu0 0.0
      %2718 = vmatpush1.msra.mxu0 0.0
      %2719 = vmatprep.subr.mxu0 0.0
      %2720 = vmatpush1.msra.mxu0 0.0
      %2721 = vmatprep.subr.mxu0 0.0
      %2722 = vmatpush1.msra.mxu0 0.0
      %2723 = vmatprep.subr.mxu0 0.0
      %2724 = vmatpush1.msra.mxu0 0.0
      %2725 = vmatprep.subr.mxu0 0.0
      %2726 = vmatpush1.msra.mxu0 0.0
      %2727 = vmatprep.subr.mxu0 0.0
      %2728 = vmatpush1.msra.mxu0 0.0
      %2729 = vmatprep.subr.mxu0 0.0
      %2730 = vmatpush1.msra.mxu0 0.0
      %2731 = vmatprep.subr.mxu0 0.0
      %2732 = vmatpush1.msra.mxu0 0.0
      %2733 = vmatprep.subr.mxu0 0.0
      %2734 = vmatpush1.msra.mxu0 0.0
      %2735 = vmatprep.subr.mxu0 0.0
      %2736 = vmatpush1.msra.mxu0 0.0
      %2737 = vmatprep.subr.mxu0 0.0
      %2738 = vmatpush1.msra.mxu0 0.0
      %2739 = vmatprep.subr.mxu0 0.0
      %2740 = vmatpush1.msra.mxu0 0.0
      %2741 = vmatprep.subr.mxu0 0.0
      %2742 = vmatpush1.msra.mxu0 0.0
      %2743 = vmatprep.subr.mxu0 0.0
      %2744 = vmatpush1.msra.mxu0 0.0
      %2745 = vmatprep.subr.mxu0 0.0
      %2746 = vmatpush1.msra.mxu0 0.0
      %2747 = vmatprep.mubr.f32.mxu0 0.0
      %2748 = vmatmul.mubr.f32.gmra.mrb[0].mxu0 %v1964
      %v2749 = vpop.f32.mrb[0].mxu0
      %v2750 = vadd.f32 0.0, %v2749
      %v2751 = vpop.f32.mrb[0].mxu0
      %2752 = vmatprep.mubr.f32.mxu0 0.0
      %2753 = vmatmul.mubr.f32.gmra.mrb[0].mxu0 %v1967
      %v2754 = vpop.f32.mrb[0].mxu0
      %v2755 = vadd.f32 0.0, %v2754
      %v2756 = vpop.f32.mrb[0].mxu0
      %2757 = vmatprep.mubr.f32.mxu0 0.0
      %2758 = vmatmul.mubr.f32.gmra.mrb[0].mxu0 %v1970
      %v2759 = vpop.f32.mrb[0].mxu0
      %v2760 = vadd.f32 0.0, %v2759
      %v2761 = vpop.f32.mrb[0].mxu0
      %2762 = vmatprep.mubr.f32.mxu0 0.0
      %2763 = vmatmul.mubr.f32.gmra.mrb[0].mxu0 %v1973
      %v2764 = vpop.f32.mrb[0].mxu0
      %v2765 = vadd.f32 0.0, %v2764
      %v2766 = vpop.f32.mrb[0].mxu0
      %2767 = vdwg.mxu0
      %v2768 = vsel %vm2060, %v2750, 0.0
      %2769 = vadd.xlane.f32.xlu0 %v2768
      %v2770 = vpop.xlane.xlu0 %2769
      %v2771 = vsel %vm2060, %v2755, 0.0
      %2772 = vadd.xlane.f32.xlu0 %v2771
      %v2773 = vpop.xlane.xlu0 %2772
      %v2774 = vsel %vm2060, %v2760, 0.0
      %2775 = vadd.xlane.f32.xlu0 %v2774
      %v2776 = vpop.xlane.xlu0 %2775
      %v2777 = vsel %vm2060, %v2765, 0.0
      %2778 = vadd.xlane.f32.xlu0 %v2777
      %v2779 = vpop.xlane.xlu0 %2778
      %v2780 = vmul.f32 %v2669, %v2669
      %v2781 = vmul.f32 %v2672, %v2672
      %v2782 = vmul.f32 %v2675, %v2675
      %v2783 = vmul.f32 %v2678, %v2678
      %v2784 = vsub.f32 %v2770, %v2780
      %v2785 = vsub.f32 %v2773, %v2781
      %v2786 = vsub.f32 %v2776, %v2782
      %v2787 = vsub.f32 %v2779, %v2783
      %v2788 = vmax.f32 %v2784, 0.0
      %v2789 = vmax.f32 %v2785, 0.0
      %v2790 = vmax.f32 %v2786, 0.0
      %v2791 = vmax.f32 %v2787, 0.0
      %v2792 = vadd.f32 %v2788, 1e-05
      %v2793 = vadd.f32 %v2789, 1e-05
      %v2794 = vadd.f32 %v2790, 1e-05
      %v2795 = vadd.f32 %v2791, 1e-05
      %v2796 = vrsqrt.pop %v2792
      %v2797 = vrsqrt.pop %v2793
      %v2798 = vrsqrt.pop %v2794
      %v2799 = vrsqrt.pop %v2795
      %v2800 = vmul.f32 %v2796, %v2266
      %v2801 = vmul.f32 %v2797, %v2267
      %v2802 = vmul.f32 %v2798, %v2268
      %v2803 = vmul.f32 %v2799, %v2269
      %v2804 = vmul.f32 %v2669, %v2800
      %v2805 = vmul.f32 %v2672, %v2801
      %v2806 = vmul.f32 %v2675, %v2802
      %v2807 = vmul.f32 %v2678, %v2803
      %v2808 = vsub.f32 %v2270, %v2804
      %v2809 = vsub.f32 %v2271, %v2805
      %v2810 = vsub.f32 %v2272, %v2806
      %v2811 = vsub.f32 %v2273, %v2807
      %2813 = vset.pattern.permute.xlu0 0
      %2814 = vperm.xlu0 %2813, %v2800
      %v2815 = vpop.permute.xlu0 %2814
      %2818 = vset.pattern.permute.xlu0 0
      %2819 = vperm.xlu0 %2818, %v2801
      %v2820 = vpop.permute.xlu0 %2819
      %2823 = vset.pattern.permute.xlu0 0
      %2824 = vperm.xlu0 %2823, %v2802
      %v2825 = vpop.permute.xlu0 %2824
      %2828 = vset.pattern.permute.xlu0 0
      %2829 = vperm.xlu0 %2828, %v2803
      %v2830 = vpop.permute.xlu0 %2829
      %v2832 = vmul.f32 %v2568, %v2815
      %v2833 = vmul.f32 %v2571, %v2820
      %v2834 = vmul.f32 %v2576, %v2825
      %v2835 = vmul.f32 %v2579, %v2830
      %2837 = vset.pattern.permute.xlu0 0
      %2838 = vperm.xlu0 %2837, %v2808
      %v2839 = vpop.permute.xlu0 %2838
      %2842 = vset.pattern.permute.xlu0 0
      %2843 = vperm.xlu0 %2842, %v2809
      %v2844 = vpop.permute.xlu0 %2843
      %2847 = vset.pattern.permute.xlu0 0
      %2848 = vperm.xlu0 %2847, %v2810
      %v2849 = vpop.permute.xlu0 %2848
      %2852 = vset.pattern.permute.xlu0 0
      %2853 = vperm.xlu0 %2852, %v2811
      %v2854 = vpop.permute.xlu0 %2853
      %v2856 = vadd.f32 %v2832, %v2839
      %v2857 = vadd.f32 %v2833, %v2844
      %v2858 = vadd.f32 %v2834, %v2849
      %v2859 = vadd.f32 %v2835, %v2854
      %v2860 = vmax.f32 %v2856, 0.0
      %v2861 = vmax.f32 %v2857, 0.0
      %v2862 = vmax.f32 %v2858, 0.0
      %v2863 = vmax.f32 %v2859, 0.0
      %v2864 = vld [vmem:[%s16] sm:$0xff]
      %v2865 = vld [vmem:[%s16 + $0x8] sm:$0xff]
      %v2866 = vld [vmem:[%s16 + $0x10] sm:$0xff]
      %v2867 = vld [vmem:[%s16 + $0x18] sm:$0xff]
      %v2868 = vld [vmem:[%s16 + $0x20] sm:$0xff]
      %v2869 = vld [vmem:[%s16 + $0x28] sm:$0xff]
      %v2870 = vld [vmem:[%s16 + $0x30] sm:$0xff]
      %v2871 = vld [vmem:[%s16 + $0x38] sm:$0xff]
      %2876 = vrot.lane.b32.xlu0 %v2860, 127
      %v2877 = vpop.permute.xlu0 %2876
      %2878 = vrot.lane.b32.xlu0 %v2861, 127
      %v2879 = vpop.permute.xlu0 %2878
      %2880 = vrot.lane.b32.xlu0 %v2862, 127
      %v2881 = vpop.permute.xlu0 %2880
      %2882 = vrot.lane.b32.xlu0 %v2863, 127
      %v2883 = vpop.permute.xlu0 %2882
      %v2888 = vsel %vm1844, %v2877, 0.0
      %v2889 = vsel %vm1844, %v2879, 0.0
      %v2890 = vsel %vm1844, %v2881, 0.0
      %v2891 = vsel %vm1844, %v2883, 0.0
      %v2892 = vmax.f32 %v2860, %v2888
      %v2893 = vmax.f32 %v2861, %v2889
      %v2894 = vmax.f32 %v2862, %v2890
      %v2895 = vmax.f32 %v2863, %v2891
      %2900 = vrot.lane.b32.xlu0 %v2892, 120
      %v2901 = vpop.permute.xlu0 %2900
      %2902 = vrot.lane.b32.xlu0 %v2893, 120
      %v2903 = vpop.permute.xlu0 %2902
      %2904 = vrot.lane.b32.xlu0 %v2894, 120
      %v2905 = vpop.permute.xlu0 %2904
      %2906 = vrot.lane.b32.xlu0 %v2895, 120
      %v2907 = vpop.permute.xlu0 %2906
      %v2912 = vsel %vm1866, %v2901, 0.0
      %v2913 = vsel %vm1866, %v2903, 0.0
      %v2914 = vsel %vm1866, %v2905, 0.0
      %v2915 = vsel %vm1866, %v2907, 0.0
      %v2916 = vmax.f32 %v2892, %v2912
      %v2917 = vmax.f32 %v2893, %v2913
      %v2918 = vmax.f32 %v2894, %v2914
      %v2919 = vmax.f32 %v2895, %v2915
      %v2921 = vsel %vm2060, %v2916, 0
      %v2924 = vsel %vm2060, %v2917, 0
      %v2927 = vsel %vm2060, %v2918, 0
      %v2930 = vsel %vm2060, %v2919, 0
      %2932 = vmatprep.subr.mxu0 0.0
      %2933 = vmatpush1.msra.mxu0 %v2864
      %2934 = vmatprep.subr.mxu0 0.0
      %2935 = vmatpush1.msra.mxu0 %v2865
      %2936 = vmatprep.subr.mxu0 0.0
      %2937 = vmatpush1.msra.mxu0 %v2866
      %2938 = vmatprep.subr.mxu0 0.0
      %2939 = vmatpush1.msra.mxu0 %v2867
      %2940 = vmatprep.subr.mxu0 0.0
      %2941 = vmatpush1.msra.mxu0 %v2868
      %2942 = vmatprep.subr.mxu0 0.0
      %2943 = vmatpush1.msra.mxu0 %v2869
      %2944 = vmatprep.subr.mxu0 0.0
      %2945 = vmatpush1.msra.mxu0 %v2870
      %2946 = vmatprep.subr.mxu0 0.0
      %2947 = vmatpush1.msra.mxu0 %v2871
      %2948 = vmatprep.subr.mxu0 0.0
      %2949 = vmatpush1.msra.mxu0 0.0
      %2950 = vmatprep.subr.mxu0 0.0
      %2951 = vmatpush1.msra.mxu0 0.0
      %2952 = vmatprep.subr.mxu0 0.0
      %2953 = vmatpush1.msra.mxu0 0.0
      %2954 = vmatprep.subr.mxu0 0.0
      %2955 = vmatpush1.msra.mxu0 0.0
      %2956 = vmatprep.subr.mxu0 0.0
      %2957 = vmatpush1.msra.mxu0 0.0
      %2958 = vmatprep.subr.mxu0 0.0
      %2959 = vmatpush1.msra.mxu0 0.0
      %2960 = vmatprep.subr.mxu0 0.0
      %2961 = vmatpush1.msra.mxu0 0.0
      %2962 = vmatprep.subr.mxu0 0.0
      %2963 = vmatpush1.msra.mxu0 0.0
      %2964 = vmatprep.subr.mxu0 0.0
      %2965 = vmatpush1.msra.mxu0 0.0
      %2966 = vmatprep.subr.mxu0 0.0
      %2967 = vmatpush1.msra.mxu0 0.0
      %2968 = vmatprep.subr.mxu0 0.0
      %2969 = vmatpush1.msra.mxu0 0.0
      %2970 = vmatprep.subr.mxu0 0.0
      %2971 = vmatpush1.msra.mxu0 0.0
      %2972 = vmatprep.subr.mxu0 0.0
      %2973 = vmatpush1.msra.mxu0 0.0
      %2974 = vmatprep.subr.mxu0 0.0
      %2975 = vmatpush1.msra.mxu0 0.0
      %2976 = vmatprep.subr.mxu0 0.0
      %2977 = vmatpush1.msra.mxu0 0.0
      %2978 = vmatprep.subr.mxu0 0.0
      %2979 = vmatpush1.msra.mxu0 0.0
      %2980 = vmatprep.subr.mxu0 0.0
      %2981 = vmatpush1.msra.mxu0 0.0
      %2982 = vmatprep.subr.mxu0 0.0
      %2983 = vmatpush1.msra.mxu0 0.0
      %2984 = vmatprep.subr.mxu0 0.0
      %2985 = vmatpush1.msra.mxu0 0.0
      %2986 = vmatprep.subr.mxu0 0.0
      %2987 = vmatpush1.msra.mxu0 0.0
      %2988 = vmatprep.subr.mxu0 0.0
      %2989 = vmatpush1.msra.mxu0 0.0
      %2990 = vmatprep.subr.mxu0 0.0
      %2991 = vmatpush1.msra.mxu0 0.0
      %2992 = vmatprep.subr.mxu0 0.0
      %2993 = vmatpush1.msra.mxu0 0.0
      %2994 = vmatprep.subr.mxu0 0.0
      %2995 = vmatpush1.msra.mxu0 0.0
      %2996 = vmatprep.mubr.f32.mxu0 0.0
      %2997 = vmatmul.mubr.f32.gmra.mrb[0].mxu0 %v2921
      %v2998 = vpop.f32.mrb[0].mxu0
      %v2999 = vadd.f32 0.0, %v2998
      %v3000 = vpop.f32.mrb[0].mxu0
      %3001 = vmatprep.mubr.f32.mxu0 0.0
      %3002 = vmatmul.mubr.f32.gmra.mrb[0].mxu0 %v2924
      %v3003 = vpop.f32.mrb[0].mxu0
      %v3004 = vadd.f32 0.0, %v3003
      %v3005 = vpop.f32.mrb[0].mxu0
      %3006 = vmatprep.mubr.f32.mxu0 0.0
      %3007 = vmatmul.mubr.f32.gmra.mrb[0].mxu0 %v2927
      %v3008 = vpop.f32.mrb[0].mxu0
      %v3009 = vadd.f32 0.0, %v3008
      %v3010 = vpop.f32.mrb[0].mxu0
      %3011 = vmatprep.mubr.f32.mxu0 0.0
      %3012 = vmatmul.mubr.f32.gmra.mrb[0].mxu0 %v2930
      %v3013 = vpop.f32.mrb[0].mxu0
      %v3014 = vadd.f32 0.0, %v3013
      %v3015 = vpop.f32.mrb[0].mxu0
      %3016 = vdwg.mxu0
      %v3017 = vld [vmem:[%s17] sm:$0xf]
      %v3018 = vld [vmem:[%s17 + $0x4] sm:$0xf]
      %v3019 = vld [vmem:[%s17 + $0x8] sm:$0xf]
      %v3020 = vld [vmem:[%s17 + $0xc] sm:$0xf]
      %v3021 = vpack.c.bf16 %v3004, %v2999
      %v3022 = vpack.c.bf16 %v3014, %v3009
      %v3027 = vunpack.c.l.b16 %v3017
      %v3028 = vunpack.c.l.b16 %v3018
      %v3029 = vunpack.c.l.b16 %v3019
      %v3030 = vunpack.c.l.b16 %v3020
      %v3031 = vpack.c.b16 %v3028, %v3027
      %v3032 = vpack.c.b16 %v3030, %v3029
      %v3034 = vsel %vm1962, %v3031, 0
      %v3037 = vsel %vm1962, %v3032, 0
      %3039 = vmatprep.subr.bf16.mxu0 0
      %3040 = vmatpush1.bf16.msra.mxu0 %v3021
      %3041 = vmatprep.subr.bf16.mxu0 0
      %3042 = vmatpush1.bf16.msra.mxu0 %v3022
      %3043 = vmatprep.subr.bf16.mxu0 0
      %3044 = vmatpush1.bf16.msra.mxu0 0
      %3045 = vmatprep.subr.bf16.mxu0 0
      %3046 = vmatpush1.bf16.msra.mxu0 0
      %3047 = vmatprep.subr.bf16.mxu0 0
      %3048 = vmatpush1.bf16.msra.mxu0 0
      %3049 = vmatprep.subr.bf16.mxu0 0
      %3050 = vmatpush1.bf16.msra.mxu0 0
      %3051 = vmatprep.subr.bf16.mxu0 0
      %3052 = vmatpush1.bf16.msra.mxu0 0
      %3053 = vmatprep.subr.bf16.mxu0 0
      %3054 = vmatpush1.bf16.msra.mxu0 0
      %3055 = vmatprep.subr.bf16.mxu0 0
      %3056 = vmatpush1.bf16.msra.mxu0 0
      %3057 = vmatprep.subr.bf16.mxu0 0
      %3058 = vmatpush1.bf16.msra.mxu0 0
      %3059 = vmatprep.subr.bf16.mxu0 0
      %3060 = vmatpush1.bf16.msra.mxu0 0
      %3061 = vmatprep.subr.bf16.mxu0 0
      %3062 = vmatpush1.bf16.msra.mxu0 0
      %3063 = vmatprep.subr.bf16.mxu0 0
      %3064 = vmatpush1.bf16.msra.mxu0 0
      %3065 = vmatprep.subr.bf16.mxu0 0
      %3066 = vmatpush1.bf16.msra.mxu0 0
      %3067 = vmatprep.subr.bf16.mxu0 0
      %3068 = vmatpush1.bf16.msra.mxu0 0
      %3069 = vmatprep.subr.bf16.mxu0 0
      %3070 = vmatpush1.bf16.msra.mxu0 0
      %3071 = vmatprep.mubr.bf16.mxu0 0
      %3072 = vmatmul.mubr.bf16.gmra.mrb[0].mxu0 %v3034
      %v3073 = vpop.f32.mrb[0].mxu0
      %v3074 = vadd.f32 0.0, %v3073
      %v3075 = vpop.f32.mrb[0].mxu0
      %v3076 = vpop.f32.mrb[0].mxu0
      %v3077 = vadd.f32 0.0, %v3076
      %v3078 = vpop.f32.mrb[0].mxu0
      %3079 = vmatprep.mubr.bf16.mxu0 0
      %3080 = vmatmul.mubr.bf16.gmra.mrb[0].mxu0 %v3037
      %v3081 = vpop.f32.mrb[0].mxu0
      %v3082 = vadd.f32 0.0, %v3081
      %v3083 = vpop.f32.mrb[0].mxu0
      %v3084 = vpop.f32.mrb[0].mxu0
      %v3085 = vadd.f32 0.0, %v3084
      %v3086 = vpop.f32.mrb[0].mxu0
      %3087 = vdwg.mxu0
      %v3088 = vsel %vm638, %v3074, 0.0
      %3089 = vadd.xlane.f32.xlu0 %v3088
      %v3090 = vpop.xlane.xlu0 %3089
      %v3091 = vsel %vm638, %v3077, 0.0
      %3092 = vadd.xlane.f32.xlu0 %v3091
      %v3093 = vpop.xlane.xlu0 %3092
      %v3094 = vsel %vm638, %v3082, 0.0
      %3095 = vadd.xlane.f32.xlu0 %v3094
      %v3096 = vpop.xlane.xlu0 %3095
      %v3097 = vsel %vm638, %v3085, 0.0
      %3098 = vadd.xlane.f32.xlu0 %v3097
      %v3099 = vpop.xlane.xlu0 %3098
      %v3100 = vmul.f32 %v3090, 0.0625
      %v3101 = vmul.f32 %v3093, 0.0625
      %v3102 = vmul.f32 %v3096, 0.0625
      %v3103 = vmul.f32 %v3099, 0.0625
      %3104 = vst.msk [vmem:[%s572] sm:$0xff] %vm658, %v3100
      %3105 = vst.msk [vmem:[%s572 + $0x8] sm:$0xff] %vm658, %v3101
      %3106 = vst.msk [vmem:[%s572 + $0x10] sm:$0xff] %vm658, %v3102
      %3107 = vst.msk [vmem:[%s572 + $0x18] sm:$0xff] %vm658, %v3103
      %p3108 = scmp.lt.s32.totalorder %s29, 1
      %s3109 = scalar_select %p3108, %s29, 1
      %s3110 = smul.addr %s3109, 4
      %s3111 = smul.addr %s3110, 8
      %s3112 = scalar_lea.vmem %s18, %s3111
      // Predicated region
      $region93: #{vgg4_forward.1} parent=91 // pred_check
        %p3113 = pneg %p430
      $region94: #{vgg4_forward.1} parent=91 // pred_check_branch
        %3115 = sbr.rel (%p3113) target = $region96
      $region95: #{vgg4_forward.1} parent=91 // pred_region
        _
      $region96: #{vgg4_forward.1} parent=91 // pred_fallthru
        _
    $region92: #{vgg4_forward.1} parent=5 // pred_fallthru
      _
    %p3116 = scmp.le.s32.totalorder 2, %s24
    // Predicated region
    $region97: #{vgg4_forward.1} parent=5 // pred_check
      %p3117 = pneg %p3116
    $region98: #{vgg4_forward.1} parent=5 // pred_check_branch
      %3119 = sbr.rel (%p3117) target = $region100
    $region99: #{vgg4_forward.1} parent=5 // pred_region
      %s3120 = ssub.s32 %s24, 2
      // Predicated region
      $region101: #{vgg4_forward.1} parent=99 // pred_check
        %p3121 = pneg %p436
      $region102: #{vgg4_forward.1} parent=99 // pred_check_branch
        %3123 = sbr.rel (%p3121) target = $region104
      $region103: #{vgg4_forward.1} parent=99 // pred_region
        %p3124 = scmp.lt.s32.totalorder %s30, 1
        %s3125 = scalar_select %p3124, %s30, 1
        %s3126 = smul.addr %s3125, 4
        %s3127 = smul.addr %s3126, 8
        %s3128 = scalar_lea.vmem %s18, %s3127
      $region104: #{vgg4_forward.1} parent=99 // pred_fallthru
        _
    $region100: #{vgg4_forward.1} parent=5 // pred_fallthru
      _
  $region6: #{vgg4_forward.1} parent=0 // loop_footer
    %s28 = sadd.s32 1, %s24
  $region7: #{vgg4_forward.1} parent=0 // loop_footer_branch
    %23 = sbr.rel target = $region3
  $region8: #{vgg4_forward.1} parent=0 // loop_exit
    _

</llo_original>
